<compile_context>
chip_gen: v7x
topology: tpu7x:2x2x1
jax: 0.10.0
libtpu: 0.0.40
codegen_flags: <defaults>
</compile_context>

<pallas_src>
import functools

import jax
import jax.numpy as jnp
from jax.experimental import pallas as pl
from jax.experimental.pallas import tpu as pltpu

NODE_INPUT_DIM = 49
EDGE_INPUT_DIM = 8
NODE_HIDDEN = 16
DRUG_LAYERS = 3
LANE = 128  # TPU lane width; padded feature width carried through the model.


def _cparams():
    return pltpu.CompilerParams(dimension_semantics=("arbitrary",))


# ----------------------------------------------------------------------------
# Pallas kernels (lane-dense, pre-padded tiles; bf16 at the MXU, f32 VPU/EUP)
# ----------------------------------------------------------------------------
def _linear_kernel(x_ref, w_ref, b_ref, o_ref, *, activation):
    acc = jnp.dot(x_ref[...].astype(jnp.bfloat16), w_ref[...].astype(jnp.bfloat16),
                  preferred_element_type=jnp.float32)
    acc = acc + b_ref[...]
    if activation == "relu":
        acc = jnp.maximum(acc, 0.0)
    o_ref[...] = acc


def pallas_linear(x, w, b, activation="none"):
    """out = act(x @ w + b); all operands already padded / lane-dense."""
    M, K = x.shape
    N = w.shape[1]
    return pl.pallas_call(
        functools.partial(_linear_kernel, activation=activation),
        out_shape=jax.ShapeDtypeStruct((M, N), jnp.float32),
        grid=(1,),
        in_specs=[
            pl.BlockSpec((M, K), lambda i: (0, 0)),
            pl.BlockSpec((K, N), lambda i: (0, 0)),
            pl.BlockSpec((1, N), lambda i: (0, 0)),
        ],
        out_specs=pl.BlockSpec((M, N), lambda i: (0, 0)),
        compiler_params=_cparams(),
    )(x, w, b)


def _mlp2_kernel(x_ref, w1_ref, b1_ref, w2_ref, b2_ref, o_ref, *, use_bn, act_out):
    h = jnp.dot(x_ref[...].astype(jnp.bfloat16), w1_ref[...].astype(jnp.bfloat16),
                preferred_element_type=jnp.float32) + b1_ref[...]
    if use_bn:  # BatchNorm1d, training mode: batch stats, gamma=1, beta=0
        mean = jnp.mean(h, axis=0, keepdims=True)
        var = jnp.mean((h - mean) ** 2, axis=0, keepdims=True)
        h = (h - mean) * jax.lax.rsqrt(var + 1e-5)
    h = jnp.maximum(h, 0.0)
    acc = jnp.dot(h.astype(jnp.bfloat16), w2_ref[...].astype(jnp.bfloat16),
                  preferred_element_type=jnp.float32) + b2_ref[...]
    if act_out == "relu":
        acc = jnp.maximum(acc, 0.0)
    o_ref[...] = acc


def pallas_mlp2(x, w1, b1, w2, b2, use_bn=False, act_out="none"):
    """Fused 2-layer MLP: act_out( (bn?) relu(x@w1+b1) @ w2 + b2 )."""
    M, K = x.shape
    H = w1.shape[1]
    N = w2.shape[1]
    return pl.pallas_call(
        functools.partial(_mlp2_kernel, use_bn=use_bn, act_out=act_out),
        out_shape=jax.ShapeDtypeStruct((M, N), jnp.float32),
        grid=(1,),
        in_specs=[
            pl.BlockSpec((M, K), lambda i: (0, 0)),
            pl.BlockSpec((K, H), lambda i: (0, 0)),
            pl.BlockSpec((1, H), lambda i: (0, 0)),
            pl.BlockSpec((H, N), lambda i: (0, 0)),
            pl.BlockSpec((1, N), lambda i: (0, 0)),
        ],
        out_specs=pl.BlockSpec((M, N), lambda i: (0, 0)),
        compiler_params=_cparams(),
    )(x, w1, b1, w2, b2)


def _lstm_step_kernel(x_ref, w_ref, b_ref, c_ref, h_out_ref, c_out_ref):
    # One fused LSTM step (all Set2Set passes batched along rows):
    #   gates = [q*|h]_blockdiag @ W_blockdiag + b_per_row.
    # Gates are packed one-per-128-lane-slab so the splits are tile aligned.
    gates = jnp.dot(x_ref[...].astype(jnp.bfloat16), w_ref[...].astype(jnp.bfloat16),
                    preferred_element_type=jnp.float32) + b_ref[...]
    i_g = jax.nn.sigmoid(gates[:, 0 * LANE:1 * LANE])
    f_g = jax.nn.sigmoid(gates[:, 1 * LANE:2 * LANE])
    g_g = jnp.tanh(gates[:, 2 * LANE:3 * LANE])
    o_g = jax.nn.sigmoid(gates[:, 3 * LANE:4 * LANE])
    c_new = f_g * c_ref[...] + i_g * g_g
    h_out_ref[...] = o_g * jnp.tanh(c_new)
    c_out_ref[...] = c_new


def pallas_lstm_step(x, w, b, c):
    M, K = x.shape
    N = w.shape[1]
    Mb = b.shape[0]  # (1, N) shared bias or (M, N) per-row bias
    return pl.pallas_call(
        _lstm_step_kernel,
        out_shape=(jax.ShapeDtypeStruct((M, LANE), jnp.float32),
                   jax.ShapeDtypeStruct((M, LANE), jnp.float32)),
        grid=(1,),
        in_specs=[
            pl.BlockSpec((M, K), lambda i: (0, 0)),
            pl.BlockSpec((K, N), lambda i: (0, 0)),
            pl.BlockSpec((Mb, N), lambda i: (0, 0)),
            pl.BlockSpec((M, LANE), lambda i: (0, 0)),
        ],
        out_specs=(pl.BlockSpec((M, LANE), lambda i: (0, 0)),
                   pl.BlockSpec((M, LANE), lambda i: (0, 0))),
        compiler_params=_cparams(),
    )(x, w, b, c)


def _interaction_kernel(nr_ref, nc_ref, lm_ref, lmT_ref, rp_ref, cp_ref):
    nr = nr_ref[...].astype(jnp.bfloat16)
    nc = nc_ref[...].astype(jnp.bfloat16)
    dn = (((1,), (1,)), ((), ()))  # contract last dims -> A @ B.T without an XLU transpose
    s = jax.lax.dot_general(nr, nc, dn, preferred_element_type=jnp.float32)   # (Na,Nb)
    sT = jax.lax.dot_general(nc, nr, dn, preferred_element_type=jnp.float32)  # (Nb,Na)
    imap = (s * lm_ref[...]).astype(jnp.bfloat16)
    imapT = (sT * lmT_ref[...]).astype(jnp.bfloat16)
    rp_ref[...] = jnp.dot(imap, nc, preferred_element_type=jnp.float32)   # reactant'
    cp_ref[...] = jnp.dot(imapT, nr, preferred_element_type=jnp.float32)  # condition'


def pallas_condition_interaction(nr, nc, len_map, len_map_t):
    Na, Nb = nr.shape[0], nc.shape[0]
    return pl.pallas_call(
        _interaction_kernel,
        out_shape=(jax.ShapeDtypeStruct((Na, LANE), jnp.float32),
                   jax.ShapeDtypeStruct((Nb, LANE), jnp.float32)),
        grid=(1,),
        in_specs=[
            pl.BlockSpec((Na, LANE), lambda i: (0, 0)),
            pl.BlockSpec((Nb, LANE), lambda i: (0, 0)),
            pl.BlockSpec((Na, Nb), lambda i: (0, 0)),
            pl.BlockSpec((Nb, Na), lambda i: (0, 0)),
        ],
        out_specs=(pl.BlockSpec((Na, LANE), lambda i: (0, 0)),
                   pl.BlockSpec((Nb, LANE), lambda i: (0, 0))),
        compiler_params=_cparams(),
    )(nr, nc, len_map, len_map_t)


# ----------------------------------------------------------------------------
# JAX glue: padding, segment reductions, batched Set2Set, GINE, compressor
# ----------------------------------------------------------------------------
def pad_lanes(x, lanes=LANE):
    m, k = x.shape
    if k == lanes:
        return x
    return jnp.pad(x, ((0, 0), (0, lanes - k)))


def segment_mean(x, seg, n):
    s = jax.ops.segment_sum(x, seg, num_segments=n)
    cnt = jax.ops.segment_sum(jnp.ones((x.shape[0],), jnp.float32), seg, num_segments=n)
    return s / jnp.maximum(cnt, 1.0)[:, None]


def segment_std(x, seg, n):  # unbiased, like torch_scatter.scatter_std
    cnt = jax.ops.segment_sum(jnp.ones((x.shape[0],), jnp.float32), seg, num_segments=n)
    mean = jax.ops.segment_sum(x, seg, num_segments=n) / jnp.maximum(cnt, 1.0)[:, None]
    sq = jax.ops.segment_sum((x - mean[seg]) ** 2, seg, num_segments=n)
    var = sq / jnp.maximum(cnt - 1.0, 1.0)[:, None]
    return jnp.sqrt(jnp.maximum(var, 0.0))


def segment_softmax(e, seg, n):
    m = jax.ops.segment_max(e, seg, num_segments=n)
    ex = jnp.exp(e - m[seg])
    d = jax.ops.segment_sum(ex, seg, num_segments=n)
    return ex / d[seg]


def l2_normalize(v, eps=1e-12):
    nrm = jnp.sqrt(jnp.sum(v * v, axis=1, keepdims=True))
    return v / jnp.maximum(nrm, eps)


def multi_set2set(node_x, node_seg, num_rows, row_slices, channels, w_block, b_rows,
                  steps=2):
    """All Set2Set passes batched in one LSTM stream.

    node_x:     (total_nodes, LANE) node features from every pass, stacked.
    node_seg:   (total_nodes,) global LSTM-row id (= pass row offset + graph id).
    num_rows:   total LSTM rows R = sum of graphs over passes.
    row_slices: list of (row_offset, row_count) per pass (static Python ints).
    channels:   list of Set2Set channel count C per pass.
    w_block:    (P*LANE, 4*LANE) block-diagonal packed LSTM weights.
    b_rows:     (R, 4*LANE) per-row packed gate biases.
    Returns one q_star array per pass: (row_count_p, 2*C_p).
    """
    P = len(channels)
    R = num_rows
    h = jnp.zeros((R, LANE), jnp.float32)
    c = jnp.zeros((R, LANE), jnp.float32)
    q_stars = [jnp.zeros((cnt, 2 * C), jnp.float32)
               for (_, cnt), C in zip(row_slices, channels)]
    for _ in range(steps):
        x_in = jnp.zeros((R, P * LANE), jnp.float32)
        for p, ((off, cnt), C) in enumerate(zip(row_slices, channels)):
            x_in = x_in.at[off:off + cnt, p * LANE:p * LANE + 2 * C].set(q_stars[p])
            x_in = x_in.at[off:off + cnt,
                           p * LANE + 2 * C:p * LANE + 3 * C].set(h[off:off + cnt, :C])
        h, c = pallas_lstm_step(x_in, w_block, b_rows, c)   # one fused kernel per step
        e = jnp.sum(node_x * h[node_seg], axis=-1)          # padded lanes are 0
        a = segment_softmax(e, node_seg, R)
        r = jax.ops.segment_sum(a[:, None] * node_x, node_seg, num_segments=R)
        q_stars = [jnp.concatenate([h[off:off + cnt, :C], r[off:off + cnt, :C]], axis=1)
                   for (off, cnt), C in zip(row_slices, channels)]
    return q_stars


def gine_encode(x, edge_index, edge_attr, pp, num_layers):
    n_nodes = x.shape[0]
    # Node and edge input projections packed into one matmul: node rows carry
    # features at lanes [0,49), edge rows at lanes [49,57); the stacked weight
    # has node_w in rows 0..48 and edge_w in rows 49..56.
    xin = jnp.zeros((n_nodes + edge_attr.shape[0], LANE), jnp.float32)
    xin = xin.at[:n_nodes, :NODE_INPUT_DIM].set(x)
    xin = xin.at[n_nodes:, NODE_INPUT_DIM:NODE_INPUT_DIM + EDGE_INPUT_DIM].set(edge_attr)
    he = pallas_linear(xin, pp["proj_w"], pp["zero_b"])
    h = he[:n_nodes] + pp["node_b"]
    e = he[n_nodes:] + pp["edge_b"]
    src, dst = edge_index
    for l in range(num_layers):
        msg = jnp.maximum(h[src] + e, 0.0)
        agg = jax.ops.segment_sum(msg, dst, num_segments=n_nodes)
        # (1 + eps) * x_i + aggr (eps=0), then the 2-layer MLP + ReLU, fused.
        h = pallas_mlp2(h + agg, pp[f"mlp{l}_w1"], pp[f"mlp{l}_b1"],
                        pp[f"mlp{l}_w2"], pp[f"mlp{l}_b2"], act_out="relu")
    return h  # (n_nodes, LANE), first NODE_HIDDEN lanes real


def compress(x_pad, pp, key):
    # Linear -> BatchNorm(batch stats) -> ReLU -> Linear, fused in one kernel.
    out = pallas_mlp2(x_pad, pp["c_w1"], pp["c_b1"], pp["c_w2"], pp["c_b2"], use_bn=True)
    p = out[:, :1]
    bias = 0.0 + 0.0001
    u = jax.random.uniform(key, p.shape, jnp.float32)
    eps = (bias - (1.0 - bias)) * u + (1.0 - bias)
    gate_inputs = jnp.log(eps) - jnp.log(1.0 - eps)
    gate = jax.nn.sigmoid((gate_inputs + p) / 1.0)
    return jnp.squeeze(gate, axis=-1), p


# ----------------------------------------------------------------------------
# Parameter initialization (torch-like) and one-time padding / packing
# ----------------------------------------------------------------------------
def xavier(key, fan_in, fan_out):
    bound = (6.0 / (fan_in + fan_out)) ** 0.5
    return jax.random.uniform(key, (fan_in, fan_out), jnp.float32, -bound, bound)


def lstm_params(key, in_ch):
    k = 1.0 / (in_ch ** 0.5)
    ks = jax.random.split(key, 4)
    return {
        "w_ih": jax.random.uniform(ks[0], (2 * in_ch, 4 * in_ch), jnp.float32, -k, k),
        "w_hh": jax.random.uniform(ks[1], (in_ch, 4 * in_ch), jnp.float32, -k, k),
        "b_ih": jax.random.uniform(ks[2], (4 * in_ch,), jnp.float32, -k, k),
        "b_hh": jax.random.uniform(ks[3], (4 * in_ch,), jnp.float32, -k, k),
    }


def init_params(key):
    nh = NODE_HIDDEN
    keys = iter(jax.random.split(key, 64))
    enc = {
        "node_w": xavier(next(keys), NODE_INPUT_DIM, nh),
        "node_b": jnp.zeros((nh,), jnp.float32),
        "edge_w": xavier(next(keys), EDGE_INPUT_DIM, nh),
        "edge_b": jnp.zeros((nh,), jnp.float32),
    }
    for l in range(DRUG_LAYERS):
        enc[f"mlp{l}_w1"] = xavier(next(keys), nh, nh)
        enc[f"mlp{l}_b1"] = jnp.zeros((nh,), jnp.float32)
        enc[f"mlp{l}_w2"] = xavier(next(keys), nh, nh)
        enc[f"mlp{l}_b2"] = jnp.zeros((nh,), jnp.float32)
    return {
        "enc": enc,
        "g2t": lstm_params(next(keys), nh),
        "cong2t": lstm_params(next(keys), 2 * nh),
        "s2s_a2c": lstm_params(next(keys), 2 * nh),
        "c_w1": xavier(next(keys), 2 * nh, nh),
        "c_b1": jnp.zeros((nh,), jnp.float32),
        "c_w2": xavier(next(keys), nh, 1),
        "c_b2": jnp.zeros((1,), jnp.float32),
        "b_out_w": xavier(next(keys), 4 * nh, 2 * nh),
        "b_out_b": jnp.zeros((2 * nh,), jnp.float32),
        "fc1_w": xavier(next(keys), 10 * nh, 4 * nh),
        "fc1_b": jnp.zeros((4 * nh,), jnp.float32),
        "out_w": xavier(next(keys), 4 * nh, 2),
        "out_b": jnp.zeros((2,), jnp.float32),
    }


def _pad_w(w, kp, np_):
    K, N = w.shape
    return jnp.zeros((kp, np_), jnp.float32).at[:K, :N].set(w.astype(jnp.float32))


def _pad_b(b, np_):
    return jnp.zeros((1, np_), jnp.float32).at[0, :b.shape[0]].set(b.astype(jnp.float32))


def _pack_lstm_w(p, C):
    """Stack [W_ih; W_hh]; each gate goes into its own 128-lane slab."""
    w = jnp.concatenate([p["w_ih"], p["w_hh"]], axis=0)  # (3C, 4C)
    wp = jnp.zeros((LANE, 4 * LANE), jnp.float32)
    for j in range(4):
        wp = wp.at[:3 * C, j * LANE:j * LANE + C].set(w[:, j * C:(j + 1) * C])
    return wp


def _pack_lstm_b(p, C):
    b = p["b_ih"] + p["b_hh"]                            # (4C,)
    bp = jnp.zeros((1, 4 * LANE), jnp.float32)
    for j in range(4):
        bp = bp.at[0, j * LANE:j * LANE + C].set(b[j * C:(j + 1) * C])
    return bp


def prepare_params(p):
    """One-time lane-dense padding / packing of all weights (done outside jit)."""
    nh = NODE_HIDDEN
    enc = p["enc"]
    pp = {}
    proj = jnp.zeros((LANE, LANE), jnp.float32)
    proj = proj.at[:NODE_INPUT_DIM, :nh].set(enc["node_w"])
    proj = proj.at[NODE_INPUT_DIM:NODE_INPUT_DIM + EDGE_INPUT_DIM, :nh].set(enc["edge_w"])
    pp["proj_w"] = proj
    pp["zero_b"] = jnp.zeros((1, LANE), jnp.float32)
    pp["node_b"] = _pad_b(enc["node_b"], LANE)
    pp["edge_b"] = _pad_b(enc["edge_b"], LANE)
    for l in range(DRUG_LAYERS):
        pp[f"mlp{l}_w1"] = _pad_w(enc[f"mlp{l}_w1"], LANE, LANE)
        pp[f"mlp{l}_b1"] = _pad_b(enc[f"mlp{l}_b1"], LANE)
        pp[f"mlp{l}_w2"] = _pad_w(enc[f"mlp{l}_w2"], LANE, LANE)
        pp[f"mlp{l}_b2"] = _pad_b(enc[f"mlp{l}_b2"], LANE)
    # Block-diagonal stack of the three live Set2Set LSTMs (g2t, cong2t, a2c)
    # so one kernel launch per processing step serves every pass.
    wblock = jnp.zeros((3 * LANE, 4 * LANE), jnp.float32)
    wblock = wblock.at[0 * LANE:1 * LANE].set(_pack_lstm_w(p["g2t"], nh))
    wblock = wblock.at[1 * LANE:2 * LANE].set(_pack_lstm_w(p["cong2t"], 2 * nh))
    wblock = wblock.at[2 * LANE:3 * LANE].set(_pack_lstm_w(p["s2s_a2c"], 2 * nh))
    pp["s2s_wblock"] = wblock
    pp["g2t_b"] = _pack_lstm_b(p["g2t"], nh)
    pp["cong2t_b"] = _pack_lstm_b(p["cong2t"], 2 * nh)
    pp["a2c_b"] = _pack_lstm_b(p["s2s_a2c"], 2 * nh)
    pp["c_w1"], pp["c_b1"] = _pad_w(p["c_w1"], LANE, LANE), _pad_b(p["c_b1"], LANE)
    pp["c_w2"], pp["c_b2"] = _pad_w(p["c_w2"], LANE, LANE), _pad_b(p["c_b2"], LANE)
    pp["b_out_w"], pp["b_out_b"] = _pad_w(p["b_out_w"], LANE, LANE), _pad_b(p["b_out_b"], LANE)
    pp["fc1_w"], pp["fc1_b"] = _pad_w(p["fc1_w"], 2 * LANE, LANE), _pad_b(p["fc1_b"], LANE)
    pp["out_w"], pp["out_b"] = _pad_w(p["out_w"], LANE, LANE), _pad_b(p["out_b"], LANE)
    return pp


# ----------------------------------------------------------------------------
# CARL forward (jitted; dead branches of the reference model are DCE'd)
# ----------------------------------------------------------------------------
@functools.partial(jax.jit, static_argnames=("test",))
def carl_forward(pp, A, B, C, mapA, mapB, key, test=False):
    nh = NODE_HIDDEN
    G = mapA.shape[0]
    nA, nB = A["x"].shape[0], B["x"].shape[0]

    # ---- shared-weight GINE encoder, batched over the A/B/C node sets ----
    x_all = jnp.concatenate([A["x"], B["x"], C["x"]], axis=0)
    ea_all = jnp.concatenate([A["edge_attr"], B["edge_attr"], C["edge_attr"]], axis=0)
    src_all = jnp.concatenate([A["edge_index"][0], B["edge_index"][0] + nA,
                               C["edge_index"][0] + nA + nB])
    dst_all = jnp.concatenate([A["edge_index"][1], B["edge_index"][1] + nA,
                               C["edge_index"][1] + nA + nB])
    h_all = gine_encode(x_all, (src_all, dst_all), ea_all, pp, DRUG_LAYERS)
    reactant_g = h_all[:nA]
    condition_g = h_all[nA:nA + nB]
    drugC_g = h_all[nA + nB:]

    # ---- condition module (fused Pallas interaction kernel) ----
    nr = l2_normalize(reactant_g)            # padded lanes stay 0
    nc = l2_normalize(condition_g)
    len_map = mapA.T @ mapB                  # (Na, Nb)
    len_map_t = mapB.T @ mapA                # (Nb, Na) -> no in-kernel transpose needed
    r_prime, c_prime = pallas_condition_interaction(nr, nc, len_map, len_map_t)
    reactantconB_g = pad_lanes(jnp.concatenate([nr[:, :nh], r_prime[:, :nh]], axis=1))
    conditionconA_g = pad_lanes(jnp.concatenate([nc[:, :nh], c_prime[:, :nh]], axis=1))

    # ---- compressor / noise injection (independent of any Set2Set) ----
    k1, k2 = jax.random.split(key)
    lambda_pos, _importance = compress(reactantconB_g, pp, k1)
    lambda_pos = lambda_pos.reshape(-1, 1)
    lambda_neg = 1.0 - lambda_pos

    pos_to_product = jax.lax.stop_gradient(reactantconB_g)
    batchA = A["batch"]
    node_feature_mean = segment_mean(pos_to_product, batchA, G)[batchA]
    node_feature_std = segment_std(pos_to_product, batchA, G)[batchA]
    noisy_mean = lambda_pos * reactantconB_g + lambda_neg * node_feature_mean
    noisy_std = lambda_neg * node_feature_std
    to_product = noisy_mean + jax.random.uniform(k2, noisy_mean.shape, jnp.float32) * noisy_std
    w_reagent = lambda_neg * reactantconB_g

    # ---- all three live Set2Set passes in ONE batched LSTM stream ----
    # g2t(reactant_g) / g2t(condition_g) in the reference are never used in any
    # returned value -> dead code; only drugC needs the g2t Set2Set.
    row_slices = [(0, G), (G, 2 * G), (3 * G, G)]     # g2t(drugC), cong2t(A|B), a2c(to_product)
    channels = [nh, 2 * nh, 2 * nh]
    node_x = jnp.concatenate([drugC_g, reactantconB_g, conditionconA_g, to_product], axis=0)
    node_seg = jnp.concatenate([C["batch"],
                                A["batch"] + G, B["batch"] + 2 * G,
                                A["batch"] + 3 * G])
    b_rows = jnp.concatenate([
        jnp.broadcast_to(pp["g2t_b"], (G, 4 * LANE)),
        jnp.broadcast_to(pp["cong2t_b"], (2 * G, 4 * LANE)),
        jnp.broadcast_to(pp["a2c_b"], (G, 4 * LANE))], axis=0)
    q_stars = multi_set2set(node_x, node_seg, 4 * G, row_slices, channels,
                            pp["s2s_wblock"], b_rows, steps=2)
    drugC = q_stars[0]                      # (G, 2*nh)
    reactantconB = q_stars[1][:G]           # (G, 4*nh)
    conditionconA = q_stars[1][G:]          # (G, 4*nh)
    to_product_s2s = q_stars[2]             # (G, 4*nh)

    b_pred = segment_mean(w_reagent, batchA, G)[:, :2 * nh]
    c_out = conditionconA
    c_pred = to_product_s2s
    b_out = pallas_linear(pad_lanes(conditionconA), pp["b_out_w"], pp["b_out_b"])[:, :2 * nh]

    # fc1 + ReLU + (dropout p=0) + out, fused into one kernel.
    xcat = pad_lanes(jnp.concatenate([reactantconB, conditionconA, drugC], axis=1), 2 * LANE)
    logits = pallas_mlp2(xcat, pp["fc1_w"], pp["fc1_b"], pp["out_w"], pp["out_b"])
    if test:
        return logits[:, 0], logits[:, 1]
    return b_out, b_pred, c_out, c_pred, logits[:, 0], logits[:, 1]


# ----------------------------------------------------------------------------
# Synthetic graph data
# ----------------------------------------------------------------------------
def make_graph(key, sizes, node_dim=NODE_INPUT_DIM, edge_dim=EDGE_INPUT_DIM):
    n = sum(sizes)
    batch = jnp.concatenate(
        [jnp.full((s,), i, jnp.int32) for i, s in enumerate(sizes)]
    )
    src, dst = [], []
    off = 0
    for s in sizes:
        for j in range(s - 1):  # bidirectional chain within each graph
            src += [off + j, off + j + 1]
            dst += [off + j + 1, off + j]
        off += s
    k1, k2 = jax.random.split(key)
    x = jax.random.normal(k1, (n, node_dim), jnp.float32)
    ea = jax.random.normal(k2, (len(src), edge_dim), jnp.float32)
    return {
        "x": x,
        "edge_index": (jnp.array(src, jnp.int32), jnp.array(dst, jnp.int32)),
        "edge_attr": ea,
        "batch": batch,
    }


if __name__ == "__main__":
    root = jax.random.PRNGKey(0)
    kp, ka, kb, kc, kf = jax.random.split(root, 5)

    params = init_params(kp)
    padded_params = prepare_params(params)   # one-time lane-dense packing

    # Two reactions (graphs) per batch.
    A = make_graph(ka, [6, 4])   # reactant graphs: 10 nodes, 16 edges
    B = make_graph(kb, [4, 4])   # condition graphs: 8 nodes, 12 edges
    C = make_graph(kc, [5, 4])   # product graphs:   9 nodes, 14 edges

    num_graphs = 2
    mapA = jax.nn.one_hot(A["batch"], num_graphs, dtype=jnp.float32).T  # (2, 10)
    mapB = jax.nn.one_hot(B["batch"], num_graphs, dtype=jnp.float32).T  # (2, 8)

    outputs = carl_forward(padded_params, A, B, C, mapA, mapB, kf)
    outputs = jax.block_until_ready(outputs)

    b_out, b_pred, c_out, c_pred, x0, x1 = outputs
    assert b_out.shape == (num_graphs, 2 * NODE_HIDDEN)
    assert b_pred.shape == (num_graphs, 2 * NODE_HIDDEN)
    assert c_out.shape == (num_graphs, 4 * NODE_HIDDEN)
    assert c_pred.shape == (num_graphs, 4 * NODE_HIDDEN)
    assert x0.shape == (num_graphs,) and x1.shape == (num_graphs,)
    print("KERNEL_OK")
</pallas_src>

<mosaic_0001>
module attributes {stable_mosaic.version = 11 : i64} {
  func.func @_linear_kernel(%arg0: i32, %arg1: memref<69x128xf32, #tpu.memory_space<vmem>>, %arg2: memref<128x128xf32, #tpu.memory_space<vmem>>, %arg3: memref<1x128xf32, #tpu.memory_space<vmem>>, %arg4: memref<69x128xf32, #tpu.memory_space<vmem>>) attributes {dimension_semantics = [#tpu.dimension_semantics<arbitrary>], iteration_bounds = array<i64: 1>, scalar_prefetch = 0 : i64, scratch_operands = 0 : i64, tpu.core_type = #tpu.core_type<tc>, window_params = [{pipeline_mode = #tpu.pipeline_mode<synchronous>, transform_indices = @transform_0, window_bounds = array<i64: 69, 128>}, {pipeline_mode = #tpu.pipeline_mode<synchronous>, transform_indices = @transform_1, window_bounds = array<i64: 128, 128>}, {pipeline_mode = #tpu.pipeline_mode<synchronous>, transform_indices = @transform_2, window_bounds = array<i64: 1, 128>}, {pipeline_mode = #tpu.pipeline_mode<synchronous>, transform_indices = @transform_3, window_bounds = array<i64: 69, 128>}]} {
    %c0 = arith.constant 0 : index
    %c0_0 = arith.constant 0 : index
    %0 = vector.load %arg1[%c0, %c0_0] : memref<69x128xf32, #tpu.memory_space<vmem>>, vector<69x128xf32>
    %1 = arith.truncf %0 : vector<69x128xf32> to vector<69x128xbf16>
    %c0_1 = arith.constant 0 : index
    %c0_2 = arith.constant 0 : index
    %2 = vector.load %arg2[%c0_1, %c0_2] : memref<128x128xf32, #tpu.memory_space<vmem>>, vector<128x128xf32>
    %3 = arith.truncf %2 : vector<128x128xf32> to vector<128x128xbf16>
    %cst = arith.constant dense<0.000000e+00> : vector<69x128xf32>
    %4 = tpu.matmul %1, %3, %cst {dimension_numbers = #tpu.dot_dimension_numbers<[1], [0], [0], [1], [0, 0, 1, 1], [], []>} : vector<69x128xbf16>, vector<128x128xbf16>, vector<69x128xf32> -> vector<69x128xf32>
    %c0_3 = arith.constant 0 : index
    %c0_4 = arith.constant 0 : index
    %5 = vector.load %arg3[%c0_3, %c0_4] : memref<1x128xf32, #tpu.memory_space<vmem>>, vector<1x128xf32>
    %6 = vector.broadcast %5 : vector<1x128xf32> to vector<69x128xf32>
    %7 = arith.addf %4, %6 : vector<69x128xf32>
    %c0_5 = arith.constant 0 : index
    %c0_6 = arith.constant 0 : index
    %8 = vector.load %arg4[%c0_5, %c0_6] : memref<69x128xf32, #tpu.memory_space<vmem>>, vector<69x128xf32>
    tpu.vector_store %arg4[%c0_5, %c0_6], %7 {strides = array<i32>} : memref<69x128xf32, #tpu.memory_space<vmem>>, vector<69x128xf32>,
    return
  }
  func.func @transform_0(%arg0: i32) -> (i32, i32) {
    %c0_i32 = arith.constant 0 : i32
    %c0_i32_0 = arith.constant 0 : i32
    %c0_i32_1 = arith.constant 0 : i32
    return %c0_i32, %c0_i32_0 : i32, i32
  }
  func.func @transform_1(%arg0: i32) -> (i32, i32) {
    %c0_i32 = arith.constant 0 : i32
    %c0_i32_0 = arith.constant 0 : i32
    %c0_i32_1 = arith.constant 0 : i32
    return %c0_i32, %c0_i32_0 : i32, i32
  }
  func.func @transform_2(%arg0: i32) -> (i32, i32) {
    %c0_i32 = arith.constant 0 : i32
    %c0_i32_0 = arith.constant 0 : i32
    %c0_i32_1 = arith.constant 0 : i32
    return %c0_i32, %c0_i32_0 : i32, i32
  }
  func.func @transform_3(%arg0: i32) -> (i32, i32) {
    %c0_i32 = arith.constant 0 : i32
    %c0_i32_0 = arith.constant 0 : i32
    %c0_i32_1 = arith.constant 0 : i32
    return %c0_i32, %c0_i32_0 : i32, i32
  }
}

module attributes {stable_mosaic.version = 11 : i64} {
  func.func @_mlp2_kernel(%arg0: i32, %arg1: memref<27x128xf32, #tpu.memory_space<vmem>>, %arg2: memref<128x128xf32, #tpu.memory_space<vmem>>, %arg3: memref<1x128xf32, #tpu.memory_space<vmem>>, %arg4: memref<128x128xf32, #tpu.memory_space<vmem>>, %arg5: memref<1x128xf32, #tpu.memory_space<vmem>>, %arg6: memref<27x128xf32, #tpu.memory_space<vmem>>) attributes {dimension_semantics = [#tpu.dimension_semantics<arbitrary>], iteration_bounds = array<i64: 1>, scalar_prefetch = 0 : i64, scratch_operands = 0 : i64, tpu.core_type = #tpu.core_type<tc>, window_params = [{pipeline_mode = #tpu.pipeline_mode<synchronous>, transform_indices = @transform_0, window_bounds = array<i64: 27, 128>}, {pipeline_mode = #tpu.pipeline_mode<synchronous>, transform_indices = @transform_1, window_bounds = array<i64: 128, 128>}, {pipeline_mode = #tpu.pipeline_mode<synchronous>, transform_indices = @transform_2, window_bounds = array<i64: 1, 128>}, {pipeline_mode = #tpu.pipeline_mode<synchronous>, transform_indices = @transform_3, window_bounds = array<i64: 128, 128>}, {pipeline_mode = #tpu.pipeline_mode<synchronous>, transform_indices = @transform_4, window_bounds = array<i64: 1, 128>}, {pipeline_mode = #tpu.pipeline_mode<synchronous>, transform_indices = @transform_5, window_bounds = array<i64: 27, 128>}]} {
    %c0 = arith.constant 0 : index
    %c0_0 = arith.constant 0 : index
    %0 = vector.load %arg1[%c0, %c0_0] : memref<27x128xf32, #tpu.memory_space<vmem>>, vector<27x128xf32>
    %1 = arith.truncf %0 : vector<27x128xf32> to vector<27x128xbf16>
    %c0_1 = arith.constant 0 : index
    %c0_2 = arith.constant 0 : index
    %2 = vector.load %arg2[%c0_1, %c0_2] : memref<128x128xf32, #tpu.memory_space<vmem>>, vector<128x128xf32>
    %3 = arith.truncf %2 : vector<128x128xf32> to vector<128x128xbf16>
    %cst = arith.constant dense<0.000000e+00> : vector<27x128xf32>
    %4 = tpu.matmul %1, %3, %cst {dimension_numbers = #tpu.dot_dimension_numbers<[1], [0], [0], [1], [0, 0, 1, 1], [], []>} : vector<27x128xbf16>, vector<128x128xbf16>, vector<27x128xf32> -> vector<27x128xf32>
    %c0_3 = arith.constant 0 : index
    %c0_4 = arith.constant 0 : index
    %5 = vector.load %arg3[%c0_3, %c0_4] : memref<1x128xf32, #tpu.memory_space<vmem>>, vector<1x128xf32>
    %6 = vector.broadcast %5 : vector<1x128xf32> to vector<27x128xf32>
    %7 = arith.addf %4, %6 : vector<27x128xf32>
    %cst_5 = arith.constant 0.000000e+00 : f32
    %8 = vector.broadcast %cst_5 : f32 to vector<27x128xf32>
    %9 = arith.maximumf %7, %8 : vector<27x128xf32>
    %10 = arith.truncf %9 : vector<27x128xf32> to vector<27x128xbf16>
    %c0_6 = arith.constant 0 : index
    %c0_7 = arith.constant 0 : index
    %11 = vector.load %arg4[%c0_6, %c0_7] : memref<128x128xf32, #tpu.memory_space<vmem>>, vector<128x128xf32>
    %12 = arith.truncf %11 : vector<128x128xf32> to vector<128x128xbf16>
    %cst_8 = arith.constant dense<0.000000e+00> : vector<27x128xf32>
    %13 = tpu.matmul %10, %12, %cst_8 {dimension_numbers = #tpu.dot_dimension_numbers<[1], [0], [0], [1], [0, 0, 1, 1], [], []>} : vector<27x128xbf16>, vector<128x128xbf16>, vector<27x128xf32> -> vector<27x128xf32>
    %c0_9 = arith.constant 0 : index
    %c0_10 = arith.constant 0 : index
    %14 = vector.load %arg5[%c0_9, %c0_10] : memref<1x128xf32, #tpu.memory_space<vmem>>, vector<1x128xf32>
    %15 = vector.broadcast %14 : vector<1x128xf32> to vector<27x128xf32>
    %16 = arith.addf %13, %15 : vector<27x128xf32>
    %cst_11 = arith.constant 0.000000e+00 : f32
    %17 = vector.broadcast %cst_11 : f32 to vector<27x128xf32>
    %18 = arith.maximumf %16, %17 : vector<27x128xf32>
    %c0_12 = arith.constant 0 : index
    %c0_13 = arith.constant 0 : index
    %19 = vector.load %arg6[%c0_12, %c0_13] : memref<27x128xf32, #tpu.memory_space<vmem>>, vector<27x128xf32>
    tpu.vector_store %arg6[%c0_12, %c0_13], %18 {strides = array<i32>} : memref<27x128xf32, #tpu.memory_space<vmem>>, vector<27x128xf32>,
    return
  }
  func.func @transform_0(%arg0: i32) -> (i32, i32) {
    %c0_i32 = arith.constant 0 : i32
    %c0_i32_0 = arith.constant 0 : i32
    %c0_i32_1 = arith.constant 0 : i32
    return %c0_i32, %c0_i32_0 : i32, i32
  }
  func.func @transform_1(%arg0: i32) -> (i32, i32) {
    %c0_i32 = arith.constant 0 : i32
    %c0_i32_0 = arith.constant 0 : i32
    %c0_i32_1 = arith.constant 0 : i32
    return %c0_i32, %c0_i32_0 : i32, i32
  }
  func.func @transform_2(%arg0: i32) -> (i32, i32) {
    %c0_i32 = arith.constant 0 : i32
    %c0_i32_0 = arith.constant 0 : i32
    %c0_i32_1 = arith.constant 0 : i32
    return %c0_i32, %c0_i32_0 : i32, i32
  }
  func.func @transform_3(%arg0: i32) -> (i32, i32) {
    %c0_i32 = arith.constant 0 : i32
    %c0_i32_0 = arith.constant 0 : i32
    %c0_i32_1 = arith.constant 0 : i32
    return %c0_i32, %c0_i32_0 : i32, i32
  }
  func.func @transform_4(%arg0: i32) -> (i32, i32) {
    %c0_i32 = arith.constant 0 : i32
    %c0_i32_0 = arith.constant 0 : i32
    %c0_i32_1 = arith.constant 0 : i32
    return %c0_i32, %c0_i32_0 : i32, i32
  }
  func.func @transform_5(%arg0: i32) -> (i32, i32) {
    %c0_i32 = arith.constant 0 : i32
    %c0_i32_0 = arith.constant 0 : i32
    %c0_i32_1 = arith.constant 0 : i32
    return %c0_i32, %c0_i32_0 : i32, i32
  }
}

module attributes {stable_mosaic.version = 11 : i64} {
  func.func @_mlp2_kernel(%arg0: i32, %arg1: memref<27x128xf32, #tpu.memory_space<vmem>>, %arg2: memref<128x128xf32, #tpu.memory_space<vmem>>, %arg3: memref<1x128xf32, #tpu.memory_space<vmem>>, %arg4: memref<128x128xf32, #tpu.memory_space<vmem>>, %arg5: memref<1x128xf32, #tpu.memory_space<vmem>>, %arg6: memref<27x128xf32, #tpu.memory_space<vmem>>) attributes {dimension_semantics = [#tpu.dimension_semantics<arbitrary>], iteration_bounds = array<i64: 1>, scalar_prefetch = 0 : i64, scratch_operands = 0 : i64, tpu.core_type = #tpu.core_type<tc>, window_params = [{pipeline_mode = #tpu.pipeline_mode<synchronous>, transform_indices = @transform_0, window_bounds = array<i64: 27, 128>}, {pipeline_mode = #tpu.pipeline_mode<synchronous>, transform_indices = @transform_1, window_bounds = array<i64: 128, 128>}, {pipeline_mode = #tpu.pipeline_mode<synchronous>, transform_indices = @transform_2, window_bounds = array<i64: 1, 128>}, {pipeline_mode = #tpu.pipeline_mode<synchronous>, transform_indices = @transform_3, window_bounds = array<i64: 128, 128>}, {pipeline_mode = #tpu.pipeline_mode<synchronous>, transform_indices = @transform_4, window_bounds = array<i64: 1, 128>}, {pipeline_mode = #tpu.pipeline_mode<synchronous>, transform_indices = @transform_5, window_bounds = array<i64: 27, 128>}]} {
    %c0 = arith.constant 0 : index
    %c0_0 = arith.constant 0 : index
    %0 = vector.load %arg1[%c0, %c0_0] : memref<27x128xf32, #tpu.memory_space<vmem>>, vector<27x128xf32>
    %1 = arith.truncf %0 : vector<27x128xf32> to vector<27x128xbf16>
    %c0_1 = arith.constant 0 : index
    %c0_2 = arith.constant 0 : index
    %2 = vector.load %arg2[%c0_1, %c0_2] : memref<128x128xf32, #tpu.memory_space<vmem>>, vector<128x128xf32>
    %3 = arith.truncf %2 : vector<128x128xf32> to vector<128x128xbf16>
    %cst = arith.constant dense<0.000000e+00> : vector<27x128xf32>
    %4 = tpu.matmul %1, %3, %cst {dimension_numbers = #tpu.dot_dimension_numbers<[1], [0], [0], [1], [0, 0, 1, 1], [], []>} : vector<27x128xbf16>, vector<128x128xbf16>, vector<27x128xf32> -> vector<27x128xf32>
    %c0_3 = arith.constant 0 : index
    %c0_4 = arith.constant 0 : index
    %5 = vector.load %arg3[%c0_3, %c0_4] : memref<1x128xf32, #tpu.memory_space<vmem>>, vector<1x128xf32>
    %6 = vector.broadcast %5 : vector<1x128xf32> to vector<27x128xf32>
    %7 = arith.addf %4, %6 : vector<27x128xf32>
    %cst_5 = arith.constant 0.000000e+00 : f32
    %8 = vector.broadcast %cst_5 : f32 to vector<27x128xf32>
    %9 = arith.maximumf %7, %8 : vector<27x128xf32>
    %10 = arith.truncf %9 : vector<27x128xf32> to vector<27x128xbf16>
    %c0_6 = arith.constant 0 : index
    %c0_7 = arith.constant 0 : index
    %11 = vector.load %arg4[%c0_6, %c0_7] : memref<128x128xf32, #tpu.memory_space<vmem>>, vector<128x128xf32>
    %12 = arith.truncf %11 : vector<128x128xf32> to vector<128x128xbf16>
    %cst_8 = arith.constant dense<0.000000e+00> : vector<27x128xf32>
    %13 = tpu.matmul %10, %12, %cst_8 {dimension_numbers = #tpu.dot_dimension_numbers<[1], [0], [0], [1], [0, 0, 1, 1], [], []>} : vector<27x128xbf16>, vector<128x128xbf16>, vector<27x128xf32> -> vector<27x128xf32>
    %c0_9 = arith.constant 0 : index
    %c0_10 = arith.constant 0 : index
    %14 = vector.load %arg5[%c0_9, %c0_10] : memref<1x128xf32, #tpu.memory_space<vmem>>, vector<1x128xf32>
    %15 = vector.broadcast %14 : vector<1x128xf32> to vector<27x128xf32>
    %16 = arith.addf %13, %15 : vector<27x128xf32>
    %cst_11 = arith.constant 0.000000e+00 : f32
    %17 = vector.broadcast %cst_11 : f32 to vector<27x128xf32>
    %18 = arith.maximumf %16, %17 : vector<27x128xf32>
    %c0_12 = arith.constant 0 : index
    %c0_13 = arith.constant 0 : index
    %19 = vector.load %arg6[%c0_12, %c0_13] : memref<27x128xf32, #tpu.memory_space<vmem>>, vector<27x128xf32>
    tpu.vector_store %arg6[%c0_12, %c0_13], %18 {strides = array<i32>} : memref<27x128xf32, #tpu.memory_space<vmem>>, vector<27x128xf32>,
    return
  }
  func.func @transform_0(%arg0: i32) -> (i32, i32) {
    %c0_i32 = arith.constant 0 : i32
    %c0_i32_0 = arith.constant 0 : i32
    %c0_i32_1 = arith.constant 0 : i32
    return %c0_i32, %c0_i32_0 : i32, i32
  }
  func.func @transform_1(%arg0: i32) -> (i32, i32) {
    %c0_i32 = arith.constant 0 : i32
    %c0_i32_0 = arith.constant 0 : i32
    %c0_i32_1 = arith.constant 0 : i32
    return %c0_i32, %c0_i32_0 : i32, i32
  }
  func.func @transform_2(%arg0: i32) -> (i32, i32) {
    %c0_i32 = arith.constant 0 : i32
    %c0_i32_0 = arith.constant 0 : i32
    %c0_i32_1 = arith.constant 0 : i32
    return %c0_i32, %c0_i32_0 : i32, i32
  }
  func.func @transform_3(%arg0: i32) -> (i32, i32) {
    %c0_i32 = arith.constant 0 : i32
    %c0_i32_0 = arith.constant 0 : i32
    %c0_i32_1 = arith.constant 0 : i32
    return %c0_i32, %c0_i32_0 : i32, i32
  }
  func.func @transform_4(%arg0: i32) -> (i32, i32) {
    %c0_i32 = arith.constant 0 : i32
    %c0_i32_0 = arith.constant 0 : i32
    %c0_i32_1 = arith.constant 0 : i32
    return %c0_i32, %c0_i32_0 : i32, i32
  }
  func.func @transform_5(%arg0: i32) -> (i32, i32) {
    %c0_i32 = arith.constant 0 : i32
    %c0_i32_0 = arith.constant 0 : i32
    %c0_i32_1 = arith.constant 0 : i32
    return %c0_i32, %c0_i32_0 : i32, i32
  }
}

module attributes {stable_mosaic.version = 11 : i64} {
  func.func @_mlp2_kernel(%arg0: i32, %arg1: memref<27x128xf32, #tpu.memory_space<vmem>>, %arg2: memref<128x128xf32, #tpu.memory_space<vmem>>, %arg3: memref<1x128xf32, #tpu.memory_space<vmem>>, %arg4: memref<128x128xf32, #tpu.memory_space<vmem>>, %arg5: memref<1x128xf32, #tpu.memory_space<vmem>>, %arg6: memref<27x128xf32, #tpu.memory_space<vmem>>) attributes {dimension_semantics = [#tpu.dimension_semantics<arbitrary>], iteration_bounds = array<i64: 1>, scalar_prefetch = 0 : i64, scratch_operands = 0 : i64, tpu.core_type = #tpu.core_type<tc>, window_params = [{pipeline_mode = #tpu.pipeline_mode<synchronous>, transform_indices = @transform_0, window_bounds = array<i64: 27, 128>}, {pipeline_mode = #tpu.pipeline_mode<synchronous>, transform_indices = @transform_1, window_bounds = array<i64: 128, 128>}, {pipeline_mode = #tpu.pipeline_mode<synchronous>, transform_indices = @transform_2, window_bounds = array<i64: 1, 128>}, {pipeline_mode = #tpu.pipeline_mode<synchronous>, transform_indices = @transform_3, window_bounds = array<i64: 128, 128>}, {pipeline_mode = #tpu.pipeline_mode<synchronous>, transform_indices = @transform_4, window_bounds = array<i64: 1, 128>}, {pipeline_mode = #tpu.pipeline_mode<synchronous>, transform_indices = @transform_5, window_bounds = array<i64: 27, 128>}]} {
    %c0 = arith.constant 0 : index
    %c0_0 = arith.constant 0 : index
    %0 = vector.load %arg1[%c0, %c0_0] : memref<27x128xf32, #tpu.memory_space<vmem>>, vector<27x128xf32>
    %1 = arith.truncf %0 : vector<27x128xf32> to vector<27x128xbf16>
    %c0_1 = arith.constant 0 : index
    %c0_2 = arith.constant 0 : index
    %2 = vector.load %arg2[%c0_1, %c0_2] : memref<128x128xf32, #tpu.memory_space<vmem>>, vector<128x128xf32>
    %3 = arith.truncf %2 : vector<128x128xf32> to vector<128x128xbf16>
    %cst = arith.constant dense<0.000000e+00> : vector<27x128xf32>
    %4 = tpu.matmul %1, %3, %cst {dimension_numbers = #tpu.dot_dimension_numbers<[1], [0], [0], [1], [0, 0, 1, 1], [], []>} : vector<27x128xbf16>, vector<128x128xbf16>, vector<27x128xf32> -> vector<27x128xf32>
    %c0_3 = arith.constant 0 : index
    %c0_4 = arith.constant 0 : index
    %5 = vector.load %arg3[%c0_3, %c0_4] : memref<1x128xf32, #tpu.memory_space<vmem>>, vector<1x128xf32>
    %6 = vector.broadcast %5 : vector<1x128xf32> to vector<27x128xf32>
    %7 = arith.addf %4, %6 : vector<27x128xf32>
    %cst_5 = arith.constant 0.000000e+00 : f32
    %8 = vector.broadcast %cst_5 : f32 to vector<27x128xf32>
    %9 = arith.maximumf %7, %8 : vector<27x128xf32>
    %10 = arith.truncf %9 : vector<27x128xf32> to vector<27x128xbf16>
    %c0_6 = arith.constant 0 : index
    %c0_7 = arith.constant 0 : index
    %11 = vector.load %arg4[%c0_6, %c0_7] : memref<128x128xf32, #tpu.memory_space<vmem>>, vector<128x128xf32>
    %12 = arith.truncf %11 : vector<128x128xf32> to vector<128x128xbf16>
    %cst_8 = arith.constant dense<0.000000e+00> : vector<27x128xf32>
    %13 = tpu.matmul %10, %12, %cst_8 {dimension_numbers = #tpu.dot_dimension_numbers<[1], [0], [0], [1], [0, 0, 1, 1], [], []>} : vector<27x128xbf16>, vector<128x128xbf16>, vector<27x128xf32> -> vector<27x128xf32>
    %c0_9 = arith.constant 0 : index
    %c0_10 = arith.constant 0 : index
    %14 = vector.load %arg5[%c0_9, %c0_10] : memref<1x128xf32, #tpu.memory_space<vmem>>, vector<1x128xf32>
    %15 = vector.broadcast %14 : vector<1x128xf32> to vector<27x128xf32>
    %16 = arith.addf %13, %15 : vector<27x128xf32>
    %cst_11 = arith.constant 0.000000e+00 : f32
    %17 = vector.broadcast %cst_11 : f32 to vector<27x128xf32>
    %18 = arith.maximumf %16, %17 : vector<27x128xf32>
    %c0_12 = arith.constant 0 : index
    %c0_13 = arith.constant 0 : index
    %19 = vector.load %arg6[%c0_12, %c0_13] : memref<27x128xf32, #tpu.memory_space<vmem>>, vector<27x128xf32>
    tpu.vector_store %arg6[%c0_12, %c0_13], %18 {strides = array<i32>} : memref<27x128xf32, #tpu.memory_space<vmem>>, vector<27x128xf32>,
    return
  }
  func.func @transform_0(%arg0: i32) -> (i32, i32) {
    %c0_i32 = arith.constant 0 : i32
    %c0_i32_0 = arith.constant 0 : i32
    %c0_i32_1 = arith.constant 0 : i32
    return %c0_i32, %c0_i32_0 : i32, i32
  }
  func.func @transform_1(%arg0: i32) -> (i32, i32) {
    %c0_i32 = arith.constant 0 : i32
    %c0_i32_0 = arith.constant 0 : i32
    %c0_i32_1 = arith.constant 0 : i32
    return %c0_i32, %c0_i32_0 : i32, i32
  }
  func.func @transform_2(%arg0: i32) -> (i32, i32) {
    %c0_i32 = arith.constant 0 : i32
    %c0_i32_0 = arith.constant 0 : i32
    %c0_i32_1 = arith.constant 0 : i32
    return %c0_i32, %c0_i32_0 : i32, i32
  }
  func.func @transform_3(%arg0: i32) -> (i32, i32) {
    %c0_i32 = arith.constant 0 : i32
    %c0_i32_0 = arith.constant 0 : i32
    %c0_i32_1 = arith.constant 0 : i32
    return %c0_i32, %c0_i32_0 : i32, i32
  }
  func.func @transform_4(%arg0: i32) -> (i32, i32) {
    %c0_i32 = arith.constant 0 : i32
    %c0_i32_0 = arith.constant 0 : i32
    %c0_i32_1 = arith.constant 0 : i32
    return %c0_i32, %c0_i32_0 : i32, i32
  }
  func.func @transform_5(%arg0: i32) -> (i32, i32) {
    %c0_i32 = arith.constant 0 : i32
    %c0_i32_0 = arith.constant 0 : i32
    %c0_i32_1 = arith.constant 0 : i32
    return %c0_i32, %c0_i32_0 : i32, i32
  }
}

module attributes {stable_mosaic.version = 11 : i64} {
  func.func @_interaction_kernel(%arg0: i32, %arg1: memref<10x128xf32, #tpu.memory_space<vmem>>, %arg2: memref<8x128xf32, #tpu.memory_space<vmem>>, %arg3: memref<10x8xf32, #tpu.memory_space<vmem>>, %arg4: memref<8x10xf32, #tpu.memory_space<vmem>>, %arg5: memref<10x128xf32, #tpu.memory_space<vmem>>, %arg6: memref<8x128xf32, #tpu.memory_space<vmem>>) attributes {dimension_semantics = [#tpu.dimension_semantics<arbitrary>], iteration_bounds = array<i64: 1>, scalar_prefetch = 0 : i64, scratch_operands = 0 : i64, tpu.core_type = #tpu.core_type<tc>, window_params = [{pipeline_mode = #tpu.pipeline_mode<synchronous>, transform_indices = @transform_0, window_bounds = array<i64: 10, 128>}, {pipeline_mode = #tpu.pipeline_mode<synchronous>, transform_indices = @transform_1, window_bounds = array<i64: 8, 128>}, {pipeline_mode = #tpu.pipeline_mode<synchronous>, transform_indices = @transform_2, window_bounds = array<i64: 10, 8>}, {pipeline_mode = #tpu.pipeline_mode<synchronous>, transform_indices = @transform_3, window_bounds = array<i64: 8, 10>}, {pipeline_mode = #tpu.pipeline_mode<synchronous>, transform_indices = @transform_4, window_bounds = array<i64: 10, 128>}, {pipeline_mode = #tpu.pipeline_mode<synchronous>, transform_indices = @transform_5, window_bounds = array<i64: 8, 128>}]} {
    %c0 = arith.constant 0 : index
    %c0_0 = arith.constant 0 : index
    %0 = vector.load %arg1[%c0, %c0_0] : memref<10x128xf32, #tpu.memory_space<vmem>>, vector<10x128xf32>
    %1 = arith.truncf %0 : vector<10x128xf32> to vector<10x128xbf16>
    %c0_1 = arith.constant 0 : index
    %c0_2 = arith.constant 0 : index
    %2 = vector.load %arg2[%c0_1, %c0_2] : memref<8x128xf32, #tpu.memory_space<vmem>>, vector<8x128xf32>
    %3 = arith.truncf %2 : vector<8x128xf32> to vector<8x128xbf16>
    %cst = arith.constant dense<0.000000e+00> : vector<10x8xf32>
    %4 = tpu.matmul %1, %3, %cst {dimension_numbers = #tpu.dot_dimension_numbers<[1], [1], [0], [0], [0, 0, 1, 0], [], []>} : vector<10x128xbf16>, vector<8x128xbf16>, vector<10x8xf32> -> vector<10x8xf32>
    %cst_3 = arith.constant dense<0.000000e+00> : vector<8x10xf32>
    %5 = tpu.matmul %3, %1, %cst_3 {dimension_numbers = #tpu.dot_dimension_numbers<[1], [1], [0], [0], [0, 0, 1, 0], [], []>} : vector<8x128xbf16>, vector<10x128xbf16>, vector<8x10xf32> -> vector<8x10xf32>
    %c0_4 = arith.constant 0 : index
    %c0_5 = arith.constant 0 : index
    %6 = vector.load %arg3[%c0_4, %c0_5] : memref<10x8xf32, #tpu.memory_space<vmem>>, vector<10x8xf32>
    %7 = arith.mulf %4, %6 : vector<10x8xf32>
    %8 = arith.truncf %7 : vector<10x8xf32> to vector<10x8xbf16>
    %c0_6 = arith.constant 0 : index
    %c0_7 = arith.constant 0 : index
    %9 = vector.load %arg4[%c0_6, %c0_7] : memref<8x10xf32, #tpu.memory_space<vmem>>, vector<8x10xf32>
    %10 = arith.mulf %5, %9 : vector<8x10xf32>
    %11 = arith.truncf %10 : vector<8x10xf32> to vector<8x10xbf16>
    %cst_8 = arith.constant dense<0.000000e+00> : vector<10x128xf32>
    %12 = tpu.matmul %8, %3, %cst_8 {dimension_numbers = #tpu.dot_dimension_numbers<[1], [0], [0], [1], [0, 0, 1, 1], [], []>} : vector<10x8xbf16>, vector<8x128xbf16>, vector<10x128xf32> -> vector<10x128xf32>
    %c0_9 = arith.constant 0 : index
    %c0_10 = arith.constant 0 : index
    %13 = vector.load %arg5[%c0_9, %c0_10] : memref<10x128xf32, #tpu.memory_space<vmem>>, vector<10x128xf32>
    tpu.vector_store %arg5[%c0_9, %c0_10], %12 {strides = array<i32>} : memref<10x128xf32, #tpu.memory_space<vmem>>, vector<10x128xf32>,
    %cst_11 = arith.constant dense<0.000000e+00> : vector<8x128xf32>
    %14 = tpu.matmul %11, %1, %cst_11 {dimension_numbers = #tpu.dot_dimension_numbers<[1], [0], [0], [1], [0, 0, 1, 1], [], []>} : vector<8x10xbf16>, vector<10x128xbf16>, vector<8x128xf32> -> vector<8x128xf32>
    %c0_12 = arith.constant 0 : index
    %c0_13 = arith.constant 0 : index
    %15 = vector.load %arg6[%c0_12, %c0_13] : memref<8x128xf32, #tpu.memory_space<vmem>>, vector<8x128xf32>
    tpu.vector_store %arg6[%c0_12, %c0_13], %14 {strides = array<i32>} : memref<8x128xf32, #tpu.memory_space<vmem>>, vector<8x128xf32>,
    return
  }
  func.func @transform_0(%arg0: i32) -> (i32, i32) {
    %c0_i32 = arith.constant 0 : i32
    %c0_i32_0 = arith.constant 0 : i32
    %c0_i32_1 = arith.constant 0 : i32
    return %c0_i32, %c0_i32_0 : i32, i32
  }
  func.func @transform_1(%arg0: i32) -> (i32, i32) {
    %c0_i32 = arith.constant 0 : i32
    %c0_i32_0 = arith.constant 0 : i32
    %c0_i32_1 = arith.constant 0 : i32
    return %c0_i32, %c0_i32_0 : i32, i32
  }
  func.func @transform_2(%arg0: i32) -> (i32, i32) {
    %c0_i32 = arith.constant 0 : i32
    %c0_i32_0 = arith.constant 0 : i32
    %c0_i32_1 = arith.constant 0 : i32
    return %c0_i32, %c0_i32_0 : i32, i32
  }
  func.func @transform_3(%arg0: i32) -> (i32, i32) {
    %c0_i32 = arith.constant 0 : i32
    %c0_i32_0 = arith.constant 0 : i32
    %c0_i32_1 = arith.constant 0 : i32
    return %c0_i32, %c0_i32_0 : i32, i32
  }
  func.func @transform_4(%arg0: i32) -> (i32, i32) {
    %c0_i32 = arith.constant 0 : i32
    %c0_i32_0 = arith.constant 0 : i32
    %c0_i32_1 = arith.constant 0 : i32
    return %c0_i32, %c0_i32_0 : i32, i32
  }
  func.func @transform_5(%arg0: i32) -> (i32, i32) {
    %c0_i32 = arith.constant 0 : i32
    %c0_i32_0 = arith.constant 0 : i32
    %c0_i32_1 = arith.constant 0 : i32
    return %c0_i32, %c0_i32_0 : i32, i32
  }
}

module attributes {stable_mosaic.version = 11 : i64} {
  func.func @_mlp2_kernel(%arg0: i32, %arg1: memref<10x128xf32, #tpu.memory_space<vmem>>, %arg2: memref<128x128xf32, #tpu.memory_space<vmem>>, %arg3: memref<1x128xf32, #tpu.memory_space<vmem>>, %arg4: memref<128x128xf32, #tpu.memory_space<vmem>>, %arg5: memref<1x128xf32, #tpu.memory_space<vmem>>, %arg6: memref<10x128xf32, #tpu.memory_space<vmem>>) attributes {dimension_semantics = [#tpu.dimension_semantics<arbitrary>], iteration_bounds = array<i64: 1>, scalar_prefetch = 0 : i64, scratch_operands = 0 : i64, tpu.core_type = #tpu.core_type<tc>, window_params = [{pipeline_mode = #tpu.pipeline_mode<synchronous>, transform_indices = @transform_0, window_bounds = array<i64: 10, 128>}, {pipeline_mode = #tpu.pipeline_mode<synchronous>, transform_indices = @transform_1, window_bounds = array<i64: 128, 128>}, {pipeline_mode = #tpu.pipeline_mode<synchronous>, transform_indices = @transform_2, window_bounds = array<i64: 1, 128>}, {pipeline_mode = #tpu.pipeline_mode<synchronous>, transform_indices = @transform_3, window_bounds = array<i64: 128, 128>}, {pipeline_mode = #tpu.pipeline_mode<synchronous>, transform_indices = @transform_4, window_bounds = array<i64: 1, 128>}, {pipeline_mode = #tpu.pipeline_mode<synchronous>, transform_indices = @transform_5, window_bounds = array<i64: 10, 128>}]} {
    %c0 = arith.constant 0 : index
    %c0_0 = arith.constant 0 : index
    %0 = vector.load %arg1[%c0, %c0_0] : memref<10x128xf32, #tpu.memory_space<vmem>>, vector<10x128xf32>
    %1 = arith.truncf %0 : vector<10x128xf32> to vector<10x128xbf16>
    %c0_1 = arith.constant 0 : index
    %c0_2 = arith.constant 0 : index
    %2 = vector.load %arg2[%c0_1, %c0_2] : memref<128x128xf32, #tpu.memory_space<vmem>>, vector<128x128xf32>
    %3 = arith.truncf %2 : vector<128x128xf32> to vector<128x128xbf16>
    %cst = arith.constant dense<0.000000e+00> : vector<10x128xf32>
    %4 = tpu.matmul %1, %3, %cst {dimension_numbers = #tpu.dot_dimension_numbers<[1], [0], [0], [1], [0, 0, 1, 1], [], []>} : vector<10x128xbf16>, vector<128x128xbf16>, vector<10x128xf32> -> vector<10x128xf32>
    %c0_3 = arith.constant 0 : index
    %c0_4 = arith.constant 0 : index
    %5 = vector.load %arg3[%c0_3, %c0_4] : memref<1x128xf32, #tpu.memory_space<vmem>>, vector<1x128xf32>
    %6 = vector.broadcast %5 : vector<1x128xf32> to vector<10x128xf32>
    %7 = arith.addf %4, %6 : vector<10x128xf32>
    %cst_5 = arith.constant dense<0.000000e+00> : vector<128xf32>
    %8 = vector.multi_reduction <add>, %7, %cst_5 [0] : vector<10x128xf32> to vector<128xf32>
    %9 = vector.shape_cast %8 : vector<128xf32> to vector<1x128xf32>
    %cst_6 = arith.constant 1.000000e+01 : f32
    %10 = vector.broadcast %cst_6 : f32 to vector<1x128xf32>
    %11 = arith.divf %9, %10 : vector<1x128xf32>
    %12 = vector.broadcast %11 : vector<1x128xf32> to vector<10x128xf32>
    %13 = arith.subf %7, %12 : vector<10x128xf32>
    %14 = arith.mulf %13, %13 : vector<10x128xf32>
    %cst_7 = arith.constant dense<0.000000e+00> : vector<128xf32>
    %15 = vector.multi_reduction <add>, %14, %cst_7 [0] : vector<10x128xf32> to vector<128xf32>
    %16 = vector.shape_cast %15 : vector<128xf32> to vector<1x128xf32>
    %cst_8 = arith.constant 1.000000e+01 : f32
    %17 = vector.broadcast %cst_8 : f32 to vector<1x128xf32>
    %18 = arith.divf %16, %17 : vector<1x128xf32>
    %19 = vector.broadcast %11 : vector<1x128xf32> to vector<10x128xf32>
    %20 = arith.subf %7, %19 : vector<10x128xf32>
    %cst_9 = arith.constant 9.99999974E-6 : f32
    %21 = vector.broadcast %cst_9 : f32 to vector<1x128xf32>
    %22 = arith.addf %18, %21 : vector<1x128xf32>
    %23 = math.rsqrt %22 : vector<1x128xf32>
    %24 = vector.broadcast %23 : vector<1x128xf32> to vector<10x128xf32>
    %25 = arith.mulf %20, %24 : vector<10x128xf32>
    %cst_10 = arith.constant 0.000000e+00 : f32
    %26 = vector.broadcast %cst_10 : f32 to vector<10x128xf32>
    %27 = arith.maximumf %25, %26 : vector<10x128xf32>
    %28 = arith.truncf %27 : vector<10x128xf32> to vector<10x128xbf16>
    %c0_11 = arith.constant 0 : index
    %c0_12 = arith.constant 0 : index
    %29 = vector.load %arg4[%c0_11, %c0_12] : memref<128x128xf32, #tpu.memory_space<vmem>>, vector<128x128xf32>
    %30 = arith.truncf %29 : vector<128x128xf32> to vector<128x128xbf16>
    %cst_13 = arith.constant dense<0.000000e+00> : vector<10x128xf32>
    %31 = tpu.matmul %28, %30, %cst_13 {dimension_numbers = #tpu.dot_dimension_numbers<[1], [0], [0], [1], [0, 0, 1, 1], [], []>} : vector<10x128xbf16>, vector<128x128xbf16>, vector<10x128xf32> -> vector<10x128xf32>
    %c0_14 = arith.constant 0 : index
    %c0_15 = arith.constant 0 : index
    %32 = vector.load %arg5[%c0_14, %c0_15] : memref<1x128xf32, #tpu.memory_space<vmem>>, vector<1x128xf32>
    %33 = vector.broadcast %32 : vector<1x128xf32> to vector<10x128xf32>
    %34 = arith.addf %31, %33 : vector<10x128xf32>
    %c0_16 = arith.constant 0 : index
    %c0_17 = arith.constant 0 : index
    %35 = vector.load %arg6[%c0_16, %c0_17] : memref<10x128xf32, #tpu.memory_space<vmem>>, vector<10x128xf32>
    tpu.vector_store %arg6[%c0_16, %c0_17], %34 {strides = array<i32>} : memref<10x128xf32, #tpu.memory_space<vmem>>, vector<10x128xf32>,
    return
  }
  func.func @transform_0(%arg0: i32) -> (i32, i32) {
    %c0_i32 = arith.constant 0 : i32
    %c0_i32_0 = arith.constant 0 : i32
    %c0_i32_1 = arith.constant 0 : i32
    return %c0_i32, %c0_i32_0 : i32, i32
  }
  func.func @transform_1(%arg0: i32) -> (i32, i32) {
    %c0_i32 = arith.constant 0 : i32
    %c0_i32_0 = arith.constant 0 : i32
    %c0_i32_1 = arith.constant 0 : i32
    return %c0_i32, %c0_i32_0 : i32, i32
  }
  func.func @transform_2(%arg0: i32) -> (i32, i32) {
    %c0_i32 = arith.constant 0 : i32
    %c0_i32_0 = arith.constant 0 : i32
    %c0_i32_1 = arith.constant 0 : i32
    return %c0_i32, %c0_i32_0 : i32, i32
  }
  func.func @transform_3(%arg0: i32) -> (i32, i32) {
    %c0_i32 = arith.constant 0 : i32
    %c0_i32_0 = arith.constant 0 : i32
    %c0_i32_1 = arith.constant 0 : i32
    return %c0_i32, %c0_i32_0 : i32, i32
  }
  func.func @transform_4(%arg0: i32) -> (i32, i32) {
    %c0_i32 = arith.constant 0 : i32
    %c0_i32_0 = arith.constant 0 : i32
    %c0_i32_1 = arith.constant 0 : i32
    return %c0_i32, %c0_i32_0 : i32, i32
  }
  func.func @transform_5(%arg0: i32) -> (i32, i32) {
    %c0_i32 = arith.constant 0 : i32
    %c0_i32_0 = arith.constant 0 : i32
    %c0_i32_1 = arith.constant 0 : i32
    return %c0_i32, %c0_i32_0 : i32, i32
  }
}

module attributes {stable_mosaic.version = 11 : i64} {
  func.func @_lstm_step_kernel(%arg0: i32, %arg1: memref<8x384xf32, #tpu.memory_space<vmem>>, %arg2: memref<384x512xf32, #tpu.memory_space<vmem>>, %arg3: memref<8x512xf32, #tpu.memory_space<vmem>>, %arg4: memref<8x128xf32, #tpu.memory_space<vmem>>, %arg5: memref<8x128xf32, #tpu.memory_space<vmem>>, %arg6: memref<8x128xf32, #tpu.memory_space<vmem>>) attributes {dimension_semantics = [#tpu.dimension_semantics<arbitrary>], iteration_bounds = array<i64: 1>, scalar_prefetch = 0 : i64, scratch_operands = 0 : i64, tpu.core_type = #tpu.core_type<tc>, window_params = [{pipeline_mode = #tpu.pipeline_mode<synchronous>, transform_indices = @transform_0, window_bounds = array<i64: 8, 384>}, {pipeline_mode = #tpu.pipeline_mode<synchronous>, transform_indices = @transform_1, window_bounds = array<i64: 384, 512>}, {pipeline_mode = #tpu.pipeline_mode<synchronous>, transform_indices = @transform_2, window_bounds = array<i64: 8, 512>}, {pipeline_mode = #tpu.pipeline_mode<synchronous>, transform_indices = @transform_3, window_bounds = array<i64: 8, 128>}, {pipeline_mode = #tpu.pipeline_mode<synchronous>, transform_indices = @transform_4, window_bounds = array<i64: 8, 128>}, {pipeline_mode = #tpu.pipeline_mode<synchronous>, transform_indices = @transform_5, window_bounds = array<i64: 8, 128>}]} {
    %c0 = arith.constant 0 : index
    %c0_0 = arith.constant 0 : index
    %0 = vector.load %arg1[%c0, %c0_0] : memref<8x384xf32, #tpu.memory_space<vmem>>, vector<8x384xf32>
    %1 = arith.truncf %0 : vector<8x384xf32> to vector<8x384xbf16>
    %c0_1 = arith.constant 0 : index
    %c0_2 = arith.constant 0 : index
    %2 = vector.load %arg2[%c0_1, %c0_2] : memref<384x512xf32, #tpu.memory_space<vmem>>, vector<384x512xf32>
    %3 = arith.truncf %2 : vector<384x512xf32> to vector<384x512xbf16>
    %cst = arith.constant dense<0.000000e+00> : vector<8x512xf32>
    %4 = tpu.matmul %1, %3, %cst {dimension_numbers = #tpu.dot_dimension_numbers<[1], [0], [0], [1], [0, 0, 1, 1], [], []>} : vector<8x384xbf16>, vector<384x512xbf16>, vector<8x512xf32> -> vector<8x512xf32>
    %c0_3 = arith.constant 0 : index
    %c0_4 = arith.constant 0 : index
    %5 = vector.load %arg3[%c0_3, %c0_4] : memref<8x512xf32, #tpu.memory_space<vmem>>, vector<8x512xf32>
    %6 = arith.addf %4, %5 : vector<8x512xf32>
    %7 = vector.extract_strided_slice %6 {offsets = [0, 0], sizes = [8, 128], strides = [1, 1]} : vector<8x512xf32> to vector<8x128xf32>
    %8 = arith.negf %7 : vector<8x128xf32>
    %9 = math.exp %8 : vector<8x128xf32>
    %cst_5 = arith.constant 1.000000e+00 : f32
    %10 = vector.broadcast %cst_5 : f32 to vector<8x128xf32>
    %11 = arith.addf %10, %9 : vector<8x128xf32>
    %12 = arith.divf %10, %11 : vector<8x128xf32>
    %13 = vector.extract_strided_slice %6 {offsets = [0, 128], sizes = [8, 128], strides = [1, 1]} : vector<8x512xf32> to vector<8x128xf32>
    %14 = arith.negf %13 : vector<8x128xf32>
    %15 = math.exp %14 : vector<8x128xf32>
    %cst_6 = arith.constant 1.000000e+00 : f32
    %16 = vector.broadcast %cst_6 : f32 to vector<8x128xf32>
    %17 = arith.addf %16, %15 : vector<8x128xf32>
    %18 = arith.divf %16, %17 : vector<8x128xf32>
    %19 = vector.extract_strided_slice %6 {offsets = [0, 256], sizes = [8, 128], strides = [1, 1]} : vector<8x512xf32> to vector<8x128xf32>
    %20 = math.tanh %19 : vector<8x128xf32>
    %21 = vector.extract_strided_slice %6 {offsets = [0, 384], sizes = [8, 128], strides = [1, 1]} : vector<8x512xf32> to vector<8x128xf32>
    %22 = arith.negf %21 : vector<8x128xf32>
    %23 = math.exp %22 : vector<8x128xf32>
    %cst_7 = arith.constant 1.000000e+00 : f32
    %24 = vector.broadcast %cst_7 : f32 to vector<8x128xf32>
    %25 = arith.addf %24, %23 : vector<8x128xf32>
    %26 = arith.divf %24, %25 : vector<8x128xf32>
    %c0_8 = arith.constant 0 : index
    %c0_9 = arith.constant 0 : index
    %27 = vector.load %arg4[%c0_8, %c0_9] : memref<8x128xf32, #tpu.memory_space<vmem>>, vector<8x128xf32>
    %28 = arith.mulf %18, %27 : vector<8x128xf32>
    %29 = arith.mulf %12, %20 : vector<8x128xf32>
    %30 = arith.addf %28, %29 : vector<8x128xf32>
    %31 = math.tanh %30 : vector<8x128xf32>
    %32 = arith.mulf %26, %31 : vector<8x128xf32>
    %c0_10 = arith.constant 0 : index
    %c0_11 = arith.constant 0 : index
    %33 = vector.load %arg5[%c0_10, %c0_11] : memref<8x128xf32, #tpu.memory_space<vmem>>, vector<8x128xf32>
    tpu.vector_store %arg5[%c0_10, %c0_11], %32 {strides = array<i32>} : memref<8x128xf32, #tpu.memory_space<vmem>>, vector<8x128xf32>,
    %c0_12 = arith.constant 0 : index
    %c0_13 = arith.constant 0 : index
    %34 = vector.load %arg6[%c0_12, %c0_13] : memref<8x128xf32, #tpu.memory_space<vmem>>, vector<8x128xf32>
    tpu.vector_store %arg6[%c0_12, %c0_13], %30 {strides = array<i32>} : memref<8x128xf32, #tpu.memory_space<vmem>>, vector<8x128xf32>,
    return
  }
  func.func @transform_0(%arg0: i32) -> (i32, i32) {
    %c0_i32 = arith.constant 0 : i32
    %c0_i32_0 = arith.constant 0 : i32
    %c0_i32_1 = arith.constant 0 : i32
    return %c0_i32, %c0_i32_0 : i32, i32
  }
  func.func @transform_1(%arg0: i32) -> (i32, i32) {
    %c0_i32 = arith.constant 0 : i32
    %c0_i32_0 = arith.constant 0 : i32
    %c0_i32_1 = arith.constant 0 : i32
    return %c0_i32, %c0_i32_0 : i32, i32
  }
  func.func @transform_2(%arg0: i32) -> (i32, i32) {
    %c0_i32 = arith.constant 0 : i32
    %c0_i32_0 = arith.constant 0 : i32
    %c0_i32_1 = arith.constant 0 : i32
    return %c0_i32, %c0_i32_0 : i32, i32
  }
  func.func @transform_3(%arg0: i32) -> (i32, i32) {
    %c0_i32 = arith.constant 0 : i32
    %c0_i32_0 = arith.constant 0 : i32
    %c0_i32_1 = arith.constant 0 : i32
    return %c0_i32, %c0_i32_0 : i32, i32
  }
  func.func @transform_4(%arg0: i32) -> (i32, i32) {
    %c0_i32 = arith.constant 0 : i32
    %c0_i32_0 = arith.constant 0 : i32
    %c0_i32_1 = arith.constant 0 : i32
    return %c0_i32, %c0_i32_0 : i32, i32
  }
  func.func @transform_5(%arg0: i32) -> (i32, i32) {
    %c0_i32 = arith.constant 0 : i32
    %c0_i32_0 = arith.constant 0 : i32
    %c0_i32_1 = arith.constant 0 : i32
    return %c0_i32, %c0_i32_0 : i32, i32
  }
}

module attributes {stable_mosaic.version = 11 : i64} {
  func.func @_lstm_step_kernel(%arg0: i32, %arg1: memref<8x384xf32, #tpu.memory_space<vmem>>, %arg2: memref<384x512xf32, #tpu.memory_space<vmem>>, %arg3: memref<8x512xf32, #tpu.memory_space<vmem>>, %arg4: memref<8x128xf32, #tpu.memory_space<vmem>>, %arg5: memref<8x128xf32, #tpu.memory_space<vmem>>, %arg6: memref<8x128xf32, #tpu.memory_space<vmem>>) attributes {dimension_semantics = [#tpu.dimension_semantics<arbitrary>], iteration_bounds = array<i64: 1>, scalar_prefetch = 0 : i64, scratch_operands = 0 : i64, tpu.core_type = #tpu.core_type<tc>, window_params = [{pipeline_mode = #tpu.pipeline_mode<synchronous>, transform_indices = @transform_0, window_bounds = array<i64: 8, 384>}, {pipeline_mode = #tpu.pipeline_mode<synchronous>, transform_indices = @transform_1, window_bounds = array<i64: 384, 512>}, {pipeline_mode = #tpu.pipeline_mode<synchronous>, transform_indices = @transform_2, window_bounds = array<i64: 8, 512>}, {pipeline_mode = #tpu.pipeline_mode<synchronous>, transform_indices = @transform_3, window_bounds = array<i64: 8, 128>}, {pipeline_mode = #tpu.pipeline_mode<synchronous>, transform_indices = @transform_4, window_bounds = array<i64: 8, 128>}, {pipeline_mode = #tpu.pipeline_mode<synchronous>, transform_indices = @transform_5, window_bounds = array<i64: 8, 128>}]} {
    %c0 = arith.constant 0 : index
    %c0_0 = arith.constant 0 : index
    %0 = vector.load %arg1[%c0, %c0_0] : memref<8x384xf32, #tpu.memory_space<vmem>>, vector<8x384xf32>
    %1 = arith.truncf %0 : vector<8x384xf32> to vector<8x384xbf16>
    %c0_1 = arith.constant 0 : index
    %c0_2 = arith.constant 0 : index
    %2 = vector.load %arg2[%c0_1, %c0_2] : memref<384x512xf32, #tpu.memory_space<vmem>>, vector<384x512xf32>
    %3 = arith.truncf %2 : vector<384x512xf32> to vector<384x512xbf16>
    %cst = arith.constant dense<0.000000e+00> : vector<8x512xf32>
    %4 = tpu.matmul %1, %3, %cst {dimension_numbers = #tpu.dot_dimension_numbers<[1], [0], [0], [1], [0, 0, 1, 1], [], []>} : vector<8x384xbf16>, vector<384x512xbf16>, vector<8x512xf32> -> vector<8x512xf32>
    %c0_3 = arith.constant 0 : index
    %c0_4 = arith.constant 0 : index
    %5 = vector.load %arg3[%c0_3, %c0_4] : memref<8x512xf32, #tpu.memory_space<vmem>>, vector<8x512xf32>
    %6 = arith.addf %4, %5 : vector<8x512xf32>
    %7 = vector.extract_strided_slice %6 {offsets = [0, 0], sizes = [8, 128], strides = [1, 1]} : vector<8x512xf32> to vector<8x128xf32>
    %8 = arith.negf %7 : vector<8x128xf32>
    %9 = math.exp %8 : vector<8x128xf32>
    %cst_5 = arith.constant 1.000000e+00 : f32
    %10 = vector.broadcast %cst_5 : f32 to vector<8x128xf32>
    %11 = arith.addf %10, %9 : vector<8x128xf32>
    %12 = arith.divf %10, %11 : vector<8x128xf32>
    %13 = vector.extract_strided_slice %6 {offsets = [0, 128], sizes = [8, 128], strides = [1, 1]} : vector<8x512xf32> to vector<8x128xf32>
    %14 = arith.negf %13 : vector<8x128xf32>
    %15 = math.exp %14 : vector<8x128xf32>
    %cst_6 = arith.constant 1.000000e+00 : f32
    %16 = vector.broadcast %cst_6 : f32 to vector<8x128xf32>
    %17 = arith.addf %16, %15 : vector<8x128xf32>
    %18 = arith.divf %16, %17 : vector<8x128xf32>
    %19 = vector.extract_strided_slice %6 {offsets = [0, 256], sizes = [8, 128], strides = [1, 1]} : vector<8x512xf32> to vector<8x128xf32>
    %20 = math.tanh %19 : vector<8x128xf32>
    %21 = vector.extract_strided_slice %6 {offsets = [0, 384], sizes = [8, 128], strides = [1, 1]} : vector<8x512xf32> to vector<8x128xf32>
    %22 = arith.negf %21 : vector<8x128xf32>
    %23 = math.exp %22 : vector<8x128xf32>
    %cst_7 = arith.constant 1.000000e+00 : f32
    %24 = vector.broadcast %cst_7 : f32 to vector<8x128xf32>
    %25 = arith.addf %24, %23 : vector<8x128xf32>
    %26 = arith.divf %24, %25 : vector<8x128xf32>
    %c0_8 = arith.constant 0 : index
    %c0_9 = arith.constant 0 : index
    %27 = vector.load %arg4[%c0_8, %c0_9] : memref<8x128xf32, #tpu.memory_space<vmem>>, vector<8x128xf32>
    %28 = arith.mulf %18, %27 : vector<8x128xf32>
    %29 = arith.mulf %12, %20 : vector<8x128xf32>
    %30 = arith.addf %28, %29 : vector<8x128xf32>
    %31 = math.tanh %30 : vector<8x128xf32>
    %32 = arith.mulf %26, %31 : vector<8x128xf32>
    %c0_10 = arith.constant 0 : index
    %c0_11 = arith.constant 0 : index
    %33 = vector.load %arg5[%c0_10, %c0_11] : memref<8x128xf32, #tpu.memory_space<vmem>>, vector<8x128xf32>
    tpu.vector_store %arg5[%c0_10, %c0_11], %32 {strides = array<i32>} : memref<8x128xf32, #tpu.memory_space<vmem>>, vector<8x128xf32>,
    %c0_12 = arith.constant 0 : index
    %c0_13 = arith.constant 0 : index
    %34 = vector.load %arg6[%c0_12, %c0_13] : memref<8x128xf32, #tpu.memory_space<vmem>>, vector<8x128xf32>
    tpu.vector_store %arg6[%c0_12, %c0_13], %30 {strides = array<i32>} : memref<8x128xf32, #tpu.memory_space<vmem>>, vector<8x128xf32>,
    return
  }
  func.func @transform_0(%arg0: i32) -> (i32, i32) {
    %c0_i32 = arith.constant 0 : i32
    %c0_i32_0 = arith.constant 0 : i32
    %c0_i32_1 = arith.constant 0 : i32
    return %c0_i32, %c0_i32_0 : i32, i32
  }
  func.func @transform_1(%arg0: i32) -> (i32, i32) {
    %c0_i32 = arith.constant 0 : i32
    %c0_i32_0 = arith.constant 0 : i32
    %c0_i32_1 = arith.constant 0 : i32
    return %c0_i32, %c0_i32_0 : i32, i32
  }
  func.func @transform_2(%arg0: i32) -> (i32, i32) {
    %c0_i32 = arith.constant 0 : i32
    %c0_i32_0 = arith.constant 0 : i32
    %c0_i32_1 = arith.constant 0 : i32
    return %c0_i32, %c0_i32_0 : i32, i32
  }
  func.func @transform_3(%arg0: i32) -> (i32, i32) {
    %c0_i32 = arith.constant 0 : i32
    %c0_i32_0 = arith.constant 0 : i32
    %c0_i32_1 = arith.constant 0 : i32
    return %c0_i32, %c0_i32_0 : i32, i32
  }
  func.func @transform_4(%arg0: i32) -> (i32, i32) {
    %c0_i32 = arith.constant 0 : i32
    %c0_i32_0 = arith.constant 0 : i32
    %c0_i32_1 = arith.constant 0 : i32
    return %c0_i32, %c0_i32_0 : i32, i32
  }
  func.func @transform_5(%arg0: i32) -> (i32, i32) {
    %c0_i32 = arith.constant 0 : i32
    %c0_i32_0 = arith.constant 0 : i32
    %c0_i32_1 = arith.constant 0 : i32
    return %c0_i32, %c0_i32_0 : i32, i32
  }
}

module attributes {stable_mosaic.version = 11 : i64} {
  func.func @_linear_kernel(%arg0: i32, %arg1: memref<2x128xf32, #tpu.memory_space<vmem>>, %arg2: memref<128x128xf32, #tpu.memory_space<vmem>>, %arg3: memref<1x128xf32, #tpu.memory_space<vmem>>, %arg4: memref<2x128xf32, #tpu.memory_space<vmem>>) attributes {dimension_semantics = [#tpu.dimension_semantics<arbitrary>], iteration_bounds = array<i64: 1>, scalar_prefetch = 0 : i64, scratch_operands = 0 : i64, tpu.core_type = #tpu.core_type<tc>, window_params = [{pipeline_mode = #tpu.pipeline_mode<synchronous>, transform_indices = @transform_0, window_bounds = array<i64: 2, 128>}, {pipeline_mode = #tpu.pipeline_mode<synchronous>, transform_indices = @transform_1, window_bounds = array<i64: 128, 128>}, {pipeline_mode = #tpu.pipeline_mode<synchronous>, transform_indices = @transform_2, window_bounds = array<i64: 1, 128>}, {pipeline_mode = #tpu.pipeline_mode<synchronous>, transform_indices = @transform_3, window_bounds = array<i64: 2, 128>}]} {
    %c0 = arith.constant 0 : index
    %c0_0 = arith.constant 0 : index
    %0 = vector.load %arg1[%c0, %c0_0] : memref<2x128xf32, #tpu.memory_space<vmem>>, vector<2x128xf32>
    %1 = arith.truncf %0 : vector<2x128xf32> to vector<2x128xbf16>
    %c0_1 = arith.constant 0 : index
    %c0_2 = arith.constant 0 : index
    %2 = vector.load %arg2[%c0_1, %c0_2] : memref<128x128xf32, #tpu.memory_space<vmem>>, vector<128x128xf32>
    %3 = arith.truncf %2 : vector<128x128xf32> to vector<128x128xbf16>
    %cst = arith.constant dense<0.000000e+00> : vector<2x128xf32>
    %4 = tpu.matmul %1, %3, %cst {dimension_numbers = #tpu.dot_dimension_numbers<[1], [0], [0], [1], [0, 0, 1, 1], [], []>} : vector<2x128xbf16>, vector<128x128xbf16>, vector<2x128xf32> -> vector<2x128xf32>
    %c0_3 = arith.constant 0 : index
    %c0_4 = arith.constant 0 : index
    %5 = vector.load %arg3[%c0_3, %c0_4] : memref<1x128xf32, #tpu.memory_space<vmem>>, vector<1x128xf32>
    %6 = vector.broadcast %5 : vector<1x128xf32> to vector<2x128xf32>
    %7 = arith.addf %4, %6 : vector<2x128xf32>
    %c0_5 = arith.constant 0 : index
    %c0_6 = arith.constant 0 : index
    %8 = vector.load %arg4[%c0_5, %c0_6] : memref<2x128xf32, #tpu.memory_space<vmem>>, vector<2x128xf32>
    tpu.vector_store %arg4[%c0_5, %c0_6], %7 {strides = array<i32>} : memref<2x128xf32, #tpu.memory_space<vmem>>, vector<2x128xf32>,
    return
  }
  func.func @transform_0(%arg0: i32) -> (i32, i32) {
    %c0_i32 = arith.constant 0 : i32
    %c0_i32_0 = arith.constant 0 : i32
    %c0_i32_1 = arith.constant 0 : i32
    return %c0_i32, %c0_i32_0 : i32, i32
  }
  func.func @transform_1(%arg0: i32) -> (i32, i32) {
    %c0_i32 = arith.constant 0 : i32
    %c0_i32_0 = arith.constant 0 : i32
    %c0_i32_1 = arith.constant 0 : i32
    return %c0_i32, %c0_i32_0 : i32, i32
  }
  func.func @transform_2(%arg0: i32) -> (i32, i32) {
    %c0_i32 = arith.constant 0 : i32
    %c0_i32_0 = arith.constant 0 : i32
    %c0_i32_1 = arith.constant 0 : i32
    return %c0_i32, %c0_i32_0 : i32, i32
  }
  func.func @transform_3(%arg0: i32) -> (i32, i32) {
    %c0_i32 = arith.constant 0 : i32
    %c0_i32_0 = arith.constant 0 : i32
    %c0_i32_1 = arith.constant 0 : i32
    return %c0_i32, %c0_i32_0 : i32, i32
  }
}

module attributes {stable_mosaic.version = 11 : i64} {
  func.func @_mlp2_kernel(%arg0: i32, %arg1: memref<2x256xf32, #tpu.memory_space<vmem>>, %arg2: memref<256x128xf32, #tpu.memory_space<vmem>>, %arg3: memref<1x128xf32, #tpu.memory_space<vmem>>, %arg4: memref<128x128xf32, #tpu.memory_space<vmem>>, %arg5: memref<1x128xf32, #tpu.memory_space<vmem>>, %arg6: memref<2x128xf32, #tpu.memory_space<vmem>>) attributes {dimension_semantics = [#tpu.dimension_semantics<arbitrary>], iteration_bounds = array<i64: 1>, scalar_prefetch = 0 : i64, scratch_operands = 0 : i64, tpu.core_type = #tpu.core_type<tc>, window_params = [{pipeline_mode = #tpu.pipeline_mode<synchronous>, transform_indices = @transform_0, window_bounds = array<i64: 2, 256>}, {pipeline_mode = #tpu.pipeline_mode<synchronous>, transform_indices = @transform_1, window_bounds = array<i64: 256, 128>}, {pipeline_mode = #tpu.pipeline_mode<synchronous>, transform_indices = @transform_2, window_bounds = array<i64: 1, 128>}, {pipeline_mode = #tpu.pipeline_mode<synchronous>, transform_indices = @transform_3, window_bounds = array<i64: 128, 128>}, {pipeline_mode = #tpu.pipeline_mode<synchronous>, transform_indices = @transform_4, window_bounds = array<i64: 1, 128>}, {pipeline_mode = #tpu.pipeline_mode<synchronous>, transform_indices = @transform_5, window_bounds = array<i64: 2, 128>}]} {
    %c0 = arith.constant 0 : index
    %c0_0 = arith.constant 0 : index
    %0 = vector.load %arg1[%c0, %c0_0] : memref<2x256xf32, #tpu.memory_space<vmem>>, vector<2x256xf32>
    %1 = arith.truncf %0 : vector<2x256xf32> to vector<2x256xbf16>
    %c0_1 = arith.constant 0 : index
    %c0_2 = arith.constant 0 : index
    %2 = vector.load %arg2[%c0_1, %c0_2] : memref<256x128xf32, #tpu.memory_space<vmem>>, vector<256x128xf32>
    %3 = arith.truncf %2 : vector<256x128xf32> to vector<256x128xbf16>
    %cst = arith.constant dense<0.000000e+00> : vector<2x128xf32>
    %4 = tpu.matmul %1, %3, %cst {dimension_numbers = #tpu.dot_dimension_numbers<[1], [0], [0], [1], [0, 0, 1, 1], [], []>} : vector<2x256xbf16>, vector<256x128xbf16>, vector<2x128xf32> -> vector<2x128xf32>
    %c0_3 = arith.constant 0 : index
    %c0_4 = arith.constant 0 : index
    %5 = vector.load %arg3[%c0_3, %c0_4] : memref<1x128xf32, #tpu.memory_space<vmem>>, vector<1x128xf32>
    %6 = vector.broadcast %5 : vector<1x128xf32> to vector<2x128xf32>
    %7 = arith.addf %4, %6 : vector<2x128xf32>
    %cst_5 = arith.constant 0.000000e+00 : f32
    %8 = vector.broadcast %cst_5 : f32 to vector<2x128xf32>
    %9 = arith.maximumf %7, %8 : vector<2x128xf32>
    %10 = arith.truncf %9 : vector<2x128xf32> to vector<2x128xbf16>
    %c0_6 = arith.constant 0 : index
    %c0_7 = arith.constant 0 : index
    %11 = vector.load %arg4[%c0_6, %c0_7] : memref<128x128xf32, #tpu.memory_space<vmem>>, vector<128x128xf32>
    %12 = arith.truncf %11 : vector<128x128xf32> to vector<128x128xbf16>
    %cst_8 = arith.constant dense<0.000000e+00> : vector<2x128xf32>
    %13 = tpu.matmul %10, %12, %cst_8 {dimension_numbers = #tpu.dot_dimension_numbers<[1], [0], [0], [1], [0, 0, 1, 1], [], []>} : vector<2x128xbf16>, vector<128x128xbf16>, vector<2x128xf32> -> vector<2x128xf32>
    %c0_9 = arith.constant 0 : index
    %c0_10 = arith.constant 0 : index
    %14 = vector.load %arg5[%c0_9, %c0_10] : memref<1x128xf32, #tpu.memory_space<vmem>>, vector<1x128xf32>
    %15 = vector.broadcast %14 : vector<1x128xf32> to vector<2x128xf32>
    %16 = arith.addf %13, %15 : vector<2x128xf32>
    %c0_11 = arith.constant 0 : index
    %c0_12 = arith.constant 0 : index
    %17 = vector.load %arg6[%c0_11, %c0_12] : memref<2x128xf32, #tpu.memory_space<vmem>>, vector<2x128xf32>
    tpu.vector_store %arg6[%c0_11, %c0_12], %16 {strides = array<i32>} : memref<2x128xf32, #tpu.memory_space<vmem>>, vector<2x128xf32>,
    return
  }
  func.func @transform_0(%arg0: i32) -> (i32, i32) {
    %c0_i32 = arith.constant 0 : i32
    %c0_i32_0 = arith.constant 0 : i32
    %c0_i32_1 = arith.constant 0 : i32
    return %c0_i32, %c0_i32_0 : i32, i32
  }
  func.func @transform_1(%arg0: i32) -> (i32, i32) {
    %c0_i32 = arith.constant 0 : i32
    %c0_i32_0 = arith.constant 0 : i32
    %c0_i32_1 = arith.constant 0 : i32
    return %c0_i32, %c0_i32_0 : i32, i32
  }
  func.func @transform_2(%arg0: i32) -> (i32, i32) {
    %c0_i32 = arith.constant 0 : i32
    %c0_i32_0 = arith.constant 0 : i32
    %c0_i32_1 = arith.constant 0 : i32
    return %c0_i32, %c0_i32_0 : i32, i32
  }
  func.func @transform_3(%arg0: i32) -> (i32, i32) {
    %c0_i32 = arith.constant 0 : i32
    %c0_i32_0 = arith.constant 0 : i32
    %c0_i32_1 = arith.constant 0 : i32
    return %c0_i32, %c0_i32_0 : i32, i32
  }
  func.func @transform_4(%arg0: i32) -> (i32, i32) {
    %c0_i32 = arith.constant 0 : i32
    %c0_i32_0 = arith.constant 0 : i32
    %c0_i32_1 = arith.constant 0 : i32
    return %c0_i32, %c0_i32_0 : i32, i32
  }
  func.func @transform_5(%arg0: i32) -> (i32, i32) {
    %c0_i32 = arith.constant 0 : i32
    %c0_i32_0 = arith.constant 0 : i32
    %c0_i32_1 = arith.constant 0 : i32
    return %c0_i32, %c0_i32_0 : i32, i32
  }
}

</mosaic_0001>

<llo_original>
// kernel: carl_forward.13
$region0: #{carl_forward.13}
  #allocation0 [shape = 'u32[]', space=smem, size = 0x4, offset = 0x4, fixed_abs, tag = 'smem constant byte address 0x4 - core index']
  #allocation1 [shape = 'u32[144,128]{1,0:T(1,128)}', space=vmem, size = 0x12000, scoped, tag = 'internal scratch']
  %s0 = inlined_call_operand.vmem [shape: f32[69,128], index: 0, kind: input, shape index: {}]
  %s1 = inlined_call_operand.vmem [shape: f32[128,128], index: 1, kind: input, shape index: {}]
  %s2 = inlined_call_operand.vmem [shape: f32[1,128], index: 2, kind: input, shape index: {}]
  %s3 = inlined_call_operand.vmem [shape: f32[69,128], index: 3, kind: output, shape index: {}]
  %s4 = sld [smem:[#allocation0]]
  $region22: #{carl_forward.13} parent=0
    _
  %s6 = ssub.s32 1, %s4
  %s7 = scalar_select 0, %s6, %s4
  // Predicated region
  $region2: #{carl_forward.13} parent=0 // pred_check
    _
  $region3: #{carl_forward.13} parent=0 // pred_check_branch
    %9 = sbr.rel (0) target = $region5
  $region4: #{carl_forward.13} parent=0 // pred_region
    _
  $region5: #{carl_forward.13} parent=0 // pred_fallthru
    _
  // Predicated region
  $region6: #{carl_forward.13} parent=0 // pred_check
    _
  $region7: #{carl_forward.13} parent=0 // pred_check_branch
    %11 = sbr.rel (0) target = $region9
  $region8: #{carl_forward.13} parent=0 // pred_region
    _
  $region9: #{carl_forward.13} parent=0 // pred_fallthru
    _
  // Predicated region
  $region10: #{carl_forward.13} parent=0 // pred_check
    _
  $region11: #{carl_forward.13} parent=0 // pred_check_branch
    %13 = sbr.rel (0) target = $region13
  $region12: #{carl_forward.13} parent=0 // pred_region
    _
  $region13: #{carl_forward.13} parent=0 // pred_fallthru
    _
  %v15 = vld [vmem:[%s0] sm:$0xff]
  %v16 = vld [vmem:[%s0 + $0x8] sm:$0xff]
  %v17 = vld [vmem:[%s0 + $0x10] sm:$0xff]
  %v18 = vld [vmem:[%s0 + $0x18] sm:$0xff]
  %v19 = vld [vmem:[%s0 + $0x20] sm:$0xff]
  %v20 = vld [vmem:[%s0 + $0x28] sm:$0xff]
  %v21 = vld [vmem:[%s0 + $0x30] sm:$0xff]
  %v22 = vld [vmem:[%s0 + $0x38] sm:$0xff]
  %v23 = vld [vmem:[%s0 + $0x40] sm:$0x1f]
  %v24 = vpack.c.bf16 %v16, %v15
  %v25 = vpack.c.bf16 %v18, %v17
  %v26 = vpack.c.bf16 %v20, %v19
  %v27 = vpack.c.bf16 %v22, %v21
  %v28 = vpack.c.bf16 %v23, %v23
  %v29 = vld [vmem:[%s1] sm:$0xff]
  %v30 = vld [vmem:[%s1 + $0x8] sm:$0xff]
  %v31 = vld [vmem:[%s1 + $0x10] sm:$0xff]
  %v32 = vld [vmem:[%s1 + $0x18] sm:$0xff]
  %v33 = vld [vmem:[%s1 + $0x20] sm:$0xff]
  %v34 = vld [vmem:[%s1 + $0x28] sm:$0xff]
  %v35 = vld [vmem:[%s1 + $0x30] sm:$0xff]
  %v36 = vld [vmem:[%s1 + $0x38] sm:$0xff]
  %v37 = vld [vmem:[%s1 + $0x40] sm:$0xff]
  %v38 = vld [vmem:[%s1 + $0x48] sm:$0xff]
  %v39 = vld [vmem:[%s1 + $0x50] sm:$0xff]
  %v40 = vld [vmem:[%s1 + $0x58] sm:$0xff]
  %v41 = vld [vmem:[%s1 + $0x60] sm:$0xff]
  %v42 = vld [vmem:[%s1 + $0x68] sm:$0xff]
  %v43 = vld [vmem:[%s1 + $0x70] sm:$0xff]
  %v44 = vld [vmem:[%s1 + $0x78] sm:$0xff]
  %v45 = vpack.c.bf16 %v30, %v29
  %v46 = vpack.c.bf16 %v32, %v31
  %v47 = vpack.c.bf16 %v34, %v33
  %v48 = vpack.c.bf16 %v36, %v35
  %v49 = vpack.c.bf16 %v38, %v37
  %v50 = vpack.c.bf16 %v40, %v39
  %v51 = vpack.c.bf16 %v42, %v41
  %v52 = vpack.c.bf16 %v44, %v43
  %v53 = vld [vmem:[%s2] sm:$0x1]
  %v55 = vlaneseq
  %v56 = vshrl.u32 %v55, 7
  %v57 = vsub.s32 0, %v56
  %v58 = vrot.slane %v53, %v57
  %60 = vmatprep.subr.bf16.mxu0 0
  %61 = vmatpush1.bf16.msra.mxu0 %v45
  %62 = vmatprep.subr.bf16.mxu0 0
  %63 = vmatpush1.bf16.msra.mxu0 %v46
  %64 = vmatprep.subr.bf16.mxu0 0
  %65 = vmatpush1.bf16.msra.mxu0 %v47
  %66 = vmatprep.subr.bf16.mxu0 0
  %67 = vmatpush1.bf16.msra.mxu0 %v48
  %68 = vmatprep.subr.bf16.mxu0 0
  %69 = vmatpush1.bf16.msra.mxu0 %v49
  %70 = vmatprep.subr.bf16.mxu0 0
  %71 = vmatpush1.bf16.msra.mxu0 %v50
  %72 = vmatprep.subr.bf16.mxu0 0
  %73 = vmatpush1.bf16.msra.mxu0 %v51
  %74 = vmatprep.subr.bf16.mxu0 0
  %75 = vmatpush1.bf16.msra.mxu0 %v52
  %76 = vmatprep.subr.bf16.mxu0 0
  %77 = vmatpush1.bf16.msra.mxu0 0
  %78 = vmatprep.subr.bf16.mxu0 0
  %79 = vmatpush1.bf16.msra.mxu0 0
  %80 = vmatprep.subr.bf16.mxu0 0
  %81 = vmatpush1.bf16.msra.mxu0 0
  %82 = vmatprep.subr.bf16.mxu0 0
  %83 = vmatpush1.bf16.msra.mxu0 0
  %84 = vmatprep.subr.bf16.mxu0 0
  %85 = vmatpush1.bf16.msra.mxu0 0
  %86 = vmatprep.subr.bf16.mxu0 0
  %87 = vmatpush1.bf16.msra.mxu0 0
  %88 = vmatprep.subr.bf16.mxu0 0
  %89 = vmatpush1.bf16.msra.mxu0 0
  %90 = vmatprep.subr.bf16.mxu0 0
  %91 = vmatpush1.bf16.msra.mxu0 0
  %92 = vmatprep.mubr.bf16.mxu0 0
  %93 = vmatmul.mubr.bf16.gmra.mrb[0].mxu0 %v24
  %v94 = vpop.f32.mrb[0].mxu0
  %v95 = vadd.f32 %v58, %v94
  %v96 = vpop.f32.mrb[0].mxu0
  %v97 = vpop.f32.mrb[0].mxu0
  %v98 = vadd.f32 %v58, %v97
  %v99 = vpop.f32.mrb[0].mxu0
  %100 = vmatprep.mubr.bf16.mxu0 0
  %101 = vmatmul.mubr.bf16.gmra.mrb[0].mxu0 %v25
  %v102 = vpop.f32.mrb[0].mxu0
  %v103 = vadd.f32 %v58, %v102
  %v104 = vpop.f32.mrb[0].mxu0
  %v105 = vpop.f32.mrb[0].mxu0
  %v106 = vadd.f32 %v58, %v105
  %v107 = vpop.f32.mrb[0].mxu0
  %108 = vmatprep.mubr.bf16.mxu0 0
  %109 = vmatmul.mubr.bf16.gmra.mrb[0].mxu0 %v26
  %v110 = vpop.f32.mrb[0].mxu0
  %v111 = vadd.f32 %v58, %v110
  %v112 = vpop.f32.mrb[0].mxu0
  %v113 = vpop.f32.mrb[0].mxu0
  %v114 = vadd.f32 %v58, %v113
  %v115 = vpop.f32.mrb[0].mxu0
  %116 = vmatprep.mubr.bf16.mxu0 0
  %117 = vmatmul.mubr.bf16.gmra.mrb[0].mxu0 %v27
  %v118 = vpop.f32.mrb[0].mxu0
  %v119 = vadd.f32 %v58, %v118
  %v120 = vpop.f32.mrb[0].mxu0
  %v121 = vpop.f32.mrb[0].mxu0
  %v122 = vadd.f32 %v58, %v121
  %v123 = vpop.f32.mrb[0].mxu0
  %124 = vmatprep.mubr.bf16.mxu0 0
  %125 = vmatmul.mubr.bf16.gmra.mrb[0].mxu0 %v28
  %v126 = vpop.f32.mrb[0].mxu0
  %v127 = vadd.f32 %v58, %v126
  %v128 = vpop.f32.mrb[0].mxu0
  %v129 = vpop.f32.mrb[0].mxu0
  %v130 = vpop.f32.mrb[0].mxu0
  %131 = vdwg.mxu0
  %132 = vst [vmem:[%s3] sm:$0xff] %v95
  %133 = vst [vmem:[%s3 + $0x8] sm:$0xff] %v98
  %134 = vst [vmem:[%s3 + $0x10] sm:$0xff] %v103
  %135 = vst [vmem:[%s3 + $0x18] sm:$0xff] %v106
  %136 = vst [vmem:[%s3 + $0x20] sm:$0xff] %v111
  %137 = vst [vmem:[%s3 + $0x28] sm:$0xff] %v114
  %138 = vst [vmem:[%s3 + $0x30] sm:$0xff] %v119
  %139 = vst [vmem:[%s3 + $0x38] sm:$0xff] %v122
  %140 = vst [vmem:[%s3 + $0x40] sm:$0x1f] %v127
  // Predicated region
  $region14: #{carl_forward.13} parent=0 // pred_check
    _
  $region15: #{carl_forward.13} parent=0 // pred_check_branch
    %142 = sbr.rel (0) target = $region17
  $region16: #{carl_forward.13} parent=0 // pred_region
    _
  $region17: #{carl_forward.13} parent=0 // pred_fallthru
    _
  // Predicated region
  $region18: #{carl_forward.13} parent=0 // pred_check
    _
  $region19: #{carl_forward.13} parent=0 // pred_check_branch
    %144 = sbr.rel (0) target = $region21
  $region20: #{carl_forward.13} parent=0 // pred_region
    _
  $region21: #{carl_forward.13} parent=0 // pred_fallthru
    _

// kernel: carl_forward.14
$region0: #{carl_forward.14}
  #allocation0 [shape = 'u32[]', space=smem, size = 0x4, offset = 0x4, fixed_abs, tag = 'smem constant byte address 0x4 - core index']
  #allocation1 [shape = 'u32[144,128]{1,0:T(1,128)}', space=vmem, size = 0x12000, scoped, tag = 'internal scratch']
  %s0 = inlined_call_operand.vmem [shape: f32[27,128], index: 0, kind: input, shape index: {}]
  %s1 = inlined_call_operand.vmem [shape: f32[128,128], index: 1, kind: input, shape index: {}]
  %s2 = inlined_call_operand.hbm [shape: f32[1,128], index: 2, kind: input, shape index: {}]
  %s3 = inlined_call_operand.vmem [shape: f32[128,128], index: 3, kind: input, shape index: {}]
  %s4 = inlined_call_operand.hbm [shape: f32[1,128], index: 4, kind: input, shape index: {}]
  %s5 = inlined_call_operand.vmem [shape: f32[27,128], index: 5, kind: output, shape index: {}]
  %s6 = sld [smem:[#allocation0]]
  $region38: #{carl_forward.14} parent=0
    _
  %s8 = ssub.s32 1, %s6
  %s9 = scalar_select 0, %s8, %s6
  $region1: #{carl_forward.14} parent=0
    #allocation2 [shape = 'u8[512]{0}', space=vmem, size = 0x400, scoped, tag = 'input window, operand 2, single buffered']
    #allocation3 [shape = 's32[1]{0}', space=sflag, size = 0x4, scoped, tag = 'scoped memory for carl_forward.14']
    #allocation4 [shape = 'u8[512]{0}', space=vmem, size = 0x400, scoped, tag = 'input window, operand 4, single buffered']
    #allocation5 [shape = 's32[1]{0}', space=sflag, size = 0x4, scoped, tag = 'scoped memory for carl_forward.14']
    %10 = vsyncpa [#allocation3], 0
    %11 = vsyncpa [#allocation5], 0
    // Predicated region
    $region2: #{carl_forward.14} parent=1 // pred_check
      _
    $region3: #{carl_forward.14} parent=1 // pred_check_branch
      %13 = sbr.rel (0) target = $region5
    $region4: #{carl_forward.14} parent=1 // pred_region
      _
    $region5: #{carl_forward.14} parent=1 // pred_fallthru
      _
    // Predicated region
    $region6: #{carl_forward.14} parent=1 // pred_check
      _
    $region7: #{carl_forward.14} parent=1 // pred_check_branch
      %15 = sbr.rel (0) target = $region9
    $region8: #{carl_forward.14} parent=1 // pred_region
      _
    $region9: #{carl_forward.14} parent=1 // pred_fallthru
      _
    // Predicated region
    $region10: #{carl_forward.14} parent=1 // pred_check
      _
    $region11: #{carl_forward.14} parent=1 // pred_check_branch
      %17 = sbr.rel (0) target = $region13
    $region12: #{carl_forward.14} parent=1 // pred_region
      %s19 = ssub.s32 16, 16
      %20 = vsyncadd [#allocation3], %s19
      %s22 = sshll.u32 [#allocation2], 4
      %s23 = int_to_ptr.vmem [resolvable:$true] %s22
      %25 = dma.hbm_to_vmem [thread:$0]  %s2, 16, %s23, [#allocation3]
    $region13: #{carl_forward.14} parent=1 // pred_fallthru
      _
    // Predicated region
    $region14: #{carl_forward.14} parent=1 // pred_check
      _
    $region15: #{carl_forward.14} parent=1 // pred_check_branch
      %27 = sbr.rel (0) target = $region17
    $region16: #{carl_forward.14} parent=1 // pred_region
      _
    $region17: #{carl_forward.14} parent=1 // pred_fallthru
      _
    // Predicated region
    $region18: #{carl_forward.14} parent=1 // pred_check
      _
    $region19: #{carl_forward.14} parent=1 // pred_check_branch
      %29 = sbr.rel (0) target = $region21
    $region20: #{carl_forward.14} parent=1 // pred_region
      %s31 = ssub.s32 16, 16
      %32 = vsyncadd [#allocation5], %s31
      %s34 = sshll.u32 [#allocation4], 4
      %s35 = int_to_ptr.vmem [resolvable:$true] %s34
      %37 = dma.hbm_to_vmem [thread:$0]  %s4, 16, %s35, [#allocation5]
    $region21: #{carl_forward.14} parent=1 // pred_fallthru
      _
    // Predicated region
    $region22: #{carl_forward.14} parent=1 // pred_check
      _
    $region23: #{carl_forward.14} parent=1 // pred_check_branch
      %39 = sbr.rel (0) target = $region25
    $region24: #{carl_forward.14} parent=1 // pred_region
      %40 = dma.done [#allocation3], 16
    $region25: #{carl_forward.14} parent=1 // pred_fallthru
      _
    // Predicated region
    $region26: #{carl_forward.14} parent=1 // pred_check
      _
    $region27: #{carl_forward.14} parent=1 // pred_check_branch
      %42 = sbr.rel (0) target = $region29
    $region28: #{carl_forward.14} parent=1 // pred_region
      %43 = dma.done [#allocation5], 16
    $region29: #{carl_forward.14} parent=1 // pred_fallthru
      _
    %v45 = vld [vmem:[%s0] sm:$0xff]
    %v46 = vld [vmem:[%s0 + $0x8] sm:$0xff]
    %v47 = vld [vmem:[%s0 + $0x10] sm:$0xff]
    %v48 = vld [vmem:[%s0 + $0x18] sm:$0x7]
    %v49 = vpack.c.bf16 %v46, %v45
    %v50 = vpack.c.bf16 %v48, %v47
    %v51 = vld [vmem:[%s1] sm:$0xff]
    %v52 = vld [vmem:[%s1 + $0x8] sm:$0xff]
    %v53 = vld [vmem:[%s1 + $0x10] sm:$0xff]
    %v54 = vld [vmem:[%s1 + $0x18] sm:$0xff]
    %v55 = vld [vmem:[%s1 + $0x20] sm:$0xff]
    %v56 = vld [vmem:[%s1 + $0x28] sm:$0xff]
    %v57 = vld [vmem:[%s1 + $0x30] sm:$0xff]
    %v58 = vld [vmem:[%s1 + $0x38] sm:$0xff]
    %v59 = vld [vmem:[%s1 + $0x40] sm:$0xff]
    %v60 = vld [vmem:[%s1 + $0x48] sm:$0xff]
    %v61 = vld [vmem:[%s1 + $0x50] sm:$0xff]
    %v62 = vld [vmem:[%s1 + $0x58] sm:$0xff]
    %v63 = vld [vmem:[%s1 + $0x60] sm:$0xff]
    %v64 = vld [vmem:[%s1 + $0x68] sm:$0xff]
    %v65 = vld [vmem:[%s1 + $0x70] sm:$0xff]
    %v66 = vld [vmem:[%s1 + $0x78] sm:$0xff]
    %v67 = vpack.c.bf16 %v52, %v51
    %v68 = vpack.c.bf16 %v54, %v53
    %v69 = vpack.c.bf16 %v56, %v55
    %v70 = vpack.c.bf16 %v58, %v57
    %v71 = vpack.c.bf16 %v60, %v59
    %v72 = vpack.c.bf16 %v62, %v61
    %v73 = vpack.c.bf16 %v64, %v63
    %v74 = vpack.c.bf16 %v66, %v65
    %v75 = vld [vmem:[#allocation2] sm:$0x1]
    %v77 = vlaneseq
    %v78 = vshrl.u32 %v77, 7
    %v79 = vsub.s32 0, %v78
    %v80 = vrot.slane %v75, %v79
    %82 = vmatprep.subr.bf16.mxu0 0
    %83 = vmatpush1.bf16.msra.mxu0 %v67
    %84 = vmatprep.subr.bf16.mxu0 0
    %85 = vmatpush1.bf16.msra.mxu0 %v68
    %86 = vmatprep.subr.bf16.mxu0 0
    %87 = vmatpush1.bf16.msra.mxu0 %v69
    %88 = vmatprep.subr.bf16.mxu0 0
    %89 = vmatpush1.bf16.msra.mxu0 %v70
    %90 = vmatprep.subr.bf16.mxu0 0
    %91 = vmatpush1.bf16.msra.mxu0 %v71
    %92 = vmatprep.subr.bf16.mxu0 0
    %93 = vmatpush1.bf16.msra.mxu0 %v72
    %94 = vmatprep.subr.bf16.mxu0 0
    %95 = vmatpush1.bf16.msra.mxu0 %v73
    %96 = vmatprep.subr.bf16.mxu0 0
    %97 = vmatpush1.bf16.msra.mxu0 %v74
    %98 = vmatprep.subr.bf16.mxu0 0
    %99 = vmatpush1.bf16.msra.mxu0 0
    %100 = vmatprep.subr.bf16.mxu0 0
    %101 = vmatpush1.bf16.msra.mxu0 0
    %102 = vmatprep.subr.bf16.mxu0 0
    %103 = vmatpush1.bf16.msra.mxu0 0
    %104 = vmatprep.subr.bf16.mxu0 0
    %105 = vmatpush1.bf16.msra.mxu0 0
    %106 = vmatprep.subr.bf16.mxu0 0
    %107 = vmatpush1.bf16.msra.mxu0 0
    %108 = vmatprep.subr.bf16.mxu0 0
    %109 = vmatpush1.bf16.msra.mxu0 0
    %110 = vmatprep.subr.bf16.mxu0 0
    %111 = vmatpush1.bf16.msra.mxu0 0
    %112 = vmatprep.subr.bf16.mxu0 0
    %113 = vmatpush1.bf16.msra.mxu0 0
    %114 = vmatprep.mubr.bf16.mxu0 0
    %115 = vmatmul.mubr.bf16.gmra.mrb[0].mxu0 %v49
    %v116 = vpop.f32.mrb[0].mxu0
    %v117 = vadd.f32 %v80, %v116
    %v118 = vpop.f32.mrb[0].mxu0
    %v119 = vpop.f32.mrb[0].mxu0
    %v120 = vadd.f32 %v80, %v119
    %v121 = vpop.f32.mrb[0].mxu0
    %122 = vmatprep.mubr.bf16.mxu0 0
    %123 = vmatmul.mubr.bf16.gmra.mrb[0].mxu0 %v50
    %v124 = vpop.f32.mrb[0].mxu0
    %v125 = vadd.f32 %v80, %v124
    %v126 = vpop.f32.mrb[0].mxu0
    %v127 = vpop.f32.mrb[0].mxu0
    %v128 = vadd.f32 %v80, %v127
    %v129 = vpop.f32.mrb[0].mxu0
    %130 = vdwg.mxu0
    %v131 = vmax.f32 %v117, 0.0
    %v132 = vmax.f32 %v120, 0.0
    %v133 = vmax.f32 %v125, 0.0
    %v134 = vmax.f32 %v128, 0.0
    %v135 = vpack.c.bf16 %v132, %v131
    %v136 = vpack.c.bf16 %v134, %v133
    %v137 = vld [vmem:[%s3] sm:$0xff]
    %v138 = vld [vmem:[%s3 + $0x8] sm:$0xff]
    %v139 = vld [vmem:[%s3 + $0x10] sm:$0xff]
    %v140 = vld [vmem:[%s3 + $0x18] sm:$0xff]
    %v141 = vld [vmem:[%s3 + $0x20] sm:$0xff]
    %v142 = vld [vmem:[%s3 + $0x28] sm:$0xff]
    %v143 = vld [vmem:[%s3 + $0x30] sm:$0xff]
    %v144 = vld [vmem:[%s3 + $0x38] sm:$0xff]
    %v145 = vld [vmem:[%s3 + $0x40] sm:$0xff]
    %v146 = vld [vmem:[%s3 + $0x48] sm:$0xff]
    %v147 = vld [vmem:[%s3 + $0x50] sm:$0xff]
    %v148 = vld [vmem:[%s3 + $0x58] sm:$0xff]
    %v149 = vld [vmem:[%s3 + $0x60] sm:$0xff]
    %v150 = vld [vmem:[%s3 + $0x68] sm:$0xff]
    %v151 = vld [vmem:[%s3 + $0x70] sm:$0xff]
    %v152 = vld [vmem:[%s3 + $0x78] sm:$0xff]
    %v153 = vpack.c.bf16 %v138, %v137
    %v154 = vpack.c.bf16 %v140, %v139
    %v155 = vpack.c.bf16 %v142, %v141
    %v156 = vpack.c.bf16 %v144, %v143
    %v157 = vpack.c.bf16 %v146, %v145
    %v158 = vpack.c.bf16 %v148, %v147
    %v159 = vpack.c.bf16 %v150, %v149
    %v160 = vpack.c.bf16 %v152, %v151
    %v161 = vld [vmem:[#allocation4] sm:$0x1]
    %v163 = vlaneseq
    %v164 = vshrl.u32 %v163, 7
    %v165 = vsub.s32 0, %v164
    %v166 = vrot.slane %v161, %v165
    %168 = vmatprep.subr.bf16.mxu0 0
    %169 = vmatpush1.bf16.msra.mxu0 %v153
    %170 = vmatprep.subr.bf16.mxu0 0
    %171 = vmatpush1.bf16.msra.mxu0 %v154
    %172 = vmatprep.subr.bf16.mxu0 0
    %173 = vmatpush1.bf16.msra.mxu0 %v155
    %174 = vmatprep.subr.bf16.mxu0 0
    %175 = vmatpush1.bf16.msra.mxu0 %v156
    %176 = vmatprep.subr.bf16.mxu0 0
    %177 = vmatpush1.bf16.msra.mxu0 %v157
    %178 = vmatprep.subr.bf16.mxu0 0
    %179 = vmatpush1.bf16.msra.mxu0 %v158
    %180 = vmatprep.subr.bf16.mxu0 0
    %181 = vmatpush1.bf16.msra.mxu0 %v159
    %182 = vmatprep.subr.bf16.mxu0 0
    %183 = vmatpush1.bf16.msra.mxu0 %v160
    %184 = vmatprep.subr.bf16.mxu0 0
    %185 = vmatpush1.bf16.msra.mxu0 0
    %186 = vmatprep.subr.bf16.mxu0 0
    %187 = vmatpush1.bf16.msra.mxu0 0
    %188 = vmatprep.subr.bf16.mxu0 0
    %189 = vmatpush1.bf16.msra.mxu0 0
    %190 = vmatprep.subr.bf16.mxu0 0
    %191 = vmatpush1.bf16.msra.mxu0 0
    %192 = vmatprep.subr.bf16.mxu0 0
    %193 = vmatpush1.bf16.msra.mxu0 0
    %194 = vmatprep.subr.bf16.mxu0 0
    %195 = vmatpush1.bf16.msra.mxu0 0
    %196 = vmatprep.subr.bf16.mxu0 0
    %197 = vmatpush1.bf16.msra.mxu0 0
    %198 = vmatprep.subr.bf16.mxu0 0
    %199 = vmatpush1.bf16.msra.mxu0 0
    %200 = vmatprep.mubr.bf16.mxu0 0
    %201 = vmatmul.mubr.bf16.gmra.mrb[0].mxu0 %v135
    %v202 = vpop.f32.mrb[0].mxu0
    %v203 = vadd.f32 %v166, %v202
    %v204 = vpop.f32.mrb[0].mxu0
    %v205 = vpop.f32.mrb[0].mxu0
    %v206 = vadd.f32 %v166, %v205
    %v207 = vpop.f32.mrb[0].mxu0
    %208 = vmatprep.mubr.bf16.mxu0 0
    %209 = vmatmul.mubr.bf16.gmra.mrb[0].mxu0 %v136
    %v210 = vpop.f32.mrb[0].mxu0
    %v211 = vadd.f32 %v166, %v210
    %v212 = vpop.f32.mrb[0].mxu0
    %v213 = vpop.f32.mrb[0].mxu0
    %v214 = vadd.f32 %v166, %v213
    %v215 = vpop.f32.mrb[0].mxu0
    %216 = vdwg.mxu0
    %v217 = vmax.f32 %v203, 0.0
    %v218 = vmax.f32 %v206, 0.0
    %v219 = vmax.f32 %v211, 0.0
    %v220 = vmax.f32 %v214, 0.0
    %221 = vst [vmem:[%s5] sm:$0xff] %v217
    %222 = vst [vmem:[%s5 + $0x8] sm:$0xff] %v218
    %223 = vst [vmem:[%s5 + $0x10] sm:$0xff] %v219
    %224 = vst [vmem:[%s5 + $0x18] sm:$0x7] %v220
    // Predicated region
    $region30: #{carl_forward.14} parent=1 // pred_check
      _
    $region31: #{carl_forward.14} parent=1 // pred_check_branch
      %226 = sbr.rel (0) target = $region33
    $region32: #{carl_forward.14} parent=1 // pred_region
      _
    $region33: #{carl_forward.14} parent=1 // pred_fallthru
      _
    // Predicated region
    $region34: #{carl_forward.14} parent=1 // pred_check
      _
    $region35: #{carl_forward.14} parent=1 // pred_check_branch
      %228 = sbr.rel (0) target = $region37
    $region36: #{carl_forward.14} parent=1 // pred_region
      _
    $region37: #{carl_forward.14} parent=1 // pred_fallthru
      _
    %229 = vsyncpa [#allocation3], 1
    %230 = vsyncpa [#allocation5], 1

// kernel: carl_forward.15
$region0: #{carl_forward.15}
  #allocation0 [shape = 'u32[]', space=smem, size = 0x4, offset = 0x4, fixed_abs, tag = 'smem constant byte address 0x4 - core index']
  #allocation1 [shape = 'u32[144,128]{1,0:T(1,128)}', space=vmem, size = 0x12000, scoped, tag = 'internal scratch']
  %s0 = inlined_call_operand.vmem [shape: f32[27,128], index: 0, kind: input, shape index: {}]
  %s1 = inlined_call_operand.vmem [shape: f32[128,128], index: 1, kind: input, shape index: {}]
  %s2 = inlined_call_operand.hbm [shape: f32[1,128], index: 2, kind: input, shape index: {}]
  %s3 = inlined_call_operand.hbm [shape: f32[128,128], index: 3, kind: input, shape index: {}]
  %s4 = inlined_call_operand.hbm [shape: f32[1,128], index: 4, kind: input, shape index: {}]
  %s5 = inlined_call_operand.vmem [shape: f32[27,128], index: 5, kind: output, shape index: {}]
  %s6 = sld [smem:[#allocation0]]
  $region42: #{carl_forward.15} parent=0
    _
  %s8 = ssub.s32 1, %s6
  %s9 = scalar_select 0, %s8, %s6
  $region1: #{carl_forward.15} parent=0
    #allocation2 [shape = 'u8[512]{0}', space=vmem, size = 0x400, scoped, tag = 'input window, operand 2, single buffered']
    #allocation3 [shape = 's32[1]{0}', space=sflag, size = 0x4, scoped, tag = 'scoped memory for carl_forward.15']
    #allocation4 [shape = 'u8[65536]{0}', space=vmem, size = 0x10000, scoped, tag = 'input window, operand 3, single buffered']
    #allocation5 [shape = 's32[1]{0}', space=sflag, size = 0x4, scoped, tag = 'scoped memory for carl_forward.15']
    #allocation6 [shape = 'u8[512]{0}', space=vmem, size = 0x400, scoped, tag = 'input window, operand 4, single buffered']
    %10 = vsyncpa [#allocation3], 0
    %11 = vsyncpa [#allocation5], 0
    // Predicated region
    $region2: #{carl_forward.15} parent=1 // pred_check
      _
    $region3: #{carl_forward.15} parent=1 // pred_check_branch
      %13 = sbr.rel (0) target = $region5
    $region4: #{carl_forward.15} parent=1 // pred_region
      _
    $region5: #{carl_forward.15} parent=1 // pred_fallthru
      _
    // Predicated region
    $region6: #{carl_forward.15} parent=1 // pred_check
      _
    $region7: #{carl_forward.15} parent=1 // pred_check_branch
      %15 = sbr.rel (0) target = $region9
    $region8: #{carl_forward.15} parent=1 // pred_region
      _
    $region9: #{carl_forward.15} parent=1 // pred_fallthru
      _
    // Predicated region
    $region10: #{carl_forward.15} parent=1 // pred_check
      _
    $region11: #{carl_forward.15} parent=1 // pred_check_branch
      %17 = sbr.rel (0) target = $region13
    $region12: #{carl_forward.15} parent=1 // pred_region
      %s19 = ssub.s32 16, 16
      %20 = vsyncadd [#allocation3], %s19
      %s22 = sshll.u32 [#allocation2], 4
      %s23 = int_to_ptr.vmem [resolvable:$true] %s22
      %25 = dma.hbm_to_vmem [thread:$0]  %s2, 16, %s23, [#allocation3]
    $region13: #{carl_forward.15} parent=1 // pred_fallthru
      _
    // Predicated region
    $region14: #{carl_forward.15} parent=1 // pred_check
      _
    $region15: #{carl_forward.15} parent=1 // pred_check_branch
      %27 = sbr.rel (0) target = $region17
    $region16: #{carl_forward.15} parent=1 // pred_region
      %s29 = ssub.s32 2048, 2048
      %30 = vsyncadd [#allocation5], %s29
      %s31 = sshll.u32 [#allocation4], 4
      %s32 = int_to_ptr.vmem [resolvable:$true] %s31
      %37 = dma.hbm_to_vmem [thread:$0]  %s3, 2048, %s32, [#allocation5], 128, 128, 8
    $region17: #{carl_forward.15} parent=1 // pred_fallthru
      _
    // Predicated region
    $region18: #{carl_forward.15} parent=1 // pred_check
      _
    $region19: #{carl_forward.15} parent=1 // pred_check_branch
      %39 = sbr.rel (0) target = $region21
    $region20: #{carl_forward.15} parent=1 // pred_region
      %s41 = ssub.s32 16, 16
      %42 = vsyncadd [#allocation5], %s41
      %s44 = sshll.u32 [#allocation6], 4
      %s45 = int_to_ptr.vmem [resolvable:$true] %s44
      %47 = dma.hbm_to_vmem [thread:$0]  %s4, 16, %s45, [#allocation5]
    $region21: #{carl_forward.15} parent=1 // pred_fallthru
      _
    // Predicated region
    $region22: #{carl_forward.15} parent=1 // pred_check
      _
    $region23: #{carl_forward.15} parent=1 // pred_check_branch
      %49 = sbr.rel (0) target = $region25
    $region24: #{carl_forward.15} parent=1 // pred_region
      %50 = dma.done [#allocation3], 16
    $region25: #{carl_forward.15} parent=1 // pred_fallthru
      _
    // Predicated region
    $region26: #{carl_forward.15} parent=1 // pred_check
      _
    $region27: #{carl_forward.15} parent=1 // pred_check_branch
      %52 = sbr.rel (0) target = $region29
    $region28: #{carl_forward.15} parent=1 // pred_region
      %53 = dma.done [#allocation5], 2048
    $region29: #{carl_forward.15} parent=1 // pred_fallthru
      _
    // Predicated region
    $region30: #{carl_forward.15} parent=1 // pred_check
      _
    $region31: #{carl_forward.15} parent=1 // pred_check_branch
      %55 = sbr.rel (0) target = $region33
    $region32: #{carl_forward.15} parent=1 // pred_region
      %56 = dma.done [#allocation5], 16
    $region33: #{carl_forward.15} parent=1 // pred_fallthru
      _
    %v58 = vld [vmem:[%s0] sm:$0xff]
    %v59 = vld [vmem:[%s0 + $0x8] sm:$0xff]
    %v60 = vld [vmem:[%s0 + $0x10] sm:$0xff]
    %v61 = vld [vmem:[%s0 + $0x18] sm:$0x7]
    %v62 = vpack.c.bf16 %v59, %v58
    %v63 = vpack.c.bf16 %v61, %v60
    %v64 = vld [vmem:[%s1] sm:$0xff]
    %v65 = vld [vmem:[%s1 + $0x8] sm:$0xff]
    %v66 = vld [vmem:[%s1 + $0x10] sm:$0xff]
    %v67 = vld [vmem:[%s1 + $0x18] sm:$0xff]
    %v68 = vld [vmem:[%s1 + $0x20] sm:$0xff]
    %v69 = vld [vmem:[%s1 + $0x28] sm:$0xff]
    %v70 = vld [vmem:[%s1 + $0x30] sm:$0xff]
    %v71 = vld [vmem:[%s1 + $0x38] sm:$0xff]
    %v72 = vld [vmem:[%s1 + $0x40] sm:$0xff]
    %v73 = vld [vmem:[%s1 + $0x48] sm:$0xff]
    %v74 = vld [vmem:[%s1 + $0x50] sm:$0xff]
    %v75 = vld [vmem:[%s1 + $0x58] sm:$0xff]
    %v76 = vld [vmem:[%s1 + $0x60] sm:$0xff]
    %v77 = vld [vmem:[%s1 + $0x68] sm:$0xff]
    %v78 = vld [vmem:[%s1 + $0x70] sm:$0xff]
    %v79 = vld [vmem:[%s1 + $0x78] sm:$0xff]
    %v80 = vpack.c.bf16 %v65, %v64
    %v81 = vpack.c.bf16 %v67, %v66
    %v82 = vpack.c.bf16 %v69, %v68
    %v83 = vpack.c.bf16 %v71, %v70
    %v84 = vpack.c.bf16 %v73, %v72
    %v85 = vpack.c.bf16 %v75, %v74
    %v86 = vpack.c.bf16 %v77, %v76
    %v87 = vpack.c.bf16 %v79, %v78
    %v88 = vld [vmem:[#allocation2] sm:$0x1]
    %v90 = vlaneseq
    %v91 = vshrl.u32 %v90, 7
    %v92 = vsub.s32 0, %v91
    %v93 = vrot.slane %v88, %v92
    %95 = vmatprep.subr.bf16.mxu0 0
    %96 = vmatpush1.bf16.msra.mxu0 %v80
    %97 = vmatprep.subr.bf16.mxu0 0
    %98 = vmatpush1.bf16.msra.mxu0 %v81
    %99 = vmatprep.subr.bf16.mxu0 0
    %100 = vmatpush1.bf16.msra.mxu0 %v82
    %101 = vmatprep.subr.bf16.mxu0 0
    %102 = vmatpush1.bf16.msra.mxu0 %v83
    %103 = vmatprep.subr.bf16.mxu0 0
    %104 = vmatpush1.bf16.msra.mxu0 %v84
    %105 = vmatprep.subr.bf16.mxu0 0
    %106 = vmatpush1.bf16.msra.mxu0 %v85
    %107 = vmatprep.subr.bf16.mxu0 0
    %108 = vmatpush1.bf16.msra.mxu0 %v86
    %109 = vmatprep.subr.bf16.mxu0 0
    %110 = vmatpush1.bf16.msra.mxu0 %v87
    %111 = vmatprep.subr.bf16.mxu0 0
    %112 = vmatpush1.bf16.msra.mxu0 0
    %113 = vmatprep.subr.bf16.mxu0 0
    %114 = vmatpush1.bf16.msra.mxu0 0
    %115 = vmatprep.subr.bf16.mxu0 0
    %116 = vmatpush1.bf16.msra.mxu0 0
    %117 = vmatprep.subr.bf16.mxu0 0
    %118 = vmatpush1.bf16.msra.mxu0 0
    %119 = vmatprep.subr.bf16.mxu0 0
    %120 = vmatpush1.bf16.msra.mxu0 0
    %121 = vmatprep.subr.bf16.mxu0 0
    %122 = vmatpush1.bf16.msra.mxu0 0
    %123 = vmatprep.subr.bf16.mxu0 0
    %124 = vmatpush1.bf16.msra.mxu0 0
    %125 = vmatprep.subr.bf16.mxu0 0
    %126 = vmatpush1.bf16.msra.mxu0 0
    %127 = vmatprep.mubr.bf16.mxu0 0
    %128 = vmatmul.mubr.bf16.gmra.mrb[0].mxu0 %v62
    %v129 = vpop.f32.mrb[0].mxu0
    %v130 = vadd.f32 %v93, %v129
    %v131 = vpop.f32.mrb[0].mxu0
    %v132 = vpop.f32.mrb[0].mxu0
    %v133 = vadd.f32 %v93, %v132
    %v134 = vpop.f32.mrb[0].mxu0
    %135 = vmatprep.mubr.bf16.mxu0 0
    %136 = vmatmul.mubr.bf16.gmra.mrb[0].mxu0 %v63
    %v137 = vpop.f32.mrb[0].mxu0
    %v138 = vadd.f32 %v93, %v137
    %v139 = vpop.f32.mrb[0].mxu0
    %v140 = vpop.f32.mrb[0].mxu0
    %v141 = vadd.f32 %v93, %v140
    %v142 = vpop.f32.mrb[0].mxu0
    %143 = vdwg.mxu0
    %v144 = vmax.f32 %v130, 0.0
    %v145 = vmax.f32 %v133, 0.0
    %v146 = vmax.f32 %v138, 0.0
    %v147 = vmax.f32 %v141, 0.0
    %v148 = vpack.c.bf16 %v145, %v144
    %v149 = vpack.c.bf16 %v147, %v146
    %v150 = vld [vmem:[#allocation4] sm:$0xff]
    %v151 = vld [vmem:[#allocation4 + $0x8] sm:$0xff]
    %v152 = vld [vmem:[#allocation4 + $0x10] sm:$0xff]
    %v153 = vld [vmem:[#allocation4 + $0x18] sm:$0xff]
    %v154 = vld [vmem:[#allocation4 + $0x20] sm:$0xff]
    %v155 = vld [vmem:[#allocation4 + $0x28] sm:$0xff]
    %v156 = vld [vmem:[#allocation4 + $0x30] sm:$0xff]
    %v157 = vld [vmem:[#allocation4 + $0x38] sm:$0xff]
    %v158 = vld [vmem:[#allocation4 + $0x40] sm:$0xff]
    %v159 = vld [vmem:[#allocation4 + $0x48] sm:$0xff]
    %v160 = vld [vmem:[#allocation4 + $0x50] sm:$0xff]
    %v161 = vld [vmem:[#allocation4 + $0x58] sm:$0xff]
    %v162 = vld [vmem:[#allocation4 + $0x60] sm:$0xff]
    %v163 = vld [vmem:[#allocation4 + $0x68] sm:$0xff]
    %v164 = vld [vmem:[#allocation4 + $0x70] sm:$0xff]
    %v165 = vld [vmem:[#allocation4 + $0x78] sm:$0xff]
    %v166 = vpack.c.bf16 %v151, %v150
    %v167 = vpack.c.bf16 %v153, %v152
    %v168 = vpack.c.bf16 %v155, %v154
    %v169 = vpack.c.bf16 %v157, %v156
    %v170 = vpack.c.bf16 %v159, %v158
    %v171 = vpack.c.bf16 %v161, %v160
    %v172 = vpack.c.bf16 %v163, %v162
    %v173 = vpack.c.bf16 %v165, %v164
    %v174 = vld [vmem:[#allocation6] sm:$0x1]
    %v176 = vlaneseq
    %v177 = vshrl.u32 %v176, 7
    %v178 = vsub.s32 0, %v177
    %v179 = vrot.slane %v174, %v178
    %181 = vmatprep.subr.bf16.mxu0 0
    %182 = vmatpush1.bf16.msra.mxu0 %v166
    %183 = vmatprep.subr.bf16.mxu0 0
    %184 = vmatpush1.bf16.msra.mxu0 %v167
    %185 = vmatprep.subr.bf16.mxu0 0
    %186 = vmatpush1.bf16.msra.mxu0 %v168
    %187 = vmatprep.subr.bf16.mxu0 0
    %188 = vmatpush1.bf16.msra.mxu0 %v169
    %189 = vmatprep.subr.bf16.mxu0 0
    %190 = vmatpush1.bf16.msra.mxu0 %v170
    %191 = vmatprep.subr.bf16.mxu0 0
    %192 = vmatpush1.bf16.msra.mxu0 %v171
    %193 = vmatprep.subr.bf16.mxu0 0
    %194 = vmatpush1.bf16.msra.mxu0 %v172
    %195 = vmatprep.subr.bf16.mxu0 0
    %196 = vmatpush1.bf16.msra.mxu0 %v173
    %197 = vmatprep.subr.bf16.mxu0 0
    %198 = vmatpush1.bf16.msra.mxu0 0
    %199 = vmatprep.subr.bf16.mxu0 0
    %200 = vmatpush1.bf16.msra.mxu0 0
    %201 = vmatprep.subr.bf16.mxu0 0
    %202 = vmatpush1.bf16.msra.mxu0 0
    %203 = vmatprep.subr.bf16.mxu0 0
    %204 = vmatpush1.bf16.msra.mxu0 0
    %205 = vmatprep.subr.bf16.mxu0 0
    %206 = vmatpush1.bf16.msra.mxu0 0
    %207 = vmatprep.subr.bf16.mxu0 0
    %208 = vmatpush1.bf16.msra.mxu0 0
    %209 = vmatprep.subr.bf16.mxu0 0
    %210 = vmatpush1.bf16.msra.mxu0 0
    %211 = vmatprep.subr.bf16.mxu0 0
    %212 = vmatpush1.bf16.msra.mxu0 0
    %213 = vmatprep.mubr.bf16.mxu0 0
    %214 = vmatmul.mubr.bf16.gmra.mrb[0].mxu0 %v148
    %v215 = vpop.f32.mrb[0].mxu0
    %v216 = vadd.f32 %v179, %v215
    %v217 = vpop.f32.mrb[0].mxu0
    %v218 = vpop.f32.mrb[0].mxu0
    %v219 = vadd.f32 %v179, %v218
    %v220 = vpop.f32.mrb[0].mxu0
    %221 = vmatprep.mubr.bf16.mxu0 0
    %222 = vmatmul.mubr.bf16.gmra.mrb[0].mxu0 %v149
    %v223 = vpop.f32.mrb[0].mxu0
    %v224 = vadd.f32 %v179, %v223
    %v225 = vpop.f32.mrb[0].mxu0
    %v226 = vpop.f32.mrb[0].mxu0
    %v227 = vadd.f32 %v179, %v226
    %v228 = vpop.f32.mrb[0].mxu0
    %229 = vdwg.mxu0
    %v230 = vmax.f32 %v216, 0.0
    %v231 = vmax.f32 %v219, 0.0
    %v232 = vmax.f32 %v224, 0.0
    %v233 = vmax.f32 %v227, 0.0
    %234 = vst [vmem:[%s5] sm:$0xff] %v230
    %235 = vst [vmem:[%s5 + $0x8] sm:$0xff] %v231
    %236 = vst [vmem:[%s5 + $0x10] sm:$0xff] %v232
    %237 = vst [vmem:[%s5 + $0x18] sm:$0x7] %v233
    // Predicated region
    $region34: #{carl_forward.15} parent=1 // pred_check
      _
    $region35: #{carl_forward.15} parent=1 // pred_check_branch
      %239 = sbr.rel (0) target = $region37
    $region36: #{carl_forward.15} parent=1 // pred_region
      _
    $region37: #{carl_forward.15} parent=1 // pred_fallthru
      _
    // Predicated region
    $region38: #{carl_forward.15} parent=1 // pred_check
      _
    $region39: #{carl_forward.15} parent=1 // pred_check_branch
      %241 = sbr.rel (0) target = $region41
    $region40: #{carl_forward.15} parent=1 // pred_region
      _
    $region41: #{carl_forward.15} parent=1 // pred_fallthru
      _
    %242 = vsyncpa [#allocation3], 1
    %243 = vsyncpa [#allocation5], 1

// kernel: carl_forward.16
$region0: #{carl_forward.16}
  #allocation0 [shape = 'u32[]', space=smem, size = 0x4, offset = 0x4, fixed_abs, tag = 'smem constant byte address 0x4 - core index']
  #allocation1 [shape = 'u32[144,128]{1,0:T(1,128)}', space=vmem, size = 0x12000, scoped, tag = 'internal scratch']
  %s0 = inlined_call_operand.vmem [shape: f32[27,128], index: 0, kind: input, shape index: {}]
  %s1 = inlined_call_operand.hbm [shape: f32[128,128], index: 1, kind: input, shape index: {}]
  %s2 = inlined_call_operand.hbm [shape: f32[1,128], index: 2, kind: input, shape index: {}]
  %s3 = inlined_call_operand.hbm [shape: f32[128,128], index: 3, kind: input, shape index: {}]
  %s4 = inlined_call_operand.hbm [shape: f32[1,128], index: 4, kind: input, shape index: {}]
  %s5 = inlined_call_operand.vmem [shape: f32[27,128], index: 5, kind: output, shape index: {}]
  %s6 = sld [smem:[#allocation0]]
  $region46: #{carl_forward.16} parent=0
    _
  %s8 = ssub.s32 1, %s6
  %s9 = scalar_select 0, %s8, %s6
  $region1: #{carl_forward.16} parent=0
    #allocation2 [shape = 'u8[65536]{0}', space=vmem, size = 0x10000, scoped, tag = 'input window, operand 1, single buffered']
    #allocation3 [shape = 's32[1]{0}', space=sflag, size = 0x4, scoped, tag = 'scoped memory for carl_forward.16']
    #allocation4 [shape = 'u8[512]{0}', space=vmem, size = 0x400, scoped, tag = 'input window, operand 2, single buffered']
    #allocation5 [shape = 's32[1]{0}', space=sflag, size = 0x4, scoped, tag = 'scoped memory for carl_forward.16']
    #allocation6 [shape = 'u8[65536]{0}', space=vmem, size = 0x10000, scoped, tag = 'input window, operand 3, single buffered']
    #allocation7 [shape = 'u8[512]{0}', space=vmem, size = 0x400, scoped, tag = 'input window, operand 4, single buffered']
    #allocation8 [shape = 's32[1]{0}', space=sflag, size = 0x4, scoped, tag = 'scoped memory for carl_forward.16']
    %10 = vsyncpa [#allocation3], 0
    %11 = vsyncpa [#allocation5], 0
    %12 = vsyncpa [#allocation8], 0
    // Predicated region
    $region2: #{carl_forward.16} parent=1 // pred_check
      _
    $region3: #{carl_forward.16} parent=1 // pred_check_branch
      %14 = sbr.rel (0) target = $region5
    $region4: #{carl_forward.16} parent=1 // pred_region
      _
    $region5: #{carl_forward.16} parent=1 // pred_fallthru
      _
    // Predicated region
    $region6: #{carl_forward.16} parent=1 // pred_check
      _
    $region7: #{carl_forward.16} parent=1 // pred_check_branch
      %16 = sbr.rel (0) target = $region9
    $region8: #{carl_forward.16} parent=1 // pred_region
      %s18 = ssub.s32 2048, 2048
      %19 = vsyncadd [#allocation3], %s18
      %s20 = sshll.u32 [#allocation2], 4
      %s21 = int_to_ptr.vmem [resolvable:$true] %s20
      %26 = dma.hbm_to_vmem [thread:$0]  %s1, 2048, %s21, [#allocation3], 128, 128, 8
    $region9: #{carl_forward.16} parent=1 // pred_fallthru
      _
    // Predicated region
    $region10: #{carl_forward.16} parent=1 // pred_check
      _
    $region11: #{carl_forward.16} parent=1 // pred_check_branch
      %28 = sbr.rel (0) target = $region13
    $region12: #{carl_forward.16} parent=1 // pred_region
      %s30 = ssub.s32 16, 16
      %31 = vsyncadd [#allocation5], %s30
      %s33 = sshll.u32 [#allocation4], 4
      %s34 = int_to_ptr.vmem [resolvable:$true] %s33
      %36 = dma.hbm_to_vmem [thread:$0]  %s2, 16, %s34, [#allocation5]
    $region13: #{carl_forward.16} parent=1 // pred_fallthru
      _
    // Predicated region
    $region14: #{carl_forward.16} parent=1 // pred_check
      _
    $region15: #{carl_forward.16} parent=1 // pred_check_branch
      %38 = sbr.rel (0) target = $region17
    $region16: #{carl_forward.16} parent=1 // pred_region
      %s40 = ssub.s32 2048, 2048
      %41 = vsyncadd [#allocation5], %s40
      %s42 = sshll.u32 [#allocation6], 4
      %s43 = int_to_ptr.vmem [resolvable:$true] %s42
      %48 = dma.hbm_to_vmem [thread:$0]  %s3, 2048, %s43, [#allocation5], 128, 128, 8
    $region17: #{carl_forward.16} parent=1 // pred_fallthru
      _
    // Predicated region
    $region18: #{carl_forward.16} parent=1 // pred_check
      _
    $region19: #{carl_forward.16} parent=1 // pred_check_branch
      %50 = sbr.rel (0) target = $region21
    $region20: #{carl_forward.16} parent=1 // pred_region
      %s52 = ssub.s32 16, 16
      %53 = vsyncadd [#allocation8], %s52
      %s55 = sshll.u32 [#allocation7], 4
      %s56 = int_to_ptr.vmem [resolvable:$true] %s55
      %58 = dma.hbm_to_vmem [thread:$0]  %s4, 16, %s56, [#allocation8]
    $region21: #{carl_forward.16} parent=1 // pred_fallthru
      _
    // Predicated region
    $region22: #{carl_forward.16} parent=1 // pred_check
      _
    $region23: #{carl_forward.16} parent=1 // pred_check_branch
      %60 = sbr.rel (0) target = $region25
    $region24: #{carl_forward.16} parent=1 // pred_region
      %61 = dma.done [#allocation3], 2048
    $region25: #{carl_forward.16} parent=1 // pred_fallthru
      _
    // Predicated region
    $region26: #{carl_forward.16} parent=1 // pred_check
      _
    $region27: #{carl_forward.16} parent=1 // pred_check_branch
      %63 = sbr.rel (0) target = $region29
    $region28: #{carl_forward.16} parent=1 // pred_region
      %64 = dma.done [#allocation5], 16
    $region29: #{carl_forward.16} parent=1 // pred_fallthru
      _
    // Predicated region
    $region30: #{carl_forward.16} parent=1 // pred_check
      _
    $region31: #{carl_forward.16} parent=1 // pred_check_branch
      %66 = sbr.rel (0) target = $region33
    $region32: #{carl_forward.16} parent=1 // pred_region
      %67 = dma.done [#allocation5], 2048
    $region33: #{carl_forward.16} parent=1 // pred_fallthru
      _
    // Predicated region
    $region34: #{carl_forward.16} parent=1 // pred_check
      _
    $region35: #{carl_forward.16} parent=1 // pred_check_branch
      %69 = sbr.rel (0) target = $region37
    $region36: #{carl_forward.16} parent=1 // pred_region
      %70 = dma.done [#allocation8], 16
    $region37: #{carl_forward.16} parent=1 // pred_fallthru
      _
    %v72 = vld [vmem:[%s0] sm:$0xff]
    %v73 = vld [vmem:[%s0 + $0x8] sm:$0xff]
    %v74 = vld [vmem:[%s0 + $0x10] sm:$0xff]
    %v75 = vld [vmem:[%s0 + $0x18] sm:$0x7]
    %v76 = vpack.c.bf16 %v73, %v72
    %v77 = vpack.c.bf16 %v75, %v74
    %v78 = vld [vmem:[#allocation2] sm:$0xff]
    %v79 = vld [vmem:[#allocation2 + $0x8] sm:$0xff]
    %v80 = vld [vmem:[#allocation2 + $0x10] sm:$0xff]
    %v81 = vld [vmem:[#allocation2 + $0x18] sm:$0xff]
    %v82 = vld [vmem:[#allocation2 + $0x20] sm:$0xff]
    %v83 = vld [vmem:[#allocation2 + $0x28] sm:$0xff]
    %v84 = vld [vmem:[#allocation2 + $0x30] sm:$0xff]
    %v85 = vld [vmem:[#allocation2 + $0x38] sm:$0xff]
    %v86 = vld [vmem:[#allocation2 + $0x40] sm:$0xff]
    %v87 = vld [vmem:[#allocation2 + $0x48] sm:$0xff]
    %v88 = vld [vmem:[#allocation2 + $0x50] sm:$0xff]
    %v89 = vld [vmem:[#allocation2 + $0x58] sm:$0xff]
    %v90 = vld [vmem:[#allocation2 + $0x60] sm:$0xff]
    %v91 = vld [vmem:[#allocation2 + $0x68] sm:$0xff]
    %v92 = vld [vmem:[#allocation2 + $0x70] sm:$0xff]
    %v93 = vld [vmem:[#allocation2 + $0x78] sm:$0xff]
    %v94 = vpack.c.bf16 %v79, %v78
    %v95 = vpack.c.bf16 %v81, %v80
    %v96 = vpack.c.bf16 %v83, %v82
    %v97 = vpack.c.bf16 %v85, %v84
    %v98 = vpack.c.bf16 %v87, %v86
    %v99 = vpack.c.bf16 %v89, %v88
    %v100 = vpack.c.bf16 %v91, %v90
    %v101 = vpack.c.bf16 %v93, %v92
    %v102 = vld [vmem:[#allocation4] sm:$0x1]
    %v104 = vlaneseq
    %v105 = vshrl.u32 %v104, 7
    %v106 = vsub.s32 0, %v105
    %v107 = vrot.slane %v102, %v106
    %109 = vmatprep.subr.bf16.mxu0 0
    %110 = vmatpush1.bf16.msra.mxu0 %v94
    %111 = vmatprep.subr.bf16.mxu0 0
    %112 = vmatpush1.bf16.msra.mxu0 %v95
    %113 = vmatprep.subr.bf16.mxu0 0
    %114 = vmatpush1.bf16.msra.mxu0 %v96
    %115 = vmatprep.subr.bf16.mxu0 0
    %116 = vmatpush1.bf16.msra.mxu0 %v97
    %117 = vmatprep.subr.bf16.mxu0 0
    %118 = vmatpush1.bf16.msra.mxu0 %v98
    %119 = vmatprep.subr.bf16.mxu0 0
    %120 = vmatpush1.bf16.msra.mxu0 %v99
    %121 = vmatprep.subr.bf16.mxu0 0
    %122 = vmatpush1.bf16.msra.mxu0 %v100
    %123 = vmatprep.subr.bf16.mxu0 0
    %124 = vmatpush1.bf16.msra.mxu0 %v101
    %125 = vmatprep.subr.bf16.mxu0 0
    %126 = vmatpush1.bf16.msra.mxu0 0
    %127 = vmatprep.subr.bf16.mxu0 0
    %128 = vmatpush1.bf16.msra.mxu0 0
    %129 = vmatprep.subr.bf16.mxu0 0
    %130 = vmatpush1.bf16.msra.mxu0 0
    %131 = vmatprep.subr.bf16.mxu0 0
    %132 = vmatpush1.bf16.msra.mxu0 0
    %133 = vmatprep.subr.bf16.mxu0 0
    %134 = vmatpush1.bf16.msra.mxu0 0
    %135 = vmatprep.subr.bf16.mxu0 0
    %136 = vmatpush1.bf16.msra.mxu0 0
    %137 = vmatprep.subr.bf16.mxu0 0
    %138 = vmatpush1.bf16.msra.mxu0 0
    %139 = vmatprep.subr.bf16.mxu0 0
    %140 = vmatpush1.bf16.msra.mxu0 0
    %141 = vmatprep.mubr.bf16.mxu0 0
    %142 = vmatmul.mubr.bf16.gmra.mrb[0].mxu0 %v76
    %v143 = vpop.f32.mrb[0].mxu0
    %v144 = vadd.f32 %v107, %v143
    %v145 = vpop.f32.mrb[0].mxu0
    %v146 = vpop.f32.mrb[0].mxu0
    %v147 = vadd.f32 %v107, %v146
    %v148 = vpop.f32.mrb[0].mxu0
    %149 = vmatprep.mubr.bf16.mxu0 0
    %150 = vmatmul.mubr.bf16.gmra.mrb[0].mxu0 %v77
    %v151 = vpop.f32.mrb[0].mxu0
    %v152 = vadd.f32 %v107, %v151
    %v153 = vpop.f32.mrb[0].mxu0
    %v154 = vpop.f32.mrb[0].mxu0
    %v155 = vadd.f32 %v107, %v154
    %v156 = vpop.f32.mrb[0].mxu0
    %157 = vdwg.mxu0
    %v158 = vmax.f32 %v144, 0.0
    %v159 = vmax.f32 %v147, 0.0
    %v160 = vmax.f32 %v152, 0.0
    %v161 = vmax.f32 %v155, 0.0
    %v162 = vpack.c.bf16 %v159, %v158
    %v163 = vpack.c.bf16 %v161, %v160
    %v164 = vld [vmem:[#allocation6] sm:$0xff]
    %v165 = vld [vmem:[#allocation6 + $0x8] sm:$0xff]
    %v166 = vld [vmem:[#allocation6 + $0x10] sm:$0xff]
    %v167 = vld [vmem:[#allocation6 + $0x18] sm:$0xff]
    %v168 = vld [vmem:[#allocation6 + $0x20] sm:$0xff]
    %v169 = vld [vmem:[#allocation6 + $0x28] sm:$0xff]
    %v170 = vld [vmem:[#allocation6 + $0x30] sm:$0xff]
    %v171 = vld [vmem:[#allocation6 + $0x38] sm:$0xff]
    %v172 = vld [vmem:[#allocation6 + $0x40] sm:$0xff]
    %v173 = vld [vmem:[#allocation6 + $0x48] sm:$0xff]
    %v174 = vld [vmem:[#allocation6 + $0x50] sm:$0xff]
    %v175 = vld [vmem:[#allocation6 + $0x58] sm:$0xff]
    %v176 = vld [vmem:[#allocation6 + $0x60] sm:$0xff]
    %v177 = vld [vmem:[#allocation6 + $0x68] sm:$0xff]
    %v178 = vld [vmem:[#allocation6 + $0x70] sm:$0xff]
    %v179 = vld [vmem:[#allocation6 + $0x78] sm:$0xff]
    %v180 = vpack.c.bf16 %v165, %v164
    %v181 = vpack.c.bf16 %v167, %v166
    %v182 = vpack.c.bf16 %v169, %v168
    %v183 = vpack.c.bf16 %v171, %v170
    %v184 = vpack.c.bf16 %v173, %v172
    %v185 = vpack.c.bf16 %v175, %v174
    %v186 = vpack.c.bf16 %v177, %v176
    %v187 = vpack.c.bf16 %v179, %v178
    %v188 = vld [vmem:[#allocation7] sm:$0x1]
    %v190 = vlaneseq
    %v191 = vshrl.u32 %v190, 7
    %v192 = vsub.s32 0, %v191
    %v193 = vrot.slane %v188, %v192
    %195 = vmatprep.subr.bf16.mxu0 0
    %196 = vmatpush1.bf16.msra.mxu0 %v180
    %197 = vmatprep.subr.bf16.mxu0 0
    %198 = vmatpush1.bf16.msra.mxu0 %v181
    %199 = vmatprep.subr.bf16.mxu0 0
    %200 = vmatpush1.bf16.msra.mxu0 %v182
    %201 = vmatprep.subr.bf16.mxu0 0
    %202 = vmatpush1.bf16.msra.mxu0 %v183
    %203 = vmatprep.subr.bf16.mxu0 0
    %204 = vmatpush1.bf16.msra.mxu0 %v184
    %205 = vmatprep.subr.bf16.mxu0 0
    %206 = vmatpush1.bf16.msra.mxu0 %v185
    %207 = vmatprep.subr.bf16.mxu0 0
    %208 = vmatpush1.bf16.msra.mxu0 %v186
    %209 = vmatprep.subr.bf16.mxu0 0
    %210 = vmatpush1.bf16.msra.mxu0 %v187
    %211 = vmatprep.subr.bf16.mxu0 0
    %212 = vmatpush1.bf16.msra.mxu0 0
    %213 = vmatprep.subr.bf16.mxu0 0
    %214 = vmatpush1.bf16.msra.mxu0 0
    %215 = vmatprep.subr.bf16.mxu0 0
    %216 = vmatpush1.bf16.msra.mxu0 0
    %217 = vmatprep.subr.bf16.mxu0 0
    %218 = vmatpush1.bf16.msra.mxu0 0
    %219 = vmatprep.subr.bf16.mxu0 0
    %220 = vmatpush1.bf16.msra.mxu0 0
    %221 = vmatprep.subr.bf16.mxu0 0
    %222 = vmatpush1.bf16.msra.mxu0 0
    %223 = vmatprep.subr.bf16.mxu0 0
    %224 = vmatpush1.bf16.msra.mxu0 0
    %225 = vmatprep.subr.bf16.mxu0 0
    %226 = vmatpush1.bf16.msra.mxu0 0
    %227 = vmatprep.mubr.bf16.mxu0 0
    %228 = vmatmul.mubr.bf16.gmra.mrb[0].mxu0 %v162
    %v229 = vpop.f32.mrb[0].mxu0
    %v230 = vadd.f32 %v193, %v229
    %v231 = vpop.f32.mrb[0].mxu0
    %v232 = vpop.f32.mrb[0].mxu0
    %v233 = vadd.f32 %v193, %v232
    %v234 = vpop.f32.mrb[0].mxu0
    %235 = vmatprep.mubr.bf16.mxu0 0
    %236 = vmatmul.mubr.bf16.gmra.mrb[0].mxu0 %v163
    %v237 = vpop.f32.mrb[0].mxu0
    %v238 = vadd.f32 %v193, %v237
    %v239 = vpop.f32.mrb[0].mxu0
    %v240 = vpop.f32.mrb[0].mxu0
    %v241 = vadd.f32 %v193, %v240
    %v242 = vpop.f32.mrb[0].mxu0
    %243 = vdwg.mxu0
    %v244 = vmax.f32 %v230, 0.0
    %v245 = vmax.f32 %v233, 0.0
    %v246 = vmax.f32 %v238, 0.0
    %v247 = vmax.f32 %v241, 0.0
    %248 = vst [vmem:[%s5] sm:$0xff] %v244
    %249 = vst [vmem:[%s5 + $0x8] sm:$0xff] %v245
    %250 = vst [vmem:[%s5 + $0x10] sm:$0xff] %v246
    %251 = vst [vmem:[%s5 + $0x18] sm:$0x7] %v247
    // Predicated region
    $region38: #{carl_forward.16} parent=1 // pred_check
      _
    $region39: #{carl_forward.16} parent=1 // pred_check_branch
      %253 = sbr.rel (0) target = $region41
    $region40: #{carl_forward.16} parent=1 // pred_region
      _
    $region41: #{carl_forward.16} parent=1 // pred_fallthru
      _
    // Predicated region
    $region42: #{carl_forward.16} parent=1 // pred_check
      _
    $region43: #{carl_forward.16} parent=1 // pred_check_branch
      %255 = sbr.rel (0) target = $region45
    $region44: #{carl_forward.16} parent=1 // pred_region
      _
    $region45: #{carl_forward.16} parent=1 // pred_fallthru
      _
    %256 = vsyncpa [#allocation3], 1
    %257 = vsyncpa [#allocation5], 1
    %258 = vsyncpa [#allocation8], 1

// kernel: carl_forward.17
$region0: #{carl_forward.17}
  #allocation0 [shape = 'u32[]', space=smem, size = 0x4, offset = 0x4, fixed_abs, tag = 'smem constant byte address 0x4 - core index']
  #allocation1 [shape = 'u32[144,128]{1,0:T(1,128)}', space=vmem, size = 0x12000, scoped, tag = 'internal scratch']
  %s0 = inlined_call_operand.vmem [shape: f32[10,128], index: 0, kind: input, shape index: {}]
  %s1 = inlined_call_operand.vmem [shape: f32[8,128], index: 1, kind: input, shape index: {}]
  %s2 = inlined_call_operand.vmem [shape: f32[10,8], index: 2, kind: input, shape index: {}]
  %s3 = inlined_call_operand.vmem [shape: f32[8,10], index: 3, kind: input, shape index: {}]
  %s4 = inlined_call_operand.vmem [shape: f32[10,128], index: 4, kind: output, shape index: {0}]
  %s5 = inlined_call_operand.vmem [shape: f32[8,128], index: 5, kind: output, shape index: {1}]
  %6 = xla_tuple %s4, %s5
  %s7 = sld [smem:[#allocation0]]
  $region34: #{carl_forward.17} parent=0
    _
  %s9 = ssub.s32 1, %s7
  %s10 = scalar_select 0, %s9, %s7
  // Predicated region
  $region2: #{carl_forward.17} parent=0 // pred_check
    _
  $region3: #{carl_forward.17} parent=0 // pred_check_branch
    %12 = sbr.rel (0) target = $region5
  $region4: #{carl_forward.17} parent=0 // pred_region
    _
  $region5: #{carl_forward.17} parent=0 // pred_fallthru
    _
  // Predicated region
  $region6: #{carl_forward.17} parent=0 // pred_check
    _
  $region7: #{carl_forward.17} parent=0 // pred_check_branch
    %14 = sbr.rel (0) target = $region9
  $region8: #{carl_forward.17} parent=0 // pred_region
    _
  $region9: #{carl_forward.17} parent=0 // pred_fallthru
    _
  // Predicated region
  $region10: #{carl_forward.17} parent=0 // pred_check
    _
  $region11: #{carl_forward.17} parent=0 // pred_check_branch
    %16 = sbr.rel (0) target = $region13
  $region12: #{carl_forward.17} parent=0 // pred_region
    _
  $region13: #{carl_forward.17} parent=0 // pred_fallthru
    _
  // Predicated region
  $region14: #{carl_forward.17} parent=0 // pred_check
    _
  $region15: #{carl_forward.17} parent=0 // pred_check_branch
    %18 = sbr.rel (0) target = $region17
  $region16: #{carl_forward.17} parent=0 // pred_region
    _
  $region17: #{carl_forward.17} parent=0 // pred_fallthru
    _
  %v20 = vld [vmem:[%s0] sm:$0xff]
  %v21 = vld [vmem:[%s0 + $0x8] sm:$0x3]
  %v22 = vpack.c.bf16 %v21, %v20
  %v23 = vld [vmem:[%s1] sm:$0xff]
  %v24 = vpack.c.bf16 %v23, %v23
  %25 = vmatprep.subr.bf16.mxu0 0
  %26 = vmatpush1.bf16.xpose.msra.mxu0 %v24
  %27 = vmatprep.subr.bf16.mxu0 0
  %28 = vmatpush1.bf16.xpose.msra.mxu0 0
  %29 = vmatprep.subr.bf16.mxu0 0
  %30 = vmatpush1.bf16.xpose.msra.mxu0 0
  %31 = vmatprep.subr.bf16.mxu0 0
  %32 = vmatpush1.bf16.xpose.msra.mxu0 0
  %33 = vmatprep.subr.bf16.mxu0 0
  %34 = vmatpush1.bf16.xpose.msra.mxu0 0
  %35 = vmatprep.subr.bf16.mxu0 0
  %36 = vmatpush1.bf16.xpose.msra.mxu0 0
  %37 = vmatprep.subr.bf16.mxu0 0
  %38 = vmatpush1.bf16.xpose.msra.mxu0 0
  %39 = vmatprep.subr.bf16.mxu0 0
  %40 = vmatpush1.bf16.xpose.msra.mxu0 0
  %41 = vmatprep.subr.bf16.mxu0 0
  %42 = vmatpush1.bf16.xpose.msra.mxu0 0
  %43 = vmatprep.subr.bf16.mxu0 0
  %44 = vmatpush1.bf16.xpose.msra.mxu0 0
  %45 = vmatprep.subr.bf16.mxu0 0
  %46 = vmatpush1.bf16.xpose.msra.mxu0 0
  %47 = vmatprep.subr.bf16.mxu0 0
  %48 = vmatpush1.bf16.xpose.msra.mxu0 0
  %49 = vmatprep.subr.bf16.mxu0 0
  %50 = vmatpush1.bf16.xpose.msra.mxu0 0
  %51 = vmatprep.subr.bf16.mxu0 0
  %52 = vmatpush1.bf16.xpose.msra.mxu0 0
  %53 = vmatprep.subr.bf16.mxu0 0
  %54 = vmatpush1.bf16.xpose.msra.mxu0 0
  %55 = vmatprep.subr.bf16.mxu0 0
  %56 = vmatpush1.bf16.xpose.msra.mxu0 0
  %57 = vmatprep.mubr.bf16.mxu0 0
  %58 = vmatmul.mubr.bf16.gmra.mrb[0].mxu0 %v22
  %v59 = vpop.f32.mrb[0].mxu0
  %v60 = vadd.f32 0.0, %v59
  %v61 = vpop.f32.mrb[0].mxu0
  %v62 = vpop.f32.mrb[0].mxu0
  %v63 = vadd.f32 0.0, %v62
  %v64 = vpop.f32.mrb[0].mxu0
  %65 = vdwg.mxu0
  %66 = vmatprep.subr.bf16.mxu0 0
  %67 = vmatpush1.bf16.xpose.msra.mxu0 %v22
  %68 = vmatprep.subr.bf16.mxu0 0
  %69 = vmatpush1.bf16.xpose.msra.mxu0 0
  %70 = vmatprep.subr.bf16.mxu0 0
  %71 = vmatpush1.bf16.xpose.msra.mxu0 0
  %72 = vmatprep.subr.bf16.mxu0 0
  %73 = vmatpush1.bf16.xpose.msra.mxu0 0
  %74 = vmatprep.subr.bf16.mxu0 0
  %75 = vmatpush1.bf16.xpose.msra.mxu0 0
  %76 = vmatprep.subr.bf16.mxu0 0
  %77 = vmatpush1.bf16.xpose.msra.mxu0 0
  %78 = vmatprep.subr.bf16.mxu0 0
  %79 = vmatpush1.bf16.xpose.msra.mxu0 0
  %80 = vmatprep.subr.bf16.mxu0 0
  %81 = vmatpush1.bf16.xpose.msra.mxu0 0
  %82 = vmatprep.subr.bf16.mxu0 0
  %83 = vmatpush1.bf16.xpose.msra.mxu0 0
  %84 = vmatprep.subr.bf16.mxu0 0
  %85 = vmatpush1.bf16.xpose.msra.mxu0 0
  %86 = vmatprep.subr.bf16.mxu0 0
  %87 = vmatpush1.bf16.xpose.msra.mxu0 0
  %88 = vmatprep.subr.bf16.mxu0 0
  %89 = vmatpush1.bf16.xpose.msra.mxu0 0
  %90 = vmatprep.subr.bf16.mxu0 0
  %91 = vmatpush1.bf16.xpose.msra.mxu0 0
  %92 = vmatprep.subr.bf16.mxu0 0
  %93 = vmatpush1.bf16.xpose.msra.mxu0 0
  %94 = vmatprep.subr.bf16.mxu0 0
  %95 = vmatpush1.bf16.xpose.msra.mxu0 0
  %96 = vmatprep.subr.bf16.mxu0 0
  %97 = vmatpush1.bf16.xpose.msra.mxu0 0
  %98 = vmatprep.mubr.bf16.mxu0 0
  %99 = vmatmul.mubr.bf16.gmra.mrb[0].mxu0 %v24
  %v100 = vpop.f32.mrb[0].mxu0
  %v101 = vadd.f32 0.0, %v100
  %v102 = vpop.f32.mrb[0].mxu0
  %v103 = vpop.f32.mrb[0].mxu0
  %v104 = vpop.f32.mrb[0].mxu0
  %105 = vdwg.mxu0
  %v106 = vld [vmem:[%s2] sm:$0xff]
  %v107 = vld [vmem:[%s2 + $0x8] sm:$0x3]
  %v108 = vmul.f32 %v60, %v106
  %v109 = vmul.f32 %v63, %v107
  %v110 = vpack.c.bf16 %v109, %v108
  %v111 = vld [vmem:[%s3] sm:$0xff]
  %v112 = vmul.f32 %v101, %v111
  %v113 = vpack.c.bf16 %v112, %v112
  %vm114 = vcmask 64512
  %v116 = vsel %vm114, %v110, 0
  %vm118 = vcmask 1043456
  %v120 = vsel %vm118, %v24, 0
  %122 = vmatprep.subr.bf16.mxu0 0
  %123 = vmatpush1.bf16.msra.mxu0 %v120
  %124 = vmatprep.subr.bf16.mxu0 0
  %125 = vmatpush1.bf16.msra.mxu0 0
  %126 = vmatprep.subr.bf16.mxu0 0
  %127 = vmatpush1.bf16.msra.mxu0 0
  %128 = vmatprep.subr.bf16.mxu0 0
  %129 = vmatpush1.bf16.msra.mxu0 0
  %130 = vmatprep.subr.bf16.mxu0 0
  %131 = vmatpush1.bf16.msra.mxu0 0
  %132 = vmatprep.subr.bf16.mxu0 0
  %133 = vmatpush1.bf16.msra.mxu0 0
  %134 = vmatprep.subr.bf16.mxu0 0
  %135 = vmatpush1.bf16.msra.mxu0 0
  %136 = vmatprep.subr.bf16.mxu0 0
  %137 = vmatpush1.bf16.msra.mxu0 0
  %138 = vmatprep.subr.bf16.mxu0 0
  %139 = vmatpush1.bf16.msra.mxu0 0
  %140 = vmatprep.subr.bf16.mxu0 0
  %141 = vmatpush1.bf16.msra.mxu0 0
  %142 = vmatprep.subr.bf16.mxu0 0
  %143 = vmatpush1.bf16.msra.mxu0 0
  %144 = vmatprep.subr.bf16.mxu0 0
  %145 = vmatpush1.bf16.msra.mxu0 0
  %146 = vmatprep.subr.bf16.mxu0 0
  %147 = vmatpush1.bf16.msra.mxu0 0
  %148 = vmatprep.subr.bf16.mxu0 0
  %149 = vmatpush1.bf16.msra.mxu0 0
  %150 = vmatprep.subr.bf16.mxu0 0
  %151 = vmatpush1.bf16.msra.mxu0 0
  %152 = vmatprep.subr.bf16.mxu0 0
  %153 = vmatpush1.bf16.msra.mxu0 0
  %154 = vmatprep.mubr.bf16.mxu0 0
  %155 = vmatmul.mubr.bf16.gmra.mrb[0].mxu0 %v116
  %v156 = vpop.f32.mrb[0].mxu0
  %v157 = vadd.f32 0.0, %v156
  %v158 = vpop.f32.mrb[0].mxu0
  %v159 = vpop.f32.mrb[0].mxu0
  %v160 = vadd.f32 0.0, %v159
  %v161 = vpop.f32.mrb[0].mxu0
  %162 = vdwg.mxu0
  %163 = vst [vmem:[%s4] sm:$0xff] %v157
  %164 = vst [vmem:[%s4 + $0x8] sm:$0x3] %v160
  %vm165 = vcmask 80896
  %v167 = vsel %vm165, %v113, 0
  %vm169 = vcmask 1044480
  %v171 = vsel %vm169, %v22, 0
  %173 = vmatprep.subr.bf16.mxu0 0
  %174 = vmatpush1.bf16.msra.mxu0 %v171
  %175 = vmatprep.subr.bf16.mxu0 0
  %176 = vmatpush1.bf16.msra.mxu0 0
  %177 = vmatprep.subr.bf16.mxu0 0
  %178 = vmatpush1.bf16.msra.mxu0 0
  %179 = vmatprep.subr.bf16.mxu0 0
  %180 = vmatpush1.bf16.msra.mxu0 0
  %181 = vmatprep.subr.bf16.mxu0 0
  %182 = vmatpush1.bf16.msra.mxu0 0
  %183 = vmatprep.subr.bf16.mxu0 0
  %184 = vmatpush1.bf16.msra.mxu0 0
  %185 = vmatprep.subr.bf16.mxu0 0
  %186 = vmatpush1.bf16.msra.mxu0 0
  %187 = vmatprep.subr.bf16.mxu0 0
  %188 = vmatpush1.bf16.msra.mxu0 0
  %189 = vmatprep.subr.bf16.mxu0 0
  %190 = vmatpush1.bf16.msra.mxu0 0
  %191 = vmatprep.subr.bf16.mxu0 0
  %192 = vmatpush1.bf16.msra.mxu0 0
  %193 = vmatprep.subr.bf16.mxu0 0
  %194 = vmatpush1.bf16.msra.mxu0 0
  %195 = vmatprep.subr.bf16.mxu0 0
  %196 = vmatpush1.bf16.msra.mxu0 0
  %197 = vmatprep.subr.bf16.mxu0 0
  %198 = vmatpush1.bf16.msra.mxu0 0
  %199 = vmatprep.subr.bf16.mxu0 0
  %200 = vmatpush1.bf16.msra.mxu0 0
  %201 = vmatprep.subr.bf16.mxu0 0
  %202 = vmatpush1.bf16.msra.mxu0 0
  %203 = vmatprep.subr.bf16.mxu0 0
  %204 = vmatpush1.bf16.msra.mxu0 0
  %205 = vmatprep.mubr.bf16.mxu0 0
  %206 = vmatmul.mubr.bf16.gmra.mrb[0].mxu0 %v167
  %v207 = vpop.f32.mrb[0].mxu0
  %v208 = vadd.f32 0.0, %v207
  %v209 = vpop.f32.mrb[0].mxu0
  %v210 = vpop.f32.mrb[0].mxu0
  %v211 = vpop.f32.mrb[0].mxu0
  %212 = vdwg.mxu0
  %213 = vst [vmem:[%s5] sm:$0xff] %v208
  // Predicated region
  $region18: #{carl_forward.17} parent=0 // pred_check
    _
  $region19: #{carl_forward.17} parent=0 // pred_check_branch
    %215 = sbr.rel (0) target = $region21
  $region20: #{carl_forward.17} parent=0 // pred_region
    _
  $region21: #{carl_forward.17} parent=0 // pred_fallthru
    _
  // Predicated region
  $region22: #{carl_forward.17} parent=0 // pred_check
    _
  $region23: #{carl_forward.17} parent=0 // pred_check_branch
    %217 = sbr.rel (0) target = $region25
  $region24: #{carl_forward.17} parent=0 // pred_region
    _
  $region25: #{carl_forward.17} parent=0 // pred_fallthru
    _
  // Predicated region
  $region26: #{carl_forward.17} parent=0 // pred_check
    _
  $region27: #{carl_forward.17} parent=0 // pred_check_branch
    %219 = sbr.rel (0) target = $region29
  $region28: #{carl_forward.17} parent=0 // pred_region
    _
  $region29: #{carl_forward.17} parent=0 // pred_fallthru
    _
  // Predicated region
  $region30: #{carl_forward.17} parent=0 // pred_check
    _
  $region31: #{carl_forward.17} parent=0 // pred_check_branch
    %221 = sbr.rel (0) target = $region33
  $region32: #{carl_forward.17} parent=0 // pred_region
    _
  $region33: #{carl_forward.17} parent=0 // pred_fallthru
    _

// kernel: carl_forward.18
$region0: #{carl_forward.18}
  #allocation0 [shape = 'u32[]', space=smem, size = 0x4, offset = 0x4, fixed_abs, tag = 'smem constant byte address 0x4 - core index']
  #allocation1 [shape = 'u32[144,128]{1,0:T(1,128)}', space=vmem, size = 0x12000, scoped, tag = 'internal scratch']
  %s0 = inlined_call_operand.vmem [shape: f32[10,128], index: 0, kind: input, shape index: {}]
  %s1 = inlined_call_operand.vmem [shape: f32[128,128], index: 1, kind: input, shape index: {}]
  %s2 = inlined_call_operand.hbm [shape: f32[1,128], index: 2, kind: input, shape index: {}]
  %s3 = inlined_call_operand.vmem [shape: f32[128,128], index: 3, kind: input, shape index: {}]
  %s4 = inlined_call_operand.hbm [shape: f32[1,128], index: 4, kind: input, shape index: {}]
  %s5 = inlined_call_operand.vmem [shape: f32[10,128], index: 5, kind: output, shape index: {}]
  %s6 = sld [smem:[#allocation0]]
  $region38: #{carl_forward.18} parent=0
    _
  %s8 = ssub.s32 1, %s6
  %s9 = scalar_select 0, %s8, %s6
  $region1: #{carl_forward.18} parent=0
    #allocation2 [shape = 'u8[512]{0}', space=vmem, size = 0x400, scoped, tag = 'input window, operand 2, single buffered']
    #allocation3 [shape = 's32[1]{0}', space=sflag, size = 0x4, scoped, tag = 'scoped memory for carl_forward.18']
    #allocation4 [shape = 'u8[512]{0}', space=vmem, size = 0x400, scoped, tag = 'input window, operand 4, single buffered']
    #allocation5 [shape = 's32[1]{0}', space=sflag, size = 0x4, scoped, tag = 'scoped memory for carl_forward.18']
    %10 = vsyncpa [#allocation3], 0
    %11 = vsyncpa [#allocation5], 0
    // Predicated region
    $region2: #{carl_forward.18} parent=1 // pred_check
      _
    $region3: #{carl_forward.18} parent=1 // pred_check_branch
      %13 = sbr.rel (0) target = $region5
    $region4: #{carl_forward.18} parent=1 // pred_region
      _
    $region5: #{carl_forward.18} parent=1 // pred_fallthru
      _
    // Predicated region
    $region6: #{carl_forward.18} parent=1 // pred_check
      _
    $region7: #{carl_forward.18} parent=1 // pred_check_branch
      %15 = sbr.rel (0) target = $region9
    $region8: #{carl_forward.18} parent=1 // pred_region
      _
    $region9: #{carl_forward.18} parent=1 // pred_fallthru
      _
    // Predicated region
    $region10: #{carl_forward.18} parent=1 // pred_check
      _
    $region11: #{carl_forward.18} parent=1 // pred_check_branch
      %17 = sbr.rel (0) target = $region13
    $region12: #{carl_forward.18} parent=1 // pred_region
      %s19 = ssub.s32 16, 16
      %20 = vsyncadd [#allocation3], %s19
      %s22 = sshll.u32 [#allocation2], 4
      %s23 = int_to_ptr.vmem [resolvable:$true] %s22
      %25 = dma.hbm_to_vmem [thread:$0]  %s2, 16, %s23, [#allocation3]
    $region13: #{carl_forward.18} parent=1 // pred_fallthru
      _
    // Predicated region
    $region14: #{carl_forward.18} parent=1 // pred_check
      _
    $region15: #{carl_forward.18} parent=1 // pred_check_branch
      %27 = sbr.rel (0) target = $region17
    $region16: #{carl_forward.18} parent=1 // pred_region
      _
    $region17: #{carl_forward.18} parent=1 // pred_fallthru
      _
    // Predicated region
    $region18: #{carl_forward.18} parent=1 // pred_check
      _
    $region19: #{carl_forward.18} parent=1 // pred_check_branch
      %29 = sbr.rel (0) target = $region21
    $region20: #{carl_forward.18} parent=1 // pred_region
      %s31 = ssub.s32 16, 16
      %32 = vsyncadd [#allocation5], %s31
      %s34 = sshll.u32 [#allocation4], 4
      %s35 = int_to_ptr.vmem [resolvable:$true] %s34
      %37 = dma.hbm_to_vmem [thread:$0]  %s4, 16, %s35, [#allocation5]
    $region21: #{carl_forward.18} parent=1 // pred_fallthru
      _
    // Predicated region
    $region22: #{carl_forward.18} parent=1 // pred_check
      _
    $region23: #{carl_forward.18} parent=1 // pred_check_branch
      %39 = sbr.rel (0) target = $region25
    $region24: #{carl_forward.18} parent=1 // pred_region
      %40 = dma.done [#allocation3], 16
    $region25: #{carl_forward.18} parent=1 // pred_fallthru
      _
    // Predicated region
    $region26: #{carl_forward.18} parent=1 // pred_check
      _
    $region27: #{carl_forward.18} parent=1 // pred_check_branch
      %42 = sbr.rel (0) target = $region29
    $region28: #{carl_forward.18} parent=1 // pred_region
      %43 = dma.done [#allocation5], 16
    $region29: #{carl_forward.18} parent=1 // pred_fallthru
      _
    %v45 = vld [vmem:[%s0] sm:$0xff]
    %v46 = vld [vmem:[%s0 + $0x8] sm:$0x3]
    %v47 = vpack.c.bf16 %v46, %v45
    %v48 = vld [vmem:[%s1] sm:$0xff]
    %v49 = vld [vmem:[%s1 + $0x8] sm:$0xff]
    %v50 = vld [vmem:[%s1 + $0x10] sm:$0xff]
    %v51 = vld [vmem:[%s1 + $0x18] sm:$0xff]
    %v52 = vld [vmem:[%s1 + $0x20] sm:$0xff]
    %v53 = vld [vmem:[%s1 + $0x28] sm:$0xff]
    %v54 = vld [vmem:[%s1 + $0x30] sm:$0xff]
    %v55 = vld [vmem:[%s1 + $0x38] sm:$0xff]
    %v56 = vld [vmem:[%s1 + $0x40] sm:$0xff]
    %v57 = vld [vmem:[%s1 + $0x48] sm:$0xff]
    %v58 = vld [vmem:[%s1 + $0x50] sm:$0xff]
    %v59 = vld [vmem:[%s1 + $0x58] sm:$0xff]
    %v60 = vld [vmem:[%s1 + $0x60] sm:$0xff]
    %v61 = vld [vmem:[%s1 + $0x68] sm:$0xff]
    %v62 = vld [vmem:[%s1 + $0x70] sm:$0xff]
    %v63 = vld [vmem:[%s1 + $0x78] sm:$0xff]
    %v64 = vpack.c.bf16 %v49, %v48
    %v65 = vpack.c.bf16 %v51, %v50
    %v66 = vpack.c.bf16 %v53, %v52
    %v67 = vpack.c.bf16 %v55, %v54
    %v68 = vpack.c.bf16 %v57, %v56
    %v69 = vpack.c.bf16 %v59, %v58
    %v70 = vpack.c.bf16 %v61, %v60
    %v71 = vpack.c.bf16 %v63, %v62
    %v72 = vld [vmem:[#allocation2] sm:$0x1]
    %v74 = vlaneseq
    %v75 = vshrl.u32 %v74, 7
    %v76 = vsub.s32 0, %v75
    %v77 = vrot.slane %v72, %v76
    %79 = vmatprep.subr.bf16.mxu0 0
    %80 = vmatpush1.bf16.msra.mxu0 %v64
    %81 = vmatprep.subr.bf16.mxu0 0
    %82 = vmatpush1.bf16.msra.mxu0 %v65
    %83 = vmatprep.subr.bf16.mxu0 0
    %84 = vmatpush1.bf16.msra.mxu0 %v66
    %85 = vmatprep.subr.bf16.mxu0 0
    %86 = vmatpush1.bf16.msra.mxu0 %v67
    %87 = vmatprep.subr.bf16.mxu0 0
    %88 = vmatpush1.bf16.msra.mxu0 %v68
    %89 = vmatprep.subr.bf16.mxu0 0
    %90 = vmatpush1.bf16.msra.mxu0 %v69
    %91 = vmatprep.subr.bf16.mxu0 0
    %92 = vmatpush1.bf16.msra.mxu0 %v70
    %93 = vmatprep.subr.bf16.mxu0 0
    %94 = vmatpush1.bf16.msra.mxu0 %v71
    %95 = vmatprep.subr.bf16.mxu0 0
    %96 = vmatpush1.bf16.msra.mxu0 0
    %97 = vmatprep.subr.bf16.mxu0 0
    %98 = vmatpush1.bf16.msra.mxu0 0
    %99 = vmatprep.subr.bf16.mxu0 0
    %100 = vmatpush1.bf16.msra.mxu0 0
    %101 = vmatprep.subr.bf16.mxu0 0
    %102 = vmatpush1.bf16.msra.mxu0 0
    %103 = vmatprep.subr.bf16.mxu0 0
    %104 = vmatpush1.bf16.msra.mxu0 0
    %105 = vmatprep.subr.bf16.mxu0 0
    %106 = vmatpush1.bf16.msra.mxu0 0
    %107 = vmatprep.subr.bf16.mxu0 0
    %108 = vmatpush1.bf16.msra.mxu0 0
    %109 = vmatprep.subr.bf16.mxu0 0
    %110 = vmatpush1.bf16.msra.mxu0 0
    %111 = vmatprep.mubr.bf16.mxu0 0
    %112 = vmatmul.mubr.bf16.gmra.mrb[0].mxu0 %v47
    %v113 = vpop.f32.mrb[0].mxu0
    %v114 = vadd.f32 %v77, %v113
    %v115 = vpop.f32.mrb[0].mxu0
    %v116 = vpop.f32.mrb[0].mxu0
    %v117 = vadd.f32 %v77, %v116
    %v118 = vpop.f32.mrb[0].mxu0
    %119 = vdwg.mxu0
    %vm120 = vcmask 1041408
    %v121 = vsel %vm120, %v117, 0.0
    %v122 = vadd.f32 %v114, %v121
    %v123 = vrot.slane %v122, 4
    %v124 = vadd.f32 %v122, %v123
    %v125 = vrot.slane %v124, 2
    %v126 = vadd.f32 %v124, %v125
    %v127 = vrot.slane %v126, 1
    %v128 = vadd.f32 %v126, %v127
    %v129 = vrcp.pop 10.0
    %v130 = vmul.f32 %v128, %v129
    %v131 = vsub.f32 %v114, %v130
    %v132 = vsub.f32 %v117, %v130
    %v133 = vmul.f32 %v131, %v131
    %v134 = vmul.f32 %v132, %v132
    %v135 = vsel %vm120, %v134, 0.0
    %v136 = vadd.f32 %v133, %v135
    %v137 = vrot.slane %v136, 4
    %v138 = vadd.f32 %v136, %v137
    %v139 = vrot.slane %v138, 2
    %v140 = vadd.f32 %v138, %v139
    %v141 = vrot.slane %v140, 1
    %v142 = vadd.f32 %v140, %v141
    %v143 = vmul.f32 %v142, %v129
    %v144 = vadd.f32 %v143, 1e-05
    %v145 = vrsqrt.pop %v144
    %v146 = vmul.f32 %v131, %v145
    %v147 = vmul.f32 %v132, %v145
    %v148 = vmax.f32 %v146, 0.0
    %v149 = vmax.f32 %v147, 0.0
    %v150 = vpack.c.bf16 %v149, %v148
    %v151 = vld [vmem:[%s3] sm:$0xff]
    %v152 = vld [vmem:[%s3 + $0x8] sm:$0xff]
    %v153 = vld [vmem:[%s3 + $0x10] sm:$0xff]
    %v154 = vld [vmem:[%s3 + $0x18] sm:$0xff]
    %v155 = vld [vmem:[%s3 + $0x20] sm:$0xff]
    %v156 = vld [vmem:[%s3 + $0x28] sm:$0xff]
    %v157 = vld [vmem:[%s3 + $0x30] sm:$0xff]
    %v158 = vld [vmem:[%s3 + $0x38] sm:$0xff]
    %v159 = vld [vmem:[%s3 + $0x40] sm:$0xff]
    %v160 = vld [vmem:[%s3 + $0x48] sm:$0xff]
    %v161 = vld [vmem:[%s3 + $0x50] sm:$0xff]
    %v162 = vld [vmem:[%s3 + $0x58] sm:$0xff]
    %v163 = vld [vmem:[%s3 + $0x60] sm:$0xff]
    %v164 = vld [vmem:[%s3 + $0x68] sm:$0xff]
    %v165 = vld [vmem:[%s3 + $0x70] sm:$0xff]
    %v166 = vld [vmem:[%s3 + $0x78] sm:$0xff]
    %v167 = vpack.c.bf16 %v152, %v151
    %v168 = vpack.c.bf16 %v154, %v153
    %v169 = vpack.c.bf16 %v156, %v155
    %v170 = vpack.c.bf16 %v158, %v157
    %v171 = vpack.c.bf16 %v160, %v159
    %v172 = vpack.c.bf16 %v162, %v161
    %v173 = vpack.c.bf16 %v164, %v163
    %v174 = vpack.c.bf16 %v166, %v165
    %v175 = vld [vmem:[#allocation4] sm:$0x1]
    %v177 = vlaneseq
    %v178 = vshrl.u32 %v177, 7
    %v179 = vsub.s32 0, %v178
    %v180 = vrot.slane %v175, %v179
    %182 = vmatprep.subr.bf16.mxu0 0
    %183 = vmatpush1.bf16.msra.mxu0 %v167
    %184 = vmatprep.subr.bf16.mxu0 0
    %185 = vmatpush1.bf16.msra.mxu0 %v168
    %186 = vmatprep.subr.bf16.mxu0 0
    %187 = vmatpush1.bf16.msra.mxu0 %v169
    %188 = vmatprep.subr.bf16.mxu0 0
    %189 = vmatpush1.bf16.msra.mxu0 %v170
    %190 = vmatprep.subr.bf16.mxu0 0
    %191 = vmatpush1.bf16.msra.mxu0 %v171
    %192 = vmatprep.subr.bf16.mxu0 0
    %193 = vmatpush1.bf16.msra.mxu0 %v172
    %194 = vmatprep.subr.bf16.mxu0 0
    %195 = vmatpush1.bf16.msra.mxu0 %v173
    %196 = vmatprep.subr.bf16.mxu0 0
    %197 = vmatpush1.bf16.msra.mxu0 %v174
    %198 = vmatprep.subr.bf16.mxu0 0
    %199 = vmatpush1.bf16.msra.mxu0 0
    %200 = vmatprep.subr.bf16.mxu0 0
    %201 = vmatpush1.bf16.msra.mxu0 0
    %202 = vmatprep.subr.bf16.mxu0 0
    %203 = vmatpush1.bf16.msra.mxu0 0
    %204 = vmatprep.subr.bf16.mxu0 0
    %205 = vmatpush1.bf16.msra.mxu0 0
    %206 = vmatprep.subr.bf16.mxu0 0
    %207 = vmatpush1.bf16.msra.mxu0 0
    %208 = vmatprep.subr.bf16.mxu0 0
    %209 = vmatpush1.bf16.msra.mxu0 0
    %210 = vmatprep.subr.bf16.mxu0 0
    %211 = vmatpush1.bf16.msra.mxu0 0
    %212 = vmatprep.subr.bf16.mxu0 0
    %213 = vmatpush1.bf16.msra.mxu0 0
    %214 = vmatprep.mubr.bf16.mxu0 0
    %215 = vmatmul.mubr.bf16.gmra.mrb[0].mxu0 %v150
    %v216 = vpop.f32.mrb[0].mxu0
    %v217 = vadd.f32 %v180, %v216
    %v218 = vpop.f32.mrb[0].mxu0
    %v219 = vpop.f32.mrb[0].mxu0
    %v220 = vadd.f32 %v180, %v219
    %v221 = vpop.f32.mrb[0].mxu0
    %222 = vdwg.mxu0
    %223 = vst [vmem:[%s5] sm:$0xff] %v217
    %224 = vst [vmem:[%s5 + $0x8] sm:$0x3] %v220
    // Predicated region
    $region30: #{carl_forward.18} parent=1 // pred_check
      _
    $region31: #{carl_forward.18} parent=1 // pred_check_branch
      %226 = sbr.rel (0) target = $region33
    $region32: #{carl_forward.18} parent=1 // pred_region
      _
    $region33: #{carl_forward.18} parent=1 // pred_fallthru
      _
    // Predicated region
    $region34: #{carl_forward.18} parent=1 // pred_check
      _
    $region35: #{carl_forward.18} parent=1 // pred_check_branch
      %228 = sbr.rel (0) target = $region37
    $region36: #{carl_forward.18} parent=1 // pred_region
      _
    $region37: #{carl_forward.18} parent=1 // pred_fallthru
      _
    %229 = vsyncpa [#allocation3], 1
    %230 = vsyncpa [#allocation5], 1

// kernel: div.5
$region0: #{div.5}
  #allocation0 [shape = 's32[1]{0}', space=sflag, size = 0x4, scoped, tag = 'scoped memory for div.5']
  %s0 = inlined_call_operand.vmem [shape: f32[37], index: 0, kind: input, shape index: {}]
  %s1 = inlined_call_operand.vmem [shape: f32[37], index: 1, kind: input, shape index: {}]
  %s2 = inlined_call_operand.vmem [shape: f32[37], index: 2, kind: output, shape index: {}]
  %v3 = vld [vmem:[%s0] sm:$0x1]
  %v4 = vld [vmem:[%s1] sm:$0x1]
  %5 = xla_tuple %v3, %v4
  %6 = xla_tuple %5
  %v7 = vrcp.pop %v4
  %v8 = vmul.f32 %v3, %v7
  %9 = xla_tuple %v8
  %10 = vst [vmem:[%s2] sm:$0x1] %v8

// kernel: carl_forward.12
$region0: #{carl_forward.12}
  #allocation0 [shape = 'u32[]', space=smem, size = 0x4, offset = 0x4, fixed_abs, tag = 'smem constant byte address 0x4 - core index']
  #allocation1 [shape = 'u32[144,128]{1,0:T(1,128)}', space=vmem, size = 0x12000, scoped, tag = 'internal scratch']
  %s0 = inlined_call_operand.vmem [shape: f32[8,384], index: 0, kind: input, shape index: {}]
  %s1 = inlined_call_operand.vmem [shape: f32[384,512], index: 1, kind: input, shape index: {}]
  %s2 = inlined_call_operand.vmem [shape: f32[8,512], index: 2, kind: input, shape index: {}]
  %s3 = inlined_call_operand.vmem [shape: f32[8,128], index: 3, kind: input, shape index: {}]
  %s4 = inlined_call_operand.vmem [shape: f32[8,128], index: 4, kind: output, shape index: {0}]
  %s5 = inlined_call_operand.vmem [shape: f32[8,128], index: 5, kind: output, shape index: {1}]
  %6 = xla_tuple %s4, %s5
  %s7 = sld [smem:[#allocation0]]
  $region34: #{carl_forward.12} parent=0
    _
  %s9 = ssub.s32 1, %s7
  %s10 = scalar_select 0, %s9, %s7
  // Predicated region
  $region2: #{carl_forward.12} parent=0 // pred_check
    _
  $region3: #{carl_forward.12} parent=0 // pred_check_branch
    %12 = sbr.rel (0) target = $region5
  $region4: #{carl_forward.12} parent=0 // pred_region
    _
  $region5: #{carl_forward.12} parent=0 // pred_fallthru
    _
  // Predicated region
  $region6: #{carl_forward.12} parent=0 // pred_check
    _
  $region7: #{carl_forward.12} parent=0 // pred_check_branch
    %14 = sbr.rel (0) target = $region9
  $region8: #{carl_forward.12} parent=0 // pred_region
    _
  $region9: #{carl_forward.12} parent=0 // pred_fallthru
    _
  // Predicated region
  $region10: #{carl_forward.12} parent=0 // pred_check
    _
  $region11: #{carl_forward.12} parent=0 // pred_check_branch
    %16 = sbr.rel (0) target = $region13
  $region12: #{carl_forward.12} parent=0 // pred_region
    _
  $region13: #{carl_forward.12} parent=0 // pred_fallthru
    _
  // Predicated region
  $region14: #{carl_forward.12} parent=0 // pred_check
    _
  $region15: #{carl_forward.12} parent=0 // pred_check_branch
    %18 = sbr.rel (0) target = $region17
  $region16: #{carl_forward.12} parent=0 // pred_region
    _
  $region17: #{carl_forward.12} parent=0 // pred_fallthru
    _
  %v20 = vld [vmem:[%s0] sm:$0xff]
  %v21 = vld [vmem:[%s0 + $0x8] sm:$0xff]
  %v22 = vld [vmem:[%s0 + $0x10] sm:$0xff]
  %v23 = vpack.c.bf16 %v20, %v20
  %v24 = vpack.c.bf16 %v21, %v21
  %v25 = vpack.c.bf16 %v22, %v22
  %v26 = vld [vmem:[%s1] sm:$0xff]
  %v27 = vld [vmem:[%s1 + $0x8] sm:$0xff]
  %v28 = vld [vmem:[%s1 + $0x10] sm:$0xff]
  %v29 = vld [vmem:[%s1 + $0x18] sm:$0xff]
  %v30 = vld [vmem:[%s1 + $0x20] sm:$0xff]
  %v31 = vld [vmem:[%s1 + $0x28] sm:$0xff]
  %v32 = vld [vmem:[%s1 + $0x30] sm:$0xff]
  %v33 = vld [vmem:[%s1 + $0x38] sm:$0xff]
  %v34 = vld [vmem:[%s1 + $0x40] sm:$0xff]
  %v35 = vld [vmem:[%s1 + $0x48] sm:$0xff]
  %v36 = vld [vmem:[%s1 + $0x50] sm:$0xff]
  %v37 = vld [vmem:[%s1 + $0x58] sm:$0xff]
  %v38 = vld [vmem:[%s1 + $0x60] sm:$0xff]
  %v39 = vld [vmem:[%s1 + $0x68] sm:$0xff]
  %v40 = vld [vmem:[%s1 + $0x70] sm:$0xff]
  %v41 = vld [vmem:[%s1 + $0x78] sm:$0xff]
  %v42 = vld [vmem:[%s1 + $0x80] sm:$0xff]
  %v43 = vld [vmem:[%s1 + $0x88] sm:$0xff]
  %v44 = vld [vmem:[%s1 + $0x90] sm:$0xff]
  %v45 = vld [vmem:[%s1 + $0x98] sm:$0xff]
  %v46 = vld [vmem:[%s1 + $0xa0] sm:$0xff]
  %v47 = vld [vmem:[%s1 + $0xa8] sm:$0xff]
  %v48 = vld [vmem:[%s1 + $0xb0] sm:$0xff]
  %v49 = vld [vmem:[%s1 + $0xb8] sm:$0xff]
  %v50 = vld [vmem:[%s1 + $0xc0] sm:$0xff]
  %v51 = vld [vmem:[%s1 + $0xc8] sm:$0xff]
  %v52 = vld [vmem:[%s1 + $0xd0] sm:$0xff]
  %v53 = vld [vmem:[%s1 + $0xd8] sm:$0xff]
  %v54 = vld [vmem:[%s1 + $0xe0] sm:$0xff]
  %v55 = vld [vmem:[%s1 + $0xe8] sm:$0xff]
  %v56 = vld [vmem:[%s1 + $0xf0] sm:$0xff]
  %v57 = vld [vmem:[%s1 + $0xf8] sm:$0xff]
  %v58 = vld [vmem:[%s1 + $0x100] sm:$0xff]
  %v59 = vld [vmem:[%s1 + $0x108] sm:$0xff]
  %v60 = vld [vmem:[%s1 + $0x110] sm:$0xff]
  %v61 = vld [vmem:[%s1 + $0x118] sm:$0xff]
  %v62 = vld [vmem:[%s1 + $0x120] sm:$0xff]
  %v63 = vld [vmem:[%s1 + $0x128] sm:$0xff]
  %v64 = vld [vmem:[%s1 + $0x130] sm:$0xff]
  %v65 = vld [vmem:[%s1 + $0x138] sm:$0xff]
  %v66 = vld [vmem:[%s1 + $0x140] sm:$0xff]
  %v67 = vld [vmem:[%s1 + $0x148] sm:$0xff]
  %v68 = vld [vmem:[%s1 + $0x150] sm:$0xff]
  %v69 = vld [vmem:[%s1 + $0x158] sm:$0xff]
  %v70 = vld [vmem:[%s1 + $0x160] sm:$0xff]
  %v71 = vld [vmem:[%s1 + $0x168] sm:$0xff]
  %v72 = vld [vmem:[%s1 + $0x170] sm:$0xff]
  %v73 = vld [vmem:[%s1 + $0x178] sm:$0xff]
  %v74 = vld [vmem:[%s1 + $0x180] sm:$0xff]
  %v75 = vld [vmem:[%s1 + $0x188] sm:$0xff]
  %v76 = vld [vmem:[%s1 + $0x190] sm:$0xff]
  %v77 = vld [vmem:[%s1 + $0x198] sm:$0xff]
  %v78 = vld [vmem:[%s1 + $0x1a0] sm:$0xff]
  %v79 = vld [vmem:[%s1 + $0x1a8] sm:$0xff]
  %v80 = vld [vmem:[%s1 + $0x1b0] sm:$0xff]
  %v81 = vld [vmem:[%s1 + $0x1b8] sm:$0xff]
  %v82 = vld [vmem:[%s1 + $0x1c0] sm:$0xff]
  %v83 = vld [vmem:[%s1 + $0x1c8] sm:$0xff]
  %v84 = vld [vmem:[%s1 + $0x1d0] sm:$0xff]
  %v85 = vld [vmem:[%s1 + $0x1d8] sm:$0xff]
  %v86 = vld [vmem:[%s1 + $0x1e0] sm:$0xff]
  %v87 = vld [vmem:[%s1 + $0x1e8] sm:$0xff]
  %v88 = vld [vmem:[%s1 + $0x1f0] sm:$0xff]
  %v89 = vld [vmem:[%s1 + $0x1f8] sm:$0xff]
  %v90 = vld [vmem:[%s1 + $0x200] sm:$0xff]
  %v91 = vld [vmem:[%s1 + $0x208] sm:$0xff]
  %v92 = vld [vmem:[%s1 + $0x210] sm:$0xff]
  %v93 = vld [vmem:[%s1 + $0x218] sm:$0xff]
  %v94 = vld [vmem:[%s1 + $0x220] sm:$0xff]
  %v95 = vld [vmem:[%s1 + $0x228] sm:$0xff]
  %v96 = vld [vmem:[%s1 + $0x230] sm:$0xff]
  %v97 = vld [vmem:[%s1 + $0x238] sm:$0xff]
  %v98 = vld [vmem:[%s1 + $0x240] sm:$0xff]
  %v99 = vld [vmem:[%s1 + $0x248] sm:$0xff]
  %v100 = vld [vmem:[%s1 + $0x250] sm:$0xff]
  %v101 = vld [vmem:[%s1 + $0x258] sm:$0xff]
  %v102 = vld [vmem:[%s1 + $0x260] sm:$0xff]
  %v103 = vld [vmem:[%s1 + $0x268] sm:$0xff]
  %v104 = vld [vmem:[%s1 + $0x270] sm:$0xff]
  %v105 = vld [vmem:[%s1 + $0x278] sm:$0xff]
  %v106 = vld [vmem:[%s1 + $0x280] sm:$0xff]
  %v107 = vld [vmem:[%s1 + $0x288] sm:$0xff]
  %v108 = vld [vmem:[%s1 + $0x290] sm:$0xff]
  %v109 = vld [vmem:[%s1 + $0x298] sm:$0xff]
  %v110 = vld [vmem:[%s1 + $0x2a0] sm:$0xff]
  %v111 = vld [vmem:[%s1 + $0x2a8] sm:$0xff]
  %v112 = vld [vmem:[%s1 + $0x2b0] sm:$0xff]
  %v113 = vld [vmem:[%s1 + $0x2b8] sm:$0xff]
  %v114 = vld [vmem:[%s1 + $0x2c0] sm:$0xff]
  %v115 = vld [vmem:[%s1 + $0x2c8] sm:$0xff]
  %v116 = vld [vmem:[%s1 + $0x2d0] sm:$0xff]
  %v117 = vld [vmem:[%s1 + $0x2d8] sm:$0xff]
  %v118 = vld [vmem:[%s1 + $0x2e0] sm:$0xff]
  %v119 = vld [vmem:[%s1 + $0x2e8] sm:$0xff]
  %v120 = vld [vmem:[%s1 + $0x2f0] sm:$0xff]
  %v121 = vld [vmem:[%s1 + $0x2f8] sm:$0xff]
  %v122 = vld [vmem:[%s1 + $0x300] sm:$0xff]
  %v123 = vld [vmem:[%s1 + $0x308] sm:$0xff]
  %v124 = vld [vmem:[%s1 + $0x310] sm:$0xff]
  %v125 = vld [vmem:[%s1 + $0x318] sm:$0xff]
  %v126 = vld [vmem:[%s1 + $0x320] sm:$0xff]
  %v127 = vld [vmem:[%s1 + $0x328] sm:$0xff]
  %v128 = vld [vmem:[%s1 + $0x330] sm:$0xff]
  %v129 = vld [vmem:[%s1 + $0x338] sm:$0xff]
  %v130 = vld [vmem:[%s1 + $0x340] sm:$0xff]
  %v131 = vld [vmem:[%s1 + $0x348] sm:$0xff]
  %v132 = vld [vmem:[%s1 + $0x350] sm:$0xff]
  %v133 = vld [vmem:[%s1 + $0x358] sm:$0xff]
  %v134 = vld [vmem:[%s1 + $0x360] sm:$0xff]
  %v135 = vld [vmem:[%s1 + $0x368] sm:$0xff]
  %v136 = vld [vmem:[%s1 + $0x370] sm:$0xff]
  %v137 = vld [vmem:[%s1 + $0x378] sm:$0xff]
  %v138 = vld [vmem:[%s1 + $0x380] sm:$0xff]
  %v139 = vld [vmem:[%s1 + $0x388] sm:$0xff]
  %v140 = vld [vmem:[%s1 + $0x390] sm:$0xff]
  %v141 = vld [vmem:[%s1 + $0x398] sm:$0xff]
  %v142 = vld [vmem:[%s1 + $0x3a0] sm:$0xff]
  %v143 = vld [vmem:[%s1 + $0x3a8] sm:$0xff]
  %v144 = vld [vmem:[%s1 + $0x3b0] sm:$0xff]
  %v145 = vld [vmem:[%s1 + $0x3b8] sm:$0xff]
  %v146 = vld [vmem:[%s1 + $0x3c0] sm:$0xff]
  %v147 = vld [vmem:[%s1 + $0x3c8] sm:$0xff]
  %v148 = vld [vmem:[%s1 + $0x3d0] sm:$0xff]
  %v149 = vld [vmem:[%s1 + $0x3d8] sm:$0xff]
  %v150 = vld [vmem:[%s1 + $0x3e0] sm:$0xff]
  %v151 = vld [vmem:[%s1 + $0x3e8] sm:$0xff]
  %v152 = vld [vmem:[%s1 + $0x3f0] sm:$0xff]
  %v153 = vld [vmem:[%s1 + $0x3f8] sm:$0xff]
  %v154 = vld [vmem:[%s1 + $0x400] sm:$0xff]
  %v155 = vld [vmem:[%s1 + $0x408] sm:$0xff]
  %v156 = vld [vmem:[%s1 + $0x410] sm:$0xff]
  %v157 = vld [vmem:[%s1 + $0x418] sm:$0xff]
  %v158 = vld [vmem:[%s1 + $0x420] sm:$0xff]
  %v159 = vld [vmem:[%s1 + $0x428] sm:$0xff]
  %v160 = vld [vmem:[%s1 + $0x430] sm:$0xff]
  %v161 = vld [vmem:[%s1 + $0x438] sm:$0xff]
  %v162 = vld [vmem:[%s1 + $0x440] sm:$0xff]
  %v163 = vld [vmem:[%s1 + $0x448] sm:$0xff]
  %v164 = vld [vmem:[%s1 + $0x450] sm:$0xff]
  %v165 = vld [vmem:[%s1 + $0x458] sm:$0xff]
  %v166 = vld [vmem:[%s1 + $0x460] sm:$0xff]
  %v167 = vld [vmem:[%s1 + $0x468] sm:$0xff]
  %v168 = vld [vmem:[%s1 + $0x470] sm:$0xff]
  %v169 = vld [vmem:[%s1 + $0x478] sm:$0xff]
  %v170 = vld [vmem:[%s1 + $0x480] sm:$0xff]
  %v171 = vld [vmem:[%s1 + $0x488] sm:$0xff]
  %v172 = vld [vmem:[%s1 + $0x490] sm:$0xff]
  %v173 = vld [vmem:[%s1 + $0x498] sm:$0xff]
  %v174 = vld [vmem:[%s1 + $0x4a0] sm:$0xff]
  %v175 = vld [vmem:[%s1 + $0x4a8] sm:$0xff]
  %v176 = vld [vmem:[%s1 + $0x4b0] sm:$0xff]
  %v177 = vld [vmem:[%s1 + $0x4b8] sm:$0xff]
  %v178 = vld [vmem:[%s1 + $0x4c0] sm:$0xff]
  %v179 = vld [vmem:[%s1 + $0x4c8] sm:$0xff]
  %v180 = vld [vmem:[%s1 + $0x4d0] sm:$0xff]
  %v181 = vld [vmem:[%s1 + $0x4d8] sm:$0xff]
  %v182 = vld [vmem:[%s1 + $0x4e0] sm:$0xff]
  %v183 = vld [vmem:[%s1 + $0x4e8] sm:$0xff]
  %v184 = vld [vmem:[%s1 + $0x4f0] sm:$0xff]
  %v185 = vld [vmem:[%s1 + $0x4f8] sm:$0xff]
  %v186 = vld [vmem:[%s1 + $0x500] sm:$0xff]
  %v187 = vld [vmem:[%s1 + $0x508] sm:$0xff]
  %v188 = vld [vmem:[%s1 + $0x510] sm:$0xff]
  %v189 = vld [vmem:[%s1 + $0x518] sm:$0xff]
  %v190 = vld [vmem:[%s1 + $0x520] sm:$0xff]
  %v191 = vld [vmem:[%s1 + $0x528] sm:$0xff]
  %v192 = vld [vmem:[%s1 + $0x530] sm:$0xff]
  %v193 = vld [vmem:[%s1 + $0x538] sm:$0xff]
  %v194 = vld [vmem:[%s1 + $0x540] sm:$0xff]
  %v195 = vld [vmem:[%s1 + $0x548] sm:$0xff]
  %v196 = vld [vmem:[%s1 + $0x550] sm:$0xff]
  %v197 = vld [vmem:[%s1 + $0x558] sm:$0xff]
  %v198 = vld [vmem:[%s1 + $0x560] sm:$0xff]
  %v199 = vld [vmem:[%s1 + $0x568] sm:$0xff]
  %v200 = vld [vmem:[%s1 + $0x570] sm:$0xff]
  %v201 = vld [vmem:[%s1 + $0x578] sm:$0xff]
  %v202 = vld [vmem:[%s1 + $0x580] sm:$0xff]
  %v203 = vld [vmem:[%s1 + $0x588] sm:$0xff]
  %v204 = vld [vmem:[%s1 + $0x590] sm:$0xff]
  %v205 = vld [vmem:[%s1 + $0x598] sm:$0xff]
  %v206 = vld [vmem:[%s1 + $0x5a0] sm:$0xff]
  %v207 = vld [vmem:[%s1 + $0x5a8] sm:$0xff]
  %v208 = vld [vmem:[%s1 + $0x5b0] sm:$0xff]
  %v209 = vld [vmem:[%s1 + $0x5b8] sm:$0xff]
  %v210 = vld [vmem:[%s1 + $0x5c0] sm:$0xff]
  %v211 = vld [vmem:[%s1 + $0x5c8] sm:$0xff]
  %v212 = vld [vmem:[%s1 + $0x5d0] sm:$0xff]
  %v213 = vld [vmem:[%s1 + $0x5d8] sm:$0xff]
  %v214 = vld [vmem:[%s1 + $0x5e0] sm:$0xff]
  %v215 = vld [vmem:[%s1 + $0x5e8] sm:$0xff]
  %v216 = vld [vmem:[%s1 + $0x5f0] sm:$0xff]
  %v217 = vld [vmem:[%s1 + $0x5f8] sm:$0xff]
  %v218 = vpack.c.bf16 %v30, %v26
  %v219 = vpack.c.bf16 %v31, %v27
  %v220 = vpack.c.bf16 %v32, %v28
  %v221 = vpack.c.bf16 %v33, %v29
  %v222 = vpack.c.bf16 %v38, %v34
  %v223 = vpack.c.bf16 %v39, %v35
  %v224 = vpack.c.bf16 %v40, %v36
  %v225 = vpack.c.bf16 %v41, %v37
  %v226 = vpack.c.bf16 %v46, %v42
  %v227 = vpack.c.bf16 %v47, %v43
  %v228 = vpack.c.bf16 %v48, %v44
  %v229 = vpack.c.bf16 %v49, %v45
  %v230 = vpack.c.bf16 %v54, %v50
  %v231 = vpack.c.bf16 %v55, %v51
  %v232 = vpack.c.bf16 %v56, %v52
  %v233 = vpack.c.bf16 %v57, %v53
  %v234 = vpack.c.bf16 %v62, %v58
  %v235 = vpack.c.bf16 %v63, %v59
  %v236 = vpack.c.bf16 %v64, %v60
  %v237 = vpack.c.bf16 %v65, %v61
  %v238 = vpack.c.bf16 %v70, %v66
  %v239 = vpack.c.bf16 %v71, %v67
  %v240 = vpack.c.bf16 %v72, %v68
  %v241 = vpack.c.bf16 %v73, %v69
  %v242 = vpack.c.bf16 %v78, %v74
  %v243 = vpack.c.bf16 %v79, %v75
  %v244 = vpack.c.bf16 %v80, %v76
  %v245 = vpack.c.bf16 %v81, %v77
  %v246 = vpack.c.bf16 %v86, %v82
  %v247 = vpack.c.bf16 %v87, %v83
  %v248 = vpack.c.bf16 %v88, %v84
  %v249 = vpack.c.bf16 %v89, %v85
  %v250 = vpack.c.bf16 %v94, %v90
  %v251 = vpack.c.bf16 %v95, %v91
  %v252 = vpack.c.bf16 %v96, %v92
  %v253 = vpack.c.bf16 %v97, %v93
  %v254 = vpack.c.bf16 %v102, %v98
  %v255 = vpack.c.bf16 %v103, %v99
  %v256 = vpack.c.bf16 %v104, %v100
  %v257 = vpack.c.bf16 %v105, %v101
  %v258 = vpack.c.bf16 %v110, %v106
  %v259 = vpack.c.bf16 %v111, %v107
  %v260 = vpack.c.bf16 %v112, %v108
  %v261 = vpack.c.bf16 %v113, %v109
  %v262 = vpack.c.bf16 %v118, %v114
  %v263 = vpack.c.bf16 %v119, %v115
  %v264 = vpack.c.bf16 %v120, %v116
  %v265 = vpack.c.bf16 %v121, %v117
  %v266 = vpack.c.bf16 %v126, %v122
  %v267 = vpack.c.bf16 %v127, %v123
  %v268 = vpack.c.bf16 %v128, %v124
  %v269 = vpack.c.bf16 %v129, %v125
  %v270 = vpack.c.bf16 %v134, %v130
  %v271 = vpack.c.bf16 %v135, %v131
  %v272 = vpack.c.bf16 %v136, %v132
  %v273 = vpack.c.bf16 %v137, %v133
  %v274 = vpack.c.bf16 %v142, %v138
  %v275 = vpack.c.bf16 %v143, %v139
  %v276 = vpack.c.bf16 %v144, %v140
  %v277 = vpack.c.bf16 %v145, %v141
  %v278 = vpack.c.bf16 %v150, %v146
  %v279 = vpack.c.bf16 %v151, %v147
  %v280 = vpack.c.bf16 %v152, %v148
  %v281 = vpack.c.bf16 %v153, %v149
  %v282 = vpack.c.bf16 %v158, %v154
  %v283 = vpack.c.bf16 %v159, %v155
  %v284 = vpack.c.bf16 %v160, %v156
  %v285 = vpack.c.bf16 %v161, %v157
  %v286 = vpack.c.bf16 %v166, %v162
  %v287 = vpack.c.bf16 %v167, %v163
  %v288 = vpack.c.bf16 %v168, %v164
  %v289 = vpack.c.bf16 %v169, %v165
  %v290 = vpack.c.bf16 %v174, %v170
  %v291 = vpack.c.bf16 %v175, %v171
  %v292 = vpack.c.bf16 %v176, %v172
  %v293 = vpack.c.bf16 %v177, %v173
  %v294 = vpack.c.bf16 %v182, %v178
  %v295 = vpack.c.bf16 %v183, %v179
  %v296 = vpack.c.bf16 %v184, %v180
  %v297 = vpack.c.bf16 %v185, %v181
  %v298 = vpack.c.bf16 %v190, %v186
  %v299 = vpack.c.bf16 %v191, %v187
  %v300 = vpack.c.bf16 %v192, %v188
  %v301 = vpack.c.bf16 %v193, %v189
  %v302 = vpack.c.bf16 %v198, %v194
  %v303 = vpack.c.bf16 %v199, %v195
  %v304 = vpack.c.bf16 %v200, %v196
  %v305 = vpack.c.bf16 %v201, %v197
  %v306 = vpack.c.bf16 %v206, %v202
  %v307 = vpack.c.bf16 %v207, %v203
  %v308 = vpack.c.bf16 %v208, %v204
  %v309 = vpack.c.bf16 %v209, %v205
  %v310 = vpack.c.bf16 %v214, %v210
  %v311 = vpack.c.bf16 %v215, %v211
  %v312 = vpack.c.bf16 %v216, %v212
  %v313 = vpack.c.bf16 %v217, %v213
  %v314 = vld [vmem:[%s2] sm:$0xff]
  %v315 = vld [vmem:[%s2 + $0x8] sm:$0xff]
  %v316 = vld [vmem:[%s2 + $0x10] sm:$0xff]
  %v317 = vld [vmem:[%s2 + $0x18] sm:$0xff]
  %318 = vmatprep.subr.bf16.mxu0 %v219
  %319 = vmatpush1.bf16.msra.mxu0 %v218
  %320 = vmatprep.subr.bf16.mxu0 %v223
  %321 = vmatpush1.bf16.msra.mxu0 %v222
  %322 = vmatprep.subr.bf16.mxu0 %v227
  %323 = vmatpush1.bf16.msra.mxu0 %v226
  %324 = vmatprep.subr.bf16.mxu0 %v231
  %325 = vmatpush1.bf16.msra.mxu0 %v230
  %326 = vmatprep.subr.bf16.mxu0 %v235
  %327 = vmatpush1.bf16.msra.mxu0 %v234
  %328 = vmatprep.subr.bf16.mxu0 %v239
  %329 = vmatpush1.bf16.msra.mxu0 %v238
  %330 = vmatprep.subr.bf16.mxu0 %v243
  %331 = vmatpush1.bf16.msra.mxu0 %v242
  %332 = vmatprep.subr.bf16.mxu0 %v247
  %333 = vmatpush1.bf16.msra.mxu0 %v246
  %334 = vmatprep.subr.bf16.mxu0 %v251
  %335 = vmatpush1.bf16.msra.mxu0 %v250
  %336 = vmatprep.subr.bf16.mxu0 %v255
  %337 = vmatpush1.bf16.msra.mxu0 %v254
  %338 = vmatprep.subr.bf16.mxu0 %v259
  %339 = vmatpush1.bf16.msra.mxu0 %v258
  %340 = vmatprep.subr.bf16.mxu0 %v263
  %341 = vmatpush1.bf16.msra.mxu0 %v262
  %342 = vmatprep.subr.bf16.mxu0 %v267
  %343 = vmatpush1.bf16.msra.mxu0 %v266
  %344 = vmatprep.subr.bf16.mxu0 %v271
  %345 = vmatpush1.bf16.msra.mxu0 %v270
  %346 = vmatprep.subr.bf16.mxu0 %v275
  %347 = vmatpush1.bf16.msra.mxu0 %v274
  %348 = vmatprep.subr.bf16.mxu0 %v279
  %349 = vmatpush1.bf16.msra.mxu0 %v278
  %350 = vmatprep.mubr.bf16.mxu0 %v24
  %351 = vmatmul.mubr.bf16.gmra.mrb[0].mxu0 %v23
  %v352 = vpop.f32.mrb[0].mxu0
  %v353 = vadd.f32 %v314, %v352
  %v354 = vpop.f32.mrb[0].mxu0
  %v355 = vadd.f32 %v315, %v354
  %v356 = vpop.f32.mrb[0].mxu0
  %v357 = vpop.f32.mrb[0].mxu0
  %358 = vdwg.mxu0
  %359 = vmatprep.subr.bf16.mxu0 %v283
  %360 = vmatpush1.bf16.msra.mxu0 %v282
  %361 = vmatprep.subr.bf16.mxu0 %v287
  %362 = vmatpush1.bf16.msra.mxu0 %v286
  %363 = vmatprep.subr.bf16.mxu0 %v291
  %364 = vmatpush1.bf16.msra.mxu0 %v290
  %365 = vmatprep.subr.bf16.mxu0 %v295
  %366 = vmatpush1.bf16.msra.mxu0 %v294
  %367 = vmatprep.subr.bf16.mxu0 %v299
  %368 = vmatpush1.bf16.msra.mxu0 %v298
  %369 = vmatprep.subr.bf16.mxu0 %v303
  %370 = vmatpush1.bf16.msra.mxu0 %v302
  %371 = vmatprep.subr.bf16.mxu0 %v307
  %372 = vmatpush1.bf16.msra.mxu0 %v306
  %373 = vmatprep.subr.bf16.mxu0 %v311
  %374 = vmatpush1.bf16.msra.mxu0 %v310
  %375 = vmatprep.subr.bf16.mxu0 0
  %376 = vmatpush1.bf16.msra.mxu0 0
  %377 = vmatprep.subr.bf16.mxu0 0
  %378 = vmatpush1.bf16.msra.mxu0 0
  %379 = vmatprep.subr.bf16.mxu0 0
  %380 = vmatpush1.bf16.msra.mxu0 0
  %381 = vmatprep.subr.bf16.mxu0 0
  %382 = vmatpush1.bf16.msra.mxu0 0
  %383 = vmatprep.subr.bf16.mxu0 0
  %384 = vmatpush1.bf16.msra.mxu0 0
  %385 = vmatprep.subr.bf16.mxu0 0
  %386 = vmatpush1.bf16.msra.mxu0 0
  %387 = vmatprep.subr.bf16.mxu0 0
  %388 = vmatpush1.bf16.msra.mxu0 0
  %389 = vmatprep.subr.bf16.mxu0 0
  %390 = vmatpush1.bf16.msra.mxu0 0
  %391 = vmatprep.mubr.bf16.mxu0 0
  %392 = vmatmul.mubr.bf16.gmra.mrb[0].mxu0 %v25
  %v393 = vpop.f32.mrb[0].mxu0
  %v394 = vadd.f32 %v353, %v393
  %v395 = vpop.f32.mrb[0].mxu0
  %v396 = vadd.f32 %v355, %v395
  %v397 = vpop.f32.mrb[0].mxu0
  %v398 = vpop.f32.mrb[0].mxu0
  %399 = vdwg.mxu0
  %400 = vmatprep.subr.bf16.mxu0 %v221
  %401 = vmatpush1.bf16.msra.mxu0 %v220
  %402 = vmatprep.subr.bf16.mxu0 %v225
  %403 = vmatpush1.bf16.msra.mxu0 %v224
  %404 = vmatprep.subr.bf16.mxu0 %v229
  %405 = vmatpush1.bf16.msra.mxu0 %v228
  %406 = vmatprep.subr.bf16.mxu0 %v233
  %407 = vmatpush1.bf16.msra.mxu0 %v232
  %408 = vmatprep.subr.bf16.mxu0 %v237
  %409 = vmatpush1.bf16.msra.mxu0 %v236
  %410 = vmatprep.subr.bf16.mxu0 %v241
  %411 = vmatpush1.bf16.msra.mxu0 %v240
  %412 = vmatprep.subr.bf16.mxu0 %v245
  %413 = vmatpush1.bf16.msra.mxu0 %v244
  %414 = vmatprep.subr.bf16.mxu0 %v249
  %415 = vmatpush1.bf16.msra.mxu0 %v248
  %416 = vmatprep.subr.bf16.mxu0 %v253
  %417 = vmatpush1.bf16.msra.mxu0 %v252
  %418 = vmatprep.subr.bf16.mxu0 %v257
  %419 = vmatpush1.bf16.msra.mxu0 %v256
  %420 = vmatprep.subr.bf16.mxu0 %v261
  %421 = vmatpush1.bf16.msra.mxu0 %v260
  %422 = vmatprep.subr.bf16.mxu0 %v265
  %423 = vmatpush1.bf16.msra.mxu0 %v264
  %424 = vmatprep.subr.bf16.mxu0 %v269
  %425 = vmatpush1.bf16.msra.mxu0 %v268
  %426 = vmatprep.subr.bf16.mxu0 %v273
  %427 = vmatpush1.bf16.msra.mxu0 %v272
  %428 = vmatprep.subr.bf16.mxu0 %v277
  %429 = vmatpush1.bf16.msra.mxu0 %v276
  %430 = vmatprep.subr.bf16.mxu0 %v281
  %431 = vmatpush1.bf16.msra.mxu0 %v280
  %432 = vmatprep.mubr.bf16.mxu0 %v24
  %433 = vmatmul.mubr.bf16.gmra.mrb[0].mxu0 %v23
  %v434 = vpop.f32.mrb[0].mxu0
  %v435 = vadd.f32 %v316, %v434
  %v436 = vpop.f32.mrb[0].mxu0
  %v437 = vadd.f32 %v317, %v436
  %v438 = vpop.f32.mrb[0].mxu0
  %v439 = vpop.f32.mrb[0].mxu0
  %440 = vdwg.mxu0
  %441 = vmatprep.subr.bf16.mxu0 %v285
  %442 = vmatpush1.bf16.msra.mxu0 %v284
  %443 = vmatprep.subr.bf16.mxu0 %v289
  %444 = vmatpush1.bf16.msra.mxu0 %v288
  %445 = vmatprep.subr.bf16.mxu0 %v293
  %446 = vmatpush1.bf16.msra.mxu0 %v292
  %447 = vmatprep.subr.bf16.mxu0 %v297
  %448 = vmatpush1.bf16.msra.mxu0 %v296
  %449 = vmatprep.subr.bf16.mxu0 %v301
  %450 = vmatpush1.bf16.msra.mxu0 %v300
  %451 = vmatprep.subr.bf16.mxu0 %v305
  %452 = vmatpush1.bf16.msra.mxu0 %v304
  %453 = vmatprep.subr.bf16.mxu0 %v309
  %454 = vmatpush1.bf16.msra.mxu0 %v308
  %455 = vmatprep.subr.bf16.mxu0 %v313
  %456 = vmatpush1.bf16.msra.mxu0 %v312
  %457 = vmatprep.subr.bf16.mxu0 0
  %458 = vmatpush1.bf16.msra.mxu0 0
  %459 = vmatprep.subr.bf16.mxu0 0
  %460 = vmatpush1.bf16.msra.mxu0 0
  %461 = vmatprep.subr.bf16.mxu0 0
  %462 = vmatpush1.bf16.msra.mxu0 0
  %463 = vmatprep.subr.bf16.mxu0 0
  %464 = vmatpush1.bf16.msra.mxu0 0
  %465 = vmatprep.subr.bf16.mxu0 0
  %466 = vmatpush1.bf16.msra.mxu0 0
  %467 = vmatprep.subr.bf16.mxu0 0
  %468 = vmatpush1.bf16.msra.mxu0 0
  %469 = vmatprep.subr.bf16.mxu0 0
  %470 = vmatpush1.bf16.msra.mxu0 0
  %471 = vmatprep.subr.bf16.mxu0 0
  %472 = vmatpush1.bf16.msra.mxu0 0
  %473 = vmatprep.mubr.bf16.mxu0 0
  %474 = vmatmul.mubr.bf16.gmra.mrb[0].mxu0 %v25
  %v475 = vpop.f32.mrb[0].mxu0
  %v476 = vadd.f32 %v435, %v475
  %v477 = vpop.f32.mrb[0].mxu0
  %v478 = vadd.f32 %v437, %v477
  %v479 = vpop.f32.mrb[0].mxu0
  %v480 = vpop.f32.mrb[0].mxu0
  %481 = vdwg.mxu0
  %v482 = vxor.u32 %v394, 2147483648
  %v483 = vmul.f32 %v482, 1.442695
  %v484 = vpow.pop %v483
  %v485 = vadd.f32 %v484, 1.0
  %v486 = vrcp.pop %v485
  %v487 = vmul.f32 1.0, %v486
  %v488 = vxor.u32 %v396, 2147483648
  %v489 = vmul.f32 %v488, 1.442695
  %v490 = vpow.pop %v489
  %v491 = vadd.f32 %v490, 1.0
  %v492 = vrcp.pop %v491
  %v493 = vmul.f32 1.0, %v492
  %v494 = vtanh.pop %v476
  %v495 = vxor.u32 %v478, 2147483648
  %v496 = vmul.f32 %v495, 1.442695
  %v497 = vpow.pop %v496
  %v498 = vadd.f32 %v497, 1.0
  %v499 = vrcp.pop %v498
  %v500 = vmul.f32 1.0, %v499
  %v501 = vld [vmem:[%s3] sm:$0xff]
  %v502 = vmul.f32 %v493, %v501
  %v503 = vmul.f32 %v487, %v494
  %v504 = vadd.f32 %v502, %v503
  %v505 = vtanh.pop %v504
  %v506 = vmul.f32 %v500, %v505
  %507 = vst [vmem:[%s4] sm:$0xff] %v506
  %508 = vst [vmem:[%s5] sm:$0xff] %v504
  // Predicated region
  $region18: #{carl_forward.12} parent=0 // pred_check
    _
  $region19: #{carl_forward.12} parent=0 // pred_check_branch
    %510 = sbr.rel (0) target = $region21
  $region20: #{carl_forward.12} parent=0 // pred_region
    _
  $region21: #{carl_forward.12} parent=0 // pred_fallthru
    _
  // Predicated region
  $region22: #{carl_forward.12} parent=0 // pred_check
    _
  $region23: #{carl_forward.12} parent=0 // pred_check_branch
    %512 = sbr.rel (0) target = $region25
  $region24: #{carl_forward.12} parent=0 // pred_region
    _
  $region25: #{carl_forward.12} parent=0 // pred_fallthru
    _
  // Predicated region
  $region26: #{carl_forward.12} parent=0 // pred_check
    _
  $region27: #{carl_forward.12} parent=0 // pred_check_branch
    %514 = sbr.rel (0) target = $region29
  $region28: #{carl_forward.12} parent=0 // pred_region
    _
  $region29: #{carl_forward.12} parent=0 // pred_fallthru
    _
  // Predicated region
  $region30: #{carl_forward.12} parent=0 // pred_check
    _
  $region31: #{carl_forward.12} parent=0 // pred_check_branch
    %516 = sbr.rel (0) target = $region33
  $region32: #{carl_forward.12} parent=0 // pred_region
    _
  $region33: #{carl_forward.12} parent=0 // pred_fallthru
    _

// kernel: carl_forward.20
$region0: #{carl_forward.20}
  #allocation0 [shape = 'u32[]', space=smem, size = 0x4, offset = 0x4, fixed_abs, tag = 'smem constant byte address 0x4 - core index']
  #allocation1 [shape = 'u32[144,128]{1,0:T(1,128)}', space=vmem, size = 0x12000, scoped, tag = 'internal scratch']
  %s0 = inlined_call_operand.vmem [shape: f32[2,128], index: 0, kind: input, shape index: {}]
  %s1 = inlined_call_operand.vmem [shape: f32[128,128], index: 1, kind: input, shape index: {}]
  %s2 = inlined_call_operand.vmem [shape: f32[1,128], index: 2, kind: input, shape index: {}]
  %s3 = inlined_call_operand.hbm [shape: f32[2,128], index: 3, kind: output, shape index: {}]
  %s4 = sld [smem:[#allocation0]]
  $region22: #{carl_forward.20} parent=0
    _
  %s6 = ssub.s32 1, %s4
  %s7 = scalar_select 0, %s6, %s4
  $region1: #{carl_forward.20} parent=0
    #allocation2 [shape = 'u8[1024]{0}', space=vmem, size = 0x400, scoped, tag = 'output window, operand 0, single buffered']
    #allocation3 [shape = 's32[1]{0}', space=sflag, size = 0x4, scoped, tag = 'scoped memory for carl_forward.20']
    %8 = vsyncpa [#allocation3], 0
    // Predicated region
    $region2: #{carl_forward.20} parent=1 // pred_check
      _
    $region3: #{carl_forward.20} parent=1 // pred_check_branch
      %10 = sbr.rel (0) target = $region5
    $region4: #{carl_forward.20} parent=1 // pred_region
      _
    $region5: #{carl_forward.20} parent=1 // pred_fallthru
      _
    // Predicated region
    $region6: #{carl_forward.20} parent=1 // pred_check
      _
    $region7: #{carl_forward.20} parent=1 // pred_check_branch
      %12 = sbr.rel (0) target = $region9
    $region8: #{carl_forward.20} parent=1 // pred_region
      _
    $region9: #{carl_forward.20} parent=1 // pred_fallthru
      _
    // Predicated region
    $region10: #{carl_forward.20} parent=1 // pred_check
      _
    $region11: #{carl_forward.20} parent=1 // pred_check_branch
      %14 = sbr.rel (0) target = $region13
    $region12: #{carl_forward.20} parent=1 // pred_region
      _
    $region13: #{carl_forward.20} parent=1 // pred_fallthru
      _
    %v16 = vld [vmem:[%s0] sm:$0x3]
    %v17 = vpack.c.bf16 %v16, %v16
    %v18 = vld [vmem:[%s1] sm:$0xff]
    %v19 = vld [vmem:[%s1 + $0x8] sm:$0xff]
    %v20 = vld [vmem:[%s1 + $0x10] sm:$0xff]
    %v21 = vld [vmem:[%s1 + $0x18] sm:$0xff]
    %v22 = vld [vmem:[%s1 + $0x20] sm:$0xff]
    %v23 = vld [vmem:[%s1 + $0x28] sm:$0xff]
    %v24 = vld [vmem:[%s1 + $0x30] sm:$0xff]
    %v25 = vld [vmem:[%s1 + $0x38] sm:$0xff]
    %v26 = vld [vmem:[%s1 + $0x40] sm:$0xff]
    %v27 = vld [vmem:[%s1 + $0x48] sm:$0xff]
    %v28 = vld [vmem:[%s1 + $0x50] sm:$0xff]
    %v29 = vld [vmem:[%s1 + $0x58] sm:$0xff]
    %v30 = vld [vmem:[%s1 + $0x60] sm:$0xff]
    %v31 = vld [vmem:[%s1 + $0x68] sm:$0xff]
    %v32 = vld [vmem:[%s1 + $0x70] sm:$0xff]
    %v33 = vld [vmem:[%s1 + $0x78] sm:$0xff]
    %v34 = vpack.c.bf16 %v19, %v18
    %v35 = vpack.c.bf16 %v21, %v20
    %v36 = vpack.c.bf16 %v23, %v22
    %v37 = vpack.c.bf16 %v25, %v24
    %v38 = vpack.c.bf16 %v27, %v26
    %v39 = vpack.c.bf16 %v29, %v28
    %v40 = vpack.c.bf16 %v31, %v30
    %v41 = vpack.c.bf16 %v33, %v32
    %v42 = vld [vmem:[%s2] sm:$0x1]
    %v44 = vlaneseq
    %v45 = vshrl.u32 %v44, 7
    %v46 = vsub.s32 0, %v45
    %v47 = vrot.slane %v42, %v46
    %49 = vmatprep.subr.bf16.mxu0 0
    %50 = vmatpush1.bf16.msra.mxu0 %v34
    %51 = vmatprep.subr.bf16.mxu0 0
    %52 = vmatpush1.bf16.msra.mxu0 %v35
    %53 = vmatprep.subr.bf16.mxu0 0
    %54 = vmatpush1.bf16.msra.mxu0 %v36
    %55 = vmatprep.subr.bf16.mxu0 0
    %56 = vmatpush1.bf16.msra.mxu0 %v37
    %57 = vmatprep.subr.bf16.mxu0 0
    %58 = vmatpush1.bf16.msra.mxu0 %v38
    %59 = vmatprep.subr.bf16.mxu0 0
    %60 = vmatpush1.bf16.msra.mxu0 %v39
    %61 = vmatprep.subr.bf16.mxu0 0
    %62 = vmatpush1.bf16.msra.mxu0 %v40
    %63 = vmatprep.subr.bf16.mxu0 0
    %64 = vmatpush1.bf16.msra.mxu0 %v41
    %65 = vmatprep.subr.bf16.mxu0 0
    %66 = vmatpush1.bf16.msra.mxu0 0
    %67 = vmatprep.subr.bf16.mxu0 0
    %68 = vmatpush1.bf16.msra.mxu0 0
    %69 = vmatprep.subr.bf16.mxu0 0
    %70 = vmatpush1.bf16.msra.mxu0 0
    %71 = vmatprep.subr.bf16.mxu0 0
    %72 = vmatpush1.bf16.msra.mxu0 0
    %73 = vmatprep.subr.bf16.mxu0 0
    %74 = vmatpush1.bf16.msra.mxu0 0
    %75 = vmatprep.subr.bf16.mxu0 0
    %76 = vmatpush1.bf16.msra.mxu0 0
    %77 = vmatprep.subr.bf16.mxu0 0
    %78 = vmatpush1.bf16.msra.mxu0 0
    %79 = vmatprep.subr.bf16.mxu0 0
    %80 = vmatpush1.bf16.msra.mxu0 0
    %81 = vmatprep.mubr.bf16.mxu0 0
    %82 = vmatmul.mubr.bf16.gmra.mrb[0].mxu0 %v17
    %v83 = vpop.f32.mrb[0].mxu0
    %v84 = vadd.f32 %v47, %v83
    %v85 = vpop.f32.mrb[0].mxu0
    %v86 = vpop.f32.mrb[0].mxu0
    %v87 = vpop.f32.mrb[0].mxu0
    %88 = vdwg.mxu0
    %89 = vst [vmem:[#allocation2] sm:$0x3] %v84
    // Predicated region
    $region14: #{carl_forward.20} parent=1 // pred_check
      _
    $region15: #{carl_forward.20} parent=1 // pred_check_branch
      %91 = sbr.rel (0) target = $region17
    $region16: #{carl_forward.20} parent=1 // pred_region
      %s93 = ssub.s32 32, 32
      %94 = vsyncadd [#allocation3], %s93
      %s96 = sshll.u32 [#allocation2], 4
      %s97 = int_to_ptr.vmem [resolvable:$true] %s96
      %99 = dma.vmem_to_hbm [thread:$0]  %s97, 32, %s3, [#allocation3]
    $region17: #{carl_forward.20} parent=1 // pred_fallthru
      _
    // Predicated region
    $region18: #{carl_forward.20} parent=1 // pred_check
      _
    $region19: #{carl_forward.20} parent=1 // pred_check_branch
      %101 = sbr.rel (0) target = $region21
    $region20: #{carl_forward.20} parent=1 // pred_region
      %102 = dma.done [#allocation3], 32
    $region21: #{carl_forward.20} parent=1 // pred_fallthru
      _
    %103 = vsyncpa [#allocation3], 1

// kernel: carl_forward.19
$region0: #{carl_forward.19}
  #allocation0 [shape = 'u32[]', space=smem, size = 0x4, offset = 0x4, fixed_abs, tag = 'smem constant byte address 0x4 - core index']
  #allocation1 [shape = 'u32[144,128]{1,0:T(1,128)}', space=vmem, size = 0x12000, scoped, tag = 'internal scratch']
  %s0 = inlined_call_operand.vmem [shape: f32[8,384], index: 0, kind: input, shape index: {}]
  %s1 = inlined_call_operand.vmem [shape: f32[384,512], index: 1, kind: input, shape index: {}]
  %s2 = inlined_call_operand.vmem [shape: f32[8,512], index: 2, kind: input, shape index: {}]
  %s3 = inlined_call_operand.vmem [shape: f32[8,128], index: 3, kind: input, shape index: {}]
  %s4 = inlined_call_operand.vmem [shape: f32[8,128], index: 4, kind: output, shape index: {0}]
  %s5 = inlined_call_operand.hbm [shape: f32[8,128], index: 5, kind: output, shape index: {1}]
  %6 = xla_tuple %s4, %s5
  %s7 = sld [smem:[#allocation0]]
  $region34: #{carl_forward.19} parent=0
    _
  %s9 = ssub.s32 1, %s7
  %s10 = scalar_select 0, %s9, %s7
  $region1: #{carl_forward.19} parent=0
    #allocation2 [shape = 'u8[4096]{0}', space=vmem, size = 0x1000, scoped, tag = 'output window, operand 1, single buffered']
    #allocation3 [shape = 's32[1]{0}', space=sflag, size = 0x4, scoped, tag = 'scoped memory for carl_forward.19']
    %11 = vsyncpa [#allocation3], 0
    // Predicated region
    $region2: #{carl_forward.19} parent=1 // pred_check
      _
    $region3: #{carl_forward.19} parent=1 // pred_check_branch
      %13 = sbr.rel (0) target = $region5
    $region4: #{carl_forward.19} parent=1 // pred_region
      _
    $region5: #{carl_forward.19} parent=1 // pred_fallthru
      _
    // Predicated region
    $region6: #{carl_forward.19} parent=1 // pred_check
      _
    $region7: #{carl_forward.19} parent=1 // pred_check_branch
      %15 = sbr.rel (0) target = $region9
    $region8: #{carl_forward.19} parent=1 // pred_region
      _
    $region9: #{carl_forward.19} parent=1 // pred_fallthru
      _
    // Predicated region
    $region10: #{carl_forward.19} parent=1 // pred_check
      _
    $region11: #{carl_forward.19} parent=1 // pred_check_branch
      %17 = sbr.rel (0) target = $region13
    $region12: #{carl_forward.19} parent=1 // pred_region
      _
    $region13: #{carl_forward.19} parent=1 // pred_fallthru
      _
    // Predicated region
    $region14: #{carl_forward.19} parent=1 // pred_check
      _
    $region15: #{carl_forward.19} parent=1 // pred_check_branch
      %19 = sbr.rel (0) target = $region17
    $region16: #{carl_forward.19} parent=1 // pred_region
      _
    $region17: #{carl_forward.19} parent=1 // pred_fallthru
      _
    %v21 = vld [vmem:[%s0] sm:$0xff]
    %v22 = vld [vmem:[%s0 + $0x8] sm:$0xff]
    %v23 = vld [vmem:[%s0 + $0x10] sm:$0xff]
    %v24 = vpack.c.bf16 %v21, %v21
    %v25 = vpack.c.bf16 %v22, %v22
    %v26 = vpack.c.bf16 %v23, %v23
    %v27 = vld [vmem:[%s1] sm:$0xff]
    %v28 = vld [vmem:[%s1 + $0x8] sm:$0xff]
    %v29 = vld [vmem:[%s1 + $0x10] sm:$0xff]
    %v30 = vld [vmem:[%s1 + $0x18] sm:$0xff]
    %v31 = vld [vmem:[%s1 + $0x20] sm:$0xff]
    %v32 = vld [vmem:[%s1 + $0x28] sm:$0xff]
    %v33 = vld [vmem:[%s1 + $0x30] sm:$0xff]
    %v34 = vld [vmem:[%s1 + $0x38] sm:$0xff]
    %v35 = vld [vmem:[%s1 + $0x40] sm:$0xff]
    %v36 = vld [vmem:[%s1 + $0x48] sm:$0xff]
    %v37 = vld [vmem:[%s1 + $0x50] sm:$0xff]
    %v38 = vld [vmem:[%s1 + $0x58] sm:$0xff]
    %v39 = vld [vmem:[%s1 + $0x60] sm:$0xff]
    %v40 = vld [vmem:[%s1 + $0x68] sm:$0xff]
    %v41 = vld [vmem:[%s1 + $0x70] sm:$0xff]
    %v42 = vld [vmem:[%s1 + $0x78] sm:$0xff]
    %v43 = vld [vmem:[%s1 + $0x80] sm:$0xff]
    %v44 = vld [vmem:[%s1 + $0x88] sm:$0xff]
    %v45 = vld [vmem:[%s1 + $0x90] sm:$0xff]
    %v46 = vld [vmem:[%s1 + $0x98] sm:$0xff]
    %v47 = vld [vmem:[%s1 + $0xa0] sm:$0xff]
    %v48 = vld [vmem:[%s1 + $0xa8] sm:$0xff]
    %v49 = vld [vmem:[%s1 + $0xb0] sm:$0xff]
    %v50 = vld [vmem:[%s1 + $0xb8] sm:$0xff]
    %v51 = vld [vmem:[%s1 + $0xc0] sm:$0xff]
    %v52 = vld [vmem:[%s1 + $0xc8] sm:$0xff]
    %v53 = vld [vmem:[%s1 + $0xd0] sm:$0xff]
    %v54 = vld [vmem:[%s1 + $0xd8] sm:$0xff]
    %v55 = vld [vmem:[%s1 + $0xe0] sm:$0xff]
    %v56 = vld [vmem:[%s1 + $0xe8] sm:$0xff]
    %v57 = vld [vmem:[%s1 + $0xf0] sm:$0xff]
    %v58 = vld [vmem:[%s1 + $0xf8] sm:$0xff]
    %v59 = vld [vmem:[%s1 + $0x100] sm:$0xff]
    %v60 = vld [vmem:[%s1 + $0x108] sm:$0xff]
    %v61 = vld [vmem:[%s1 + $0x110] sm:$0xff]
    %v62 = vld [vmem:[%s1 + $0x118] sm:$0xff]
    %v63 = vld [vmem:[%s1 + $0x120] sm:$0xff]
    %v64 = vld [vmem:[%s1 + $0x128] sm:$0xff]
    %v65 = vld [vmem:[%s1 + $0x130] sm:$0xff]
    %v66 = vld [vmem:[%s1 + $0x138] sm:$0xff]
    %v67 = vld [vmem:[%s1 + $0x140] sm:$0xff]
    %v68 = vld [vmem:[%s1 + $0x148] sm:$0xff]
    %v69 = vld [vmem:[%s1 + $0x150] sm:$0xff]
    %v70 = vld [vmem:[%s1 + $0x158] sm:$0xff]
    %v71 = vld [vmem:[%s1 + $0x160] sm:$0xff]
    %v72 = vld [vmem:[%s1 + $0x168] sm:$0xff]
    %v73 = vld [vmem:[%s1 + $0x170] sm:$0xff]
    %v74 = vld [vmem:[%s1 + $0x178] sm:$0xff]
    %v75 = vld [vmem:[%s1 + $0x180] sm:$0xff]
    %v76 = vld [vmem:[%s1 + $0x188] sm:$0xff]
    %v77 = vld [vmem:[%s1 + $0x190] sm:$0xff]
    %v78 = vld [vmem:[%s1 + $0x198] sm:$0xff]
    %v79 = vld [vmem:[%s1 + $0x1a0] sm:$0xff]
    %v80 = vld [vmem:[%s1 + $0x1a8] sm:$0xff]
    %v81 = vld [vmem:[%s1 + $0x1b0] sm:$0xff]
    %v82 = vld [vmem:[%s1 + $0x1b8] sm:$0xff]
    %v83 = vld [vmem:[%s1 + $0x1c0] sm:$0xff]
    %v84 = vld [vmem:[%s1 + $0x1c8] sm:$0xff]
    %v85 = vld [vmem:[%s1 + $0x1d0] sm:$0xff]
    %v86 = vld [vmem:[%s1 + $0x1d8] sm:$0xff]
    %v87 = vld [vmem:[%s1 + $0x1e0] sm:$0xff]
    %v88 = vld [vmem:[%s1 + $0x1e8] sm:$0xff]
    %v89 = vld [vmem:[%s1 + $0x1f0] sm:$0xff]
    %v90 = vld [vmem:[%s1 + $0x1f8] sm:$0xff]
    %v91 = vld [vmem:[%s1 + $0x200] sm:$0xff]
    %v92 = vld [vmem:[%s1 + $0x208] sm:$0xff]
    %v93 = vld [vmem:[%s1 + $0x210] sm:$0xff]
    %v94 = vld [vmem:[%s1 + $0x218] sm:$0xff]
    %v95 = vld [vmem:[%s1 + $0x220] sm:$0xff]
    %v96 = vld [vmem:[%s1 + $0x228] sm:$0xff]
    %v97 = vld [vmem:[%s1 + $0x230] sm:$0xff]
    %v98 = vld [vmem:[%s1 + $0x238] sm:$0xff]
    %v99 = vld [vmem:[%s1 + $0x240] sm:$0xff]
    %v100 = vld [vmem:[%s1 + $0x248] sm:$0xff]
    %v101 = vld [vmem:[%s1 + $0x250] sm:$0xff]
    %v102 = vld [vmem:[%s1 + $0x258] sm:$0xff]
    %v103 = vld [vmem:[%s1 + $0x260] sm:$0xff]
    %v104 = vld [vmem:[%s1 + $0x268] sm:$0xff]
    %v105 = vld [vmem:[%s1 + $0x270] sm:$0xff]
    %v106 = vld [vmem:[%s1 + $0x278] sm:$0xff]
    %v107 = vld [vmem:[%s1 + $0x280] sm:$0xff]
    %v108 = vld [vmem:[%s1 + $0x288] sm:$0xff]
    %v109 = vld [vmem:[%s1 + $0x290] sm:$0xff]
    %v110 = vld [vmem:[%s1 + $0x298] sm:$0xff]
    %v111 = vld [vmem:[%s1 + $0x2a0] sm:$0xff]
    %v112 = vld [vmem:[%s1 + $0x2a8] sm:$0xff]
    %v113 = vld [vmem:[%s1 + $0x2b0] sm:$0xff]
    %v114 = vld [vmem:[%s1 + $0x2b8] sm:$0xff]
    %v115 = vld [vmem:[%s1 + $0x2c0] sm:$0xff]
    %v116 = vld [vmem:[%s1 + $0x2c8] sm:$0xff]
    %v117 = vld [vmem:[%s1 + $0x2d0] sm:$0xff]
    %v118 = vld [vmem:[%s1 + $0x2d8] sm:$0xff]
    %v119 = vld [vmem:[%s1 + $0x2e0] sm:$0xff]
    %v120 = vld [vmem:[%s1 + $0x2e8] sm:$0xff]
    %v121 = vld [vmem:[%s1 + $0x2f0] sm:$0xff]
    %v122 = vld [vmem:[%s1 + $0x2f8] sm:$0xff]
    %v123 = vld [vmem:[%s1 + $0x300] sm:$0xff]
    %v124 = vld [vmem:[%s1 + $0x308] sm:$0xff]
    %v125 = vld [vmem:[%s1 + $0x310] sm:$0xff]
    %v126 = vld [vmem:[%s1 + $0x318] sm:$0xff]
    %v127 = vld [vmem:[%s1 + $0x320] sm:$0xff]
    %v128 = vld [vmem:[%s1 + $0x328] sm:$0xff]
    %v129 = vld [vmem:[%s1 + $0x330] sm:$0xff]
    %v130 = vld [vmem:[%s1 + $0x338] sm:$0xff]
    %v131 = vld [vmem:[%s1 + $0x340] sm:$0xff]
    %v132 = vld [vmem:[%s1 + $0x348] sm:$0xff]
    %v133 = vld [vmem:[%s1 + $0x350] sm:$0xff]
    %v134 = vld [vmem:[%s1 + $0x358] sm:$0xff]
    %v135 = vld [vmem:[%s1 + $0x360] sm:$0xff]
    %v136 = vld [vmem:[%s1 + $0x368] sm:$0xff]
    %v137 = vld [vmem:[%s1 + $0x370] sm:$0xff]
    %v138 = vld [vmem:[%s1 + $0x378] sm:$0xff]
    %v139 = vld [vmem:[%s1 + $0x380] sm:$0xff]
    %v140 = vld [vmem:[%s1 + $0x388] sm:$0xff]
    %v141 = vld [vmem:[%s1 + $0x390] sm:$0xff]
    %v142 = vld [vmem:[%s1 + $0x398] sm:$0xff]
    %v143 = vld [vmem:[%s1 + $0x3a0] sm:$0xff]
    %v144 = vld [vmem:[%s1 + $0x3a8] sm:$0xff]
    %v145 = vld [vmem:[%s1 + $0x3b0] sm:$0xff]
    %v146 = vld [vmem:[%s1 + $0x3b8] sm:$0xff]
    %v147 = vld [vmem:[%s1 + $0x3c0] sm:$0xff]
    %v148 = vld [vmem:[%s1 + $0x3c8] sm:$0xff]
    %v149 = vld [vmem:[%s1 + $0x3d0] sm:$0xff]
    %v150 = vld [vmem:[%s1 + $0x3d8] sm:$0xff]
    %v151 = vld [vmem:[%s1 + $0x3e0] sm:$0xff]
    %v152 = vld [vmem:[%s1 + $0x3e8] sm:$0xff]
    %v153 = vld [vmem:[%s1 + $0x3f0] sm:$0xff]
    %v154 = vld [vmem:[%s1 + $0x3f8] sm:$0xff]
    %v155 = vld [vmem:[%s1 + $0x400] sm:$0xff]
    %v156 = vld [vmem:[%s1 + $0x408] sm:$0xff]
    %v157 = vld [vmem:[%s1 + $0x410] sm:$0xff]
    %v158 = vld [vmem:[%s1 + $0x418] sm:$0xff]
    %v159 = vld [vmem:[%s1 + $0x420] sm:$0xff]
    %v160 = vld [vmem:[%s1 + $0x428] sm:$0xff]
    %v161 = vld [vmem:[%s1 + $0x430] sm:$0xff]
    %v162 = vld [vmem:[%s1 + $0x438] sm:$0xff]
    %v163 = vld [vmem:[%s1 + $0x440] sm:$0xff]
    %v164 = vld [vmem:[%s1 + $0x448] sm:$0xff]
    %v165 = vld [vmem:[%s1 + $0x450] sm:$0xff]
    %v166 = vld [vmem:[%s1 + $0x458] sm:$0xff]
    %v167 = vld [vmem:[%s1 + $0x460] sm:$0xff]
    %v168 = vld [vmem:[%s1 + $0x468] sm:$0xff]
    %v169 = vld [vmem:[%s1 + $0x470] sm:$0xff]
    %v170 = vld [vmem:[%s1 + $0x478] sm:$0xff]
    %v171 = vld [vmem:[%s1 + $0x480] sm:$0xff]
    %v172 = vld [vmem:[%s1 + $0x488] sm:$0xff]
    %v173 = vld [vmem:[%s1 + $0x490] sm:$0xff]
    %v174 = vld [vmem:[%s1 + $0x498] sm:$0xff]
    %v175 = vld [vmem:[%s1 + $0x4a0] sm:$0xff]
    %v176 = vld [vmem:[%s1 + $0x4a8] sm:$0xff]
    %v177 = vld [vmem:[%s1 + $0x4b0] sm:$0xff]
    %v178 = vld [vmem:[%s1 + $0x4b8] sm:$0xff]
    %v179 = vld [vmem:[%s1 + $0x4c0] sm:$0xff]
    %v180 = vld [vmem:[%s1 + $0x4c8] sm:$0xff]
    %v181 = vld [vmem:[%s1 + $0x4d0] sm:$0xff]
    %v182 = vld [vmem:[%s1 + $0x4d8] sm:$0xff]
    %v183 = vld [vmem:[%s1 + $0x4e0] sm:$0xff]
    %v184 = vld [vmem:[%s1 + $0x4e8] sm:$0xff]
    %v185 = vld [vmem:[%s1 + $0x4f0] sm:$0xff]
    %v186 = vld [vmem:[%s1 + $0x4f8] sm:$0xff]
    %v187 = vld [vmem:[%s1 + $0x500] sm:$0xff]
    %v188 = vld [vmem:[%s1 + $0x508] sm:$0xff]
    %v189 = vld [vmem:[%s1 + $0x510] sm:$0xff]
    %v190 = vld [vmem:[%s1 + $0x518] sm:$0xff]
    %v191 = vld [vmem:[%s1 + $0x520] sm:$0xff]
    %v192 = vld [vmem:[%s1 + $0x528] sm:$0xff]
    %v193 = vld [vmem:[%s1 + $0x530] sm:$0xff]
    %v194 = vld [vmem:[%s1 + $0x538] sm:$0xff]
    %v195 = vld [vmem:[%s1 + $0x540] sm:$0xff]
    %v196 = vld [vmem:[%s1 + $0x548] sm:$0xff]
    %v197 = vld [vmem:[%s1 + $0x550] sm:$0xff]
    %v198 = vld [vmem:[%s1 + $0x558] sm:$0xff]
    %v199 = vld [vmem:[%s1 + $0x560] sm:$0xff]
    %v200 = vld [vmem:[%s1 + $0x568] sm:$0xff]
    %v201 = vld [vmem:[%s1 + $0x570] sm:$0xff]
    %v202 = vld [vmem:[%s1 + $0x578] sm:$0xff]
    %v203 = vld [vmem:[%s1 + $0x580] sm:$0xff]
    %v204 = vld [vmem:[%s1 + $0x588] sm:$0xff]
    %v205 = vld [vmem:[%s1 + $0x590] sm:$0xff]
    %v206 = vld [vmem:[%s1 + $0x598] sm:$0xff]
    %v207 = vld [vmem:[%s1 + $0x5a0] sm:$0xff]
    %v208 = vld [vmem:[%s1 + $0x5a8] sm:$0xff]
    %v209 = vld [vmem:[%s1 + $0x5b0] sm:$0xff]
    %v210 = vld [vmem:[%s1 + $0x5b8] sm:$0xff]
    %v211 = vld [vmem:[%s1 + $0x5c0] sm:$0xff]
    %v212 = vld [vmem:[%s1 + $0x5c8] sm:$0xff]
    %v213 = vld [vmem:[%s1 + $0x5d0] sm:$0xff]
    %v214 = vld [vmem:[%s1 + $0x5d8] sm:$0xff]
    %v215 = vld [vmem:[%s1 + $0x5e0] sm:$0xff]
    %v216 = vld [vmem:[%s1 + $0x5e8] sm:$0xff]
    %v217 = vld [vmem:[%s1 + $0x5f0] sm:$0xff]
    %v218 = vld [vmem:[%s1 + $0x5f8] sm:$0xff]
    %v219 = vpack.c.bf16 %v31, %v27
    %v220 = vpack.c.bf16 %v32, %v28
    %v221 = vpack.c.bf16 %v33, %v29
    %v222 = vpack.c.bf16 %v34, %v30
    %v223 = vpack.c.bf16 %v39, %v35
    %v224 = vpack.c.bf16 %v40, %v36
    %v225 = vpack.c.bf16 %v41, %v37
    %v226 = vpack.c.bf16 %v42, %v38
    %v227 = vpack.c.bf16 %v47, %v43
    %v228 = vpack.c.bf16 %v48, %v44
    %v229 = vpack.c.bf16 %v49, %v45
    %v230 = vpack.c.bf16 %v50, %v46
    %v231 = vpack.c.bf16 %v55, %v51
    %v232 = vpack.c.bf16 %v56, %v52
    %v233 = vpack.c.bf16 %v57, %v53
    %v234 = vpack.c.bf16 %v58, %v54
    %v235 = vpack.c.bf16 %v63, %v59
    %v236 = vpack.c.bf16 %v64, %v60
    %v237 = vpack.c.bf16 %v65, %v61
    %v238 = vpack.c.bf16 %v66, %v62
    %v239 = vpack.c.bf16 %v71, %v67
    %v240 = vpack.c.bf16 %v72, %v68
    %v241 = vpack.c.bf16 %v73, %v69
    %v242 = vpack.c.bf16 %v74, %v70
    %v243 = vpack.c.bf16 %v79, %v75
    %v244 = vpack.c.bf16 %v80, %v76
    %v245 = vpack.c.bf16 %v81, %v77
    %v246 = vpack.c.bf16 %v82, %v78
    %v247 = vpack.c.bf16 %v87, %v83
    %v248 = vpack.c.bf16 %v88, %v84
    %v249 = vpack.c.bf16 %v89, %v85
    %v250 = vpack.c.bf16 %v90, %v86
    %v251 = vpack.c.bf16 %v95, %v91
    %v252 = vpack.c.bf16 %v96, %v92
    %v253 = vpack.c.bf16 %v97, %v93
    %v254 = vpack.c.bf16 %v98, %v94
    %v255 = vpack.c.bf16 %v103, %v99
    %v256 = vpack.c.bf16 %v104, %v100
    %v257 = vpack.c.bf16 %v105, %v101
    %v258 = vpack.c.bf16 %v106, %v102
    %v259 = vpack.c.bf16 %v111, %v107
    %v260 = vpack.c.bf16 %v112, %v108
    %v261 = vpack.c.bf16 %v113, %v109
    %v262 = vpack.c.bf16 %v114, %v110
    %v263 = vpack.c.bf16 %v119, %v115
    %v264 = vpack.c.bf16 %v120, %v116
    %v265 = vpack.c.bf16 %v121, %v117
    %v266 = vpack.c.bf16 %v122, %v118
    %v267 = vpack.c.bf16 %v127, %v123
    %v268 = vpack.c.bf16 %v128, %v124
    %v269 = vpack.c.bf16 %v129, %v125
    %v270 = vpack.c.bf16 %v130, %v126
    %v271 = vpack.c.bf16 %v135, %v131
    %v272 = vpack.c.bf16 %v136, %v132
    %v273 = vpack.c.bf16 %v137, %v133
    %v274 = vpack.c.bf16 %v138, %v134
    %v275 = vpack.c.bf16 %v143, %v139
    %v276 = vpack.c.bf16 %v144, %v140
    %v277 = vpack.c.bf16 %v145, %v141
    %v278 = vpack.c.bf16 %v146, %v142
    %v279 = vpack.c.bf16 %v151, %v147
    %v280 = vpack.c.bf16 %v152, %v148
    %v281 = vpack.c.bf16 %v153, %v149
    %v282 = vpack.c.bf16 %v154, %v150
    %v283 = vpack.c.bf16 %v159, %v155
    %v284 = vpack.c.bf16 %v160, %v156
    %v285 = vpack.c.bf16 %v161, %v157
    %v286 = vpack.c.bf16 %v162, %v158
    %v287 = vpack.c.bf16 %v167, %v163
    %v288 = vpack.c.bf16 %v168, %v164
    %v289 = vpack.c.bf16 %v169, %v165
    %v290 = vpack.c.bf16 %v170, %v166
    %v291 = vpack.c.bf16 %v175, %v171
    %v292 = vpack.c.bf16 %v176, %v172
    %v293 = vpack.c.bf16 %v177, %v173
    %v294 = vpack.c.bf16 %v178, %v174
    %v295 = vpack.c.bf16 %v183, %v179
    %v296 = vpack.c.bf16 %v184, %v180
    %v297 = vpack.c.bf16 %v185, %v181
    %v298 = vpack.c.bf16 %v186, %v182
    %v299 = vpack.c.bf16 %v191, %v187
    %v300 = vpack.c.bf16 %v192, %v188
    %v301 = vpack.c.bf16 %v193, %v189
    %v302 = vpack.c.bf16 %v194, %v190
    %v303 = vpack.c.bf16 %v199, %v195
    %v304 = vpack.c.bf16 %v200, %v196
    %v305 = vpack.c.bf16 %v201, %v197
    %v306 = vpack.c.bf16 %v202, %v198
    %v307 = vpack.c.bf16 %v207, %v203
    %v308 = vpack.c.bf16 %v208, %v204
    %v309 = vpack.c.bf16 %v209, %v205
    %v310 = vpack.c.bf16 %v210, %v206
    %v311 = vpack.c.bf16 %v215, %v211
    %v312 = vpack.c.bf16 %v216, %v212
    %v313 = vpack.c.bf16 %v217, %v213
    %v314 = vpack.c.bf16 %v218, %v214
    %v315 = vld [vmem:[%s2] sm:$0xff]
    %v316 = vld [vmem:[%s2 + $0x8] sm:$0xff]
    %v317 = vld [vmem:[%s2 + $0x10] sm:$0xff]
    %v318 = vld [vmem:[%s2 + $0x18] sm:$0xff]
    %319 = vmatprep.subr.bf16.mxu0 %v220
    %320 = vmatpush1.bf16.msra.mxu0 %v219
    %321 = vmatprep.subr.bf16.mxu0 %v224
    %322 = vmatpush1.bf16.msra.mxu0 %v223
    %323 = vmatprep.subr.bf16.mxu0 %v228
    %324 = vmatpush1.bf16.msra.mxu0 %v227
    %325 = vmatprep.subr.bf16.mxu0 %v232
    %326 = vmatpush1.bf16.msra.mxu0 %v231
    %327 = vmatprep.subr.bf16.mxu0 %v236
    %328 = vmatpush1.bf16.msra.mxu0 %v235
    %329 = vmatprep.subr.bf16.mxu0 %v240
    %330 = vmatpush1.bf16.msra.mxu0 %v239
    %331 = vmatprep.subr.bf16.mxu0 %v244
    %332 = vmatpush1.bf16.msra.mxu0 %v243
    %333 = vmatprep.subr.bf16.mxu0 %v248
    %334 = vmatpush1.bf16.msra.mxu0 %v247
    %335 = vmatprep.subr.bf16.mxu0 %v252
    %336 = vmatpush1.bf16.msra.mxu0 %v251
    %337 = vmatprep.subr.bf16.mxu0 %v256
    %338 = vmatpush1.bf16.msra.mxu0 %v255
    %339 = vmatprep.subr.bf16.mxu0 %v260
    %340 = vmatpush1.bf16.msra.mxu0 %v259
    %341 = vmatprep.subr.bf16.mxu0 %v264
    %342 = vmatpush1.bf16.msra.mxu0 %v263
    %343 = vmatprep.subr.bf16.mxu0 %v268
    %344 = vmatpush1.bf16.msra.mxu0 %v267
    %345 = vmatprep.subr.bf16.mxu0 %v272
    %346 = vmatpush1.bf16.msra.mxu0 %v271
    %347 = vmatprep.subr.bf16.mxu0 %v276
    %348 = vmatpush1.bf16.msra.mxu0 %v275
    %349 = vmatprep.subr.bf16.mxu0 %v280
    %350 = vmatpush1.bf16.msra.mxu0 %v279
    %351 = vmatprep.mubr.bf16.mxu0 %v25
    %352 = vmatmul.mubr.bf16.gmra.mrb[0].mxu0 %v24
    %v353 = vpop.f32.mrb[0].mxu0
    %v354 = vadd.f32 %v315, %v353
    %v355 = vpop.f32.mrb[0].mxu0
    %v356 = vadd.f32 %v316, %v355
    %v357 = vpop.f32.mrb[0].mxu0
    %v358 = vpop.f32.mrb[0].mxu0
    %359 = vdwg.mxu0
    %360 = vmatprep.subr.bf16.mxu0 %v284
    %361 = vmatpush1.bf16.msra.mxu0 %v283
    %362 = vmatprep.subr.bf16.mxu0 %v288
    %363 = vmatpush1.bf16.msra.mxu0 %v287
    %364 = vmatprep.subr.bf16.mxu0 %v292
    %365 = vmatpush1.bf16.msra.mxu0 %v291
    %366 = vmatprep.subr.bf16.mxu0 %v296
    %367 = vmatpush1.bf16.msra.mxu0 %v295
    %368 = vmatprep.subr.bf16.mxu0 %v300
    %369 = vmatpush1.bf16.msra.mxu0 %v299
    %370 = vmatprep.subr.bf16.mxu0 %v304
    %371 = vmatpush1.bf16.msra.mxu0 %v303
    %372 = vmatprep.subr.bf16.mxu0 %v308
    %373 = vmatpush1.bf16.msra.mxu0 %v307
    %374 = vmatprep.subr.bf16.mxu0 %v312
    %375 = vmatpush1.bf16.msra.mxu0 %v311
    %376 = vmatprep.subr.bf16.mxu0 0
    %377 = vmatpush1.bf16.msra.mxu0 0
    %378 = vmatprep.subr.bf16.mxu0 0
    %379 = vmatpush1.bf16.msra.mxu0 0
    %380 = vmatprep.subr.bf16.mxu0 0
    %381 = vmatpush1.bf16.msra.mxu0 0
    %382 = vmatprep.subr.bf16.mxu0 0
    %383 = vmatpush1.bf16.msra.mxu0 0
    %384 = vmatprep.subr.bf16.mxu0 0
    %385 = vmatpush1.bf16.msra.mxu0 0
    %386 = vmatprep.subr.bf16.mxu0 0
    %387 = vmatpush1.bf16.msra.mxu0 0
    %388 = vmatprep.subr.bf16.mxu0 0
    %389 = vmatpush1.bf16.msra.mxu0 0
    %390 = vmatprep.subr.bf16.mxu0 0
    %391 = vmatpush1.bf16.msra.mxu0 0
    %392 = vmatprep.mubr.bf16.mxu0 0
    %393 = vmatmul.mubr.bf16.gmra.mrb[0].mxu0 %v26
    %v394 = vpop.f32.mrb[0].mxu0
    %v395 = vadd.f32 %v354, %v394
    %v396 = vpop.f32.mrb[0].mxu0
    %v397 = vadd.f32 %v356, %v396
    %v398 = vpop.f32.mrb[0].mxu0
    %v399 = vpop.f32.mrb[0].mxu0
    %400 = vdwg.mxu0
    %401 = vmatprep.subr.bf16.mxu0 %v222
    %402 = vmatpush1.bf16.msra.mxu0 %v221
    %403 = vmatprep.subr.bf16.mxu0 %v226
    %404 = vmatpush1.bf16.msra.mxu0 %v225
    %405 = vmatprep.subr.bf16.mxu0 %v230
    %406 = vmatpush1.bf16.msra.mxu0 %v229
    %407 = vmatprep.subr.bf16.mxu0 %v234
    %408 = vmatpush1.bf16.msra.mxu0 %v233
    %409 = vmatprep.subr.bf16.mxu0 %v238
    %410 = vmatpush1.bf16.msra.mxu0 %v237
    %411 = vmatprep.subr.bf16.mxu0 %v242
    %412 = vmatpush1.bf16.msra.mxu0 %v241
    %413 = vmatprep.subr.bf16.mxu0 %v246
    %414 = vmatpush1.bf16.msra.mxu0 %v245
    %415 = vmatprep.subr.bf16.mxu0 %v250
    %416 = vmatpush1.bf16.msra.mxu0 %v249
    %417 = vmatprep.subr.bf16.mxu0 %v254
    %418 = vmatpush1.bf16.msra.mxu0 %v253
    %419 = vmatprep.subr.bf16.mxu0 %v258
    %420 = vmatpush1.bf16.msra.mxu0 %v257
    %421 = vmatprep.subr.bf16.mxu0 %v262
    %422 = vmatpush1.bf16.msra.mxu0 %v261
    %423 = vmatprep.subr.bf16.mxu0 %v266
    %424 = vmatpush1.bf16.msra.mxu0 %v265
    %425 = vmatprep.subr.bf16.mxu0 %v270
    %426 = vmatpush1.bf16.msra.mxu0 %v269
    %427 = vmatprep.subr.bf16.mxu0 %v274
    %428 = vmatpush1.bf16.msra.mxu0 %v273
    %429 = vmatprep.subr.bf16.mxu0 %v278
    %430 = vmatpush1.bf16.msra.mxu0 %v277
    %431 = vmatprep.subr.bf16.mxu0 %v282
    %432 = vmatpush1.bf16.msra.mxu0 %v281
    %433 = vmatprep.mubr.bf16.mxu0 %v25
    %434 = vmatmul.mubr.bf16.gmra.mrb[0].mxu0 %v24
    %v435 = vpop.f32.mrb[0].mxu0
    %v436 = vadd.f32 %v317, %v435
    %v437 = vpop.f32.mrb[0].mxu0
    %v438 = vadd.f32 %v318, %v437
    %v439 = vpop.f32.mrb[0].mxu0
    %v440 = vpop.f32.mrb[0].mxu0
    %441 = vdwg.mxu0
    %442 = vmatprep.subr.bf16.mxu0 %v286
    %443 = vmatpush1.bf16.msra.mxu0 %v285
    %444 = vmatprep.subr.bf16.mxu0 %v290
    %445 = vmatpush1.bf16.msra.mxu0 %v289
    %446 = vmatprep.subr.bf16.mxu0 %v294
    %447 = vmatpush1.bf16.msra.mxu0 %v293
    %448 = vmatprep.subr.bf16.mxu0 %v298
    %449 = vmatpush1.bf16.msra.mxu0 %v297
    %450 = vmatprep.subr.bf16.mxu0 %v302
    %451 = vmatpush1.bf16.msra.mxu0 %v301
    %452 = vmatprep.subr.bf16.mxu0 %v306
    %453 = vmatpush1.bf16.msra.mxu0 %v305
    %454 = vmatprep.subr.bf16.mxu0 %v310
    %455 = vmatpush1.bf16.msra.mxu0 %v309
    %456 = vmatprep.subr.bf16.mxu0 %v314
    %457 = vmatpush1.bf16.msra.mxu0 %v313
    %458 = vmatprep.subr.bf16.mxu0 0
    %459 = vmatpush1.bf16.msra.mxu0 0
    %460 = vmatprep.subr.bf16.mxu0 0
    %461 = vmatpush1.bf16.msra.mxu0 0
    %462 = vmatprep.subr.bf16.mxu0 0
    %463 = vmatpush1.bf16.msra.mxu0 0
    %464 = vmatprep.subr.bf16.mxu0 0
    %465 = vmatpush1.bf16.msra.mxu0 0
    %466 = vmatprep.subr.bf16.mxu0 0
    %467 = vmatpush1.bf16.msra.mxu0 0
    %468 = vmatprep.subr.bf16.mxu0 0
    %469 = vmatpush1.bf16.msra.mxu0 0
    %470 = vmatprep.subr.bf16.mxu0 0
    %471 = vmatpush1.bf16.msra.mxu0 0
    %472 = vmatprep.subr.bf16.mxu0 0
    %473 = vmatpush1.bf16.msra.mxu0 0
    %474 = vmatprep.mubr.bf16.mxu0 0
    %475 = vmatmul.mubr.bf16.gmra.mrb[0].mxu0 %v26
    %v476 = vpop.f32.mrb[0].mxu0
    %v477 = vadd.f32 %v436, %v476
    %v478 = vpop.f32.mrb[0].mxu0
    %v479 = vadd.f32 %v438, %v478
    %v480 = vpop.f32.mrb[0].mxu0
    %v481 = vpop.f32.mrb[0].mxu0
    %482 = vdwg.mxu0
    %v483 = vxor.u32 %v395, 2147483648
    %v484 = vmul.f32 %v483, 1.442695
    %v485 = vpow.pop %v484
    %v486 = vadd.f32 %v485, 1.0
    %v487 = vrcp.pop %v486
    %v488 = vmul.f32 1.0, %v487
    %v489 = vxor.u32 %v397, 2147483648
    %v490 = vmul.f32 %v489, 1.442695
    %v491 = vpow.pop %v490
    %v492 = vadd.f32 %v491, 1.0
    %v493 = vrcp.pop %v492
    %v494 = vmul.f32 1.0, %v493
    %v495 = vtanh.pop %v477
    %v496 = vxor.u32 %v479, 2147483648
    %v497 = vmul.f32 %v496, 1.442695
    %v498 = vpow.pop %v497
    %v499 = vadd.f32 %v498, 1.0
    %v500 = vrcp.pop %v499
    %v501 = vmul.f32 1.0, %v500
    %v502 = vld [vmem:[%s3] sm:$0xff]
    %v503 = vmul.f32 %v494, %v502
    %v504 = vmul.f32 %v488, %v495
    %v505 = vadd.f32 %v503, %v504
    %v506 = vtanh.pop %v505
    %v507 = vmul.f32 %v501, %v506
    %508 = vst [vmem:[%s4] sm:$0xff] %v507
    %509 = vst [vmem:[#allocation2] sm:$0xff] %v505
    // Predicated region
    $region18: #{carl_forward.19} parent=1 // pred_check
      _
    $region19: #{carl_forward.19} parent=1 // pred_check_branch
      %511 = sbr.rel (0) target = $region21
    $region20: #{carl_forward.19} parent=1 // pred_region
      _
    $region21: #{carl_forward.19} parent=1 // pred_fallthru
      _
    // Predicated region
    $region22: #{carl_forward.19} parent=1 // pred_check
      _
    $region23: #{carl_forward.19} parent=1 // pred_check_branch
      %513 = sbr.rel (0) target = $region25
    $region24: #{carl_forward.19} parent=1 // pred_region
      %s515 = ssub.s32 128, 128
      %516 = vsyncadd [#allocation3], %s515
      %s518 = sshll.u32 [#allocation2], 4
      %s519 = int_to_ptr.vmem [resolvable:$true] %s518
      %521 = dma.vmem_to_hbm [thread:$0]  %s519, 128, %s5, [#allocation3]
    $region25: #{carl_forward.19} parent=1 // pred_fallthru
      _
    // Predicated region
    $region26: #{carl_forward.19} parent=1 // pred_check
      _
    $region27: #{carl_forward.19} parent=1 // pred_check_branch
      %523 = sbr.rel (0) target = $region29
    $region28: #{carl_forward.19} parent=1 // pred_region
      _
    $region29: #{carl_forward.19} parent=1 // pred_fallthru
      _
    // Predicated region
    $region30: #{carl_forward.19} parent=1 // pred_check
      _
    $region31: #{carl_forward.19} parent=1 // pred_check_branch
      %525 = sbr.rel (0) target = $region33
    $region32: #{carl_forward.19} parent=1 // pred_region
      %526 = dma.done [#allocation3], 128
    $region33: #{carl_forward.19} parent=1 // pred_fallthru
      _
    %527 = vsyncpa [#allocation3], 1

// kernel: carl_forward.21
$region0: #{carl_forward.21}
  #allocation0 [shape = 'u32[]', space=smem, size = 0x4, offset = 0x4, fixed_abs, tag = 'smem constant byte address 0x4 - core index']
  #allocation1 [shape = 'u32[144,128]{1,0:T(1,128)}', space=vmem, size = 0x12000, scoped, tag = 'internal scratch']
  %s0 = inlined_call_operand.vmem [shape: f32[2,256], index: 0, kind: input, shape index: {}]
  %s1 = inlined_call_operand.vmem [shape: f32[256,128], index: 1, kind: input, shape index: {}]
  %s2 = inlined_call_operand.vmem [shape: f32[1,128], index: 2, kind: input, shape index: {}]
  %s3 = inlined_call_operand.vmem [shape: f32[128,128], index: 3, kind: input, shape index: {}]
  %s4 = inlined_call_operand.vmem [shape: f32[1,128], index: 4, kind: input, shape index: {}]
  %s5 = inlined_call_operand.vmem [shape: f32[2,128], index: 5, kind: output, shape index: {}]
  %s6 = sld [smem:[#allocation0]]
  $region30: #{carl_forward.21} parent=0
    _
  %s8 = ssub.s32 1, %s6
  %s9 = scalar_select 0, %s8, %s6
  // Predicated region
  $region2: #{carl_forward.21} parent=0 // pred_check
    _
  $region3: #{carl_forward.21} parent=0 // pred_check_branch
    %11 = sbr.rel (0) target = $region5
  $region4: #{carl_forward.21} parent=0 // pred_region
    _
  $region5: #{carl_forward.21} parent=0 // pred_fallthru
    _
  // Predicated region
  $region6: #{carl_forward.21} parent=0 // pred_check
    _
  $region7: #{carl_forward.21} parent=0 // pred_check_branch
    %13 = sbr.rel (0) target = $region9
  $region8: #{carl_forward.21} parent=0 // pred_region
    _
  $region9: #{carl_forward.21} parent=0 // pred_fallthru
    _
  // Predicated region
  $region10: #{carl_forward.21} parent=0 // pred_check
    _
  $region11: #{carl_forward.21} parent=0 // pred_check_branch
    %15 = sbr.rel (0) target = $region13
  $region12: #{carl_forward.21} parent=0 // pred_region
    _
  $region13: #{carl_forward.21} parent=0 // pred_fallthru
    _
  // Predicated region
  $region14: #{carl_forward.21} parent=0 // pred_check
    _
  $region15: #{carl_forward.21} parent=0 // pred_check_branch
    %17 = sbr.rel (0) target = $region17
  $region16: #{carl_forward.21} parent=0 // pred_region
    _
  $region17: #{carl_forward.21} parent=0 // pred_fallthru
    _
  // Predicated region
  $region18: #{carl_forward.21} parent=0 // pred_check
    _
  $region19: #{carl_forward.21} parent=0 // pred_check_branch
    %19 = sbr.rel (0) target = $region21
  $region20: #{carl_forward.21} parent=0 // pred_region
    _
  $region21: #{carl_forward.21} parent=0 // pred_fallthru
    _
  %v21 = vld [vmem:[%s0] sm:$0xf]
  %v24 = vunpack.c.l.s4 1983009808
  %v25 = vunpack.c.0.s8 %v24
  %v26 = vlaneseq
  %v27 = vshrl.u32 %v26, 7
  %v28 = vsub.s32 %v25, %v27
  %v29 = vrot.slane %v21, %v28
  %v30 = vcombine.high %v29, %v29
  %v33 = vpack.c.bf16 %v29, %v29
  %v34 = vpack.c.bf16 %v30, %v30
  %v35 = vld [vmem:[%s1] sm:$0xff]
  %v36 = vld [vmem:[%s1 + $0x8] sm:$0xff]
  %v37 = vld [vmem:[%s1 + $0x10] sm:$0xff]
  %v38 = vld [vmem:[%s1 + $0x18] sm:$0xff]
  %v39 = vld [vmem:[%s1 + $0x20] sm:$0xff]
  %v40 = vld [vmem:[%s1 + $0x28] sm:$0xff]
  %v41 = vld [vmem:[%s1 + $0x30] sm:$0xff]
  %v42 = vld [vmem:[%s1 + $0x38] sm:$0xff]
  %v43 = vld [vmem:[%s1 + $0x40] sm:$0xff]
  %v44 = vld [vmem:[%s1 + $0x48] sm:$0xff]
  %v45 = vld [vmem:[%s1 + $0x50] sm:$0xff]
  %v46 = vld [vmem:[%s1 + $0x58] sm:$0xff]
  %v47 = vld [vmem:[%s1 + $0x60] sm:$0xff]
  %v48 = vld [vmem:[%s1 + $0x68] sm:$0xff]
  %v49 = vld [vmem:[%s1 + $0x70] sm:$0xff]
  %v50 = vld [vmem:[%s1 + $0x78] sm:$0xff]
  %v51 = vld [vmem:[%s1 + $0x80] sm:$0xff]
  %v52 = vld [vmem:[%s1 + $0x88] sm:$0xff]
  %v53 = vld [vmem:[%s1 + $0x90] sm:$0xff]
  %v54 = vld [vmem:[%s1 + $0x98] sm:$0xff]
  %v55 = vld [vmem:[%s1 + $0xa0] sm:$0xff]
  %v56 = vld [vmem:[%s1 + $0xa8] sm:$0xff]
  %v57 = vld [vmem:[%s1 + $0xb0] sm:$0xff]
  %v58 = vld [vmem:[%s1 + $0xb8] sm:$0xff]
  %v59 = vld [vmem:[%s1 + $0xc0] sm:$0xff]
  %v60 = vld [vmem:[%s1 + $0xc8] sm:$0xff]
  %v61 = vld [vmem:[%s1 + $0xd0] sm:$0xff]
  %v62 = vld [vmem:[%s1 + $0xd8] sm:$0xff]
  %v63 = vld [vmem:[%s1 + $0xe0] sm:$0xff]
  %v64 = vld [vmem:[%s1 + $0xe8] sm:$0xff]
  %v65 = vld [vmem:[%s1 + $0xf0] sm:$0xff]
  %v66 = vld [vmem:[%s1 + $0xf8] sm:$0xff]
  %v67 = vpack.c.bf16 %v36, %v35
  %v68 = vpack.c.bf16 %v38, %v37
  %v69 = vpack.c.bf16 %v40, %v39
  %v70 = vpack.c.bf16 %v42, %v41
  %v71 = vpack.c.bf16 %v44, %v43
  %v72 = vpack.c.bf16 %v46, %v45
  %v73 = vpack.c.bf16 %v48, %v47
  %v74 = vpack.c.bf16 %v50, %v49
  %v75 = vpack.c.bf16 %v52, %v51
  %v76 = vpack.c.bf16 %v54, %v53
  %v77 = vpack.c.bf16 %v56, %v55
  %v78 = vpack.c.bf16 %v58, %v57
  %v79 = vpack.c.bf16 %v60, %v59
  %v80 = vpack.c.bf16 %v62, %v61
  %v81 = vpack.c.bf16 %v64, %v63
  %v82 = vpack.c.bf16 %v66, %v65
  %v83 = vld [vmem:[%s2] sm:$0x1]
  %v85 = vlaneseq
  %v86 = vshrl.u32 %v85, 7
  %v87 = vsub.s32 0, %v86
  %v88 = vrot.slane %v83, %v87
  %90 = vmatprep.subr.bf16.mxu0 0
  %91 = vmatpush1.bf16.msra.mxu0 %v67
  %92 = vmatprep.subr.bf16.mxu0 0
  %93 = vmatpush1.bf16.msra.mxu0 %v68
  %94 = vmatprep.subr.bf16.mxu0 0
  %95 = vmatpush1.bf16.msra.mxu0 %v69
  %96 = vmatprep.subr.bf16.mxu0 0
  %97 = vmatpush1.bf16.msra.mxu0 %v70
  %98 = vmatprep.subr.bf16.mxu0 0
  %99 = vmatpush1.bf16.msra.mxu0 %v71
  %100 = vmatprep.subr.bf16.mxu0 0
  %101 = vmatpush1.bf16.msra.mxu0 %v72
  %102 = vmatprep.subr.bf16.mxu0 0
  %103 = vmatpush1.bf16.msra.mxu0 %v73
  %104 = vmatprep.subr.bf16.mxu0 0
  %105 = vmatpush1.bf16.msra.mxu0 %v74
  %106 = vmatprep.subr.bf16.mxu0 0
  %107 = vmatpush1.bf16.msra.mxu0 %v75
  %108 = vmatprep.subr.bf16.mxu0 0
  %109 = vmatpush1.bf16.msra.mxu0 %v76
  %110 = vmatprep.subr.bf16.mxu0 0
  %111 = vmatpush1.bf16.msra.mxu0 %v77
  %112 = vmatprep.subr.bf16.mxu0 0
  %113 = vmatpush1.bf16.msra.mxu0 %v78
  %114 = vmatprep.subr.bf16.mxu0 0
  %115 = vmatpush1.bf16.msra.mxu0 %v79
  %116 = vmatprep.subr.bf16.mxu0 0
  %117 = vmatpush1.bf16.msra.mxu0 %v80
  %118 = vmatprep.subr.bf16.mxu0 0
  %119 = vmatpush1.bf16.msra.mxu0 %v81
  %120 = vmatprep.subr.bf16.mxu0 0
  %121 = vmatpush1.bf16.msra.mxu0 %v82
  %122 = vmatprep.mubr.bf16.mxu0 %v34
  %123 = vmatmul.mubr.bf16.gmra.mrb[0].mxu0 %v33
  %v124 = vpop.f32.mrb[0].mxu0
  %v125 = vadd.f32 %v88, %v124
  %v126 = vpop.f32.mrb[0].mxu0
  %v127 = vpop.f32.mrb[0].mxu0
  %v128 = vpop.f32.mrb[0].mxu0
  %129 = vdwg.mxu0
  %v130 = vmax.f32 %v125, 0.0
  %v131 = vpack.c.bf16 %v130, %v130
  %v132 = vld [vmem:[%s3] sm:$0xff]
  %v133 = vld [vmem:[%s3 + $0x8] sm:$0xff]
  %v134 = vld [vmem:[%s3 + $0x10] sm:$0xff]
  %v135 = vld [vmem:[%s3 + $0x18] sm:$0xff]
  %v136 = vld [vmem:[%s3 + $0x20] sm:$0xff]
  %v137 = vld [vmem:[%s3 + $0x28] sm:$0xff]
  %v138 = vld [vmem:[%s3 + $0x30] sm:$0xff]
  %v139 = vld [vmem:[%s3 + $0x38] sm:$0xff]
  %v140 = vld [vmem:[%s3 + $0x40] sm:$0xff]
  %v141 = vld [vmem:[%s3 + $0x48] sm:$0xff]
  %v142 = vld [vmem:[%s3 + $0x50] sm:$0xff]
  %v143 = vld [vmem:[%s3 + $0x58] sm:$0xff]
  %v144 = vld [vmem:[%s3 + $0x60] sm:$0xff]
  %v145 = vld [vmem:[%s3 + $0x68] sm:$0xff]
  %v146 = vld [vmem:[%s3 + $0x70] sm:$0xff]
  %v147 = vld [vmem:[%s3 + $0x78] sm:$0xff]
  %v148 = vpack.c.bf16 %v133, %v132
  %v149 = vpack.c.bf16 %v135, %v134
  %v150 = vpack.c.bf16 %v137, %v136
  %v151 = vpack.c.bf16 %v139, %v138
  %v152 = vpack.c.bf16 %v141, %v140
  %v153 = vpack.c.bf16 %v143, %v142
  %v154 = vpack.c.bf16 %v145, %v144
  %v155 = vpack.c.bf16 %v147, %v146
  %v156 = vld [vmem:[%s4] sm:$0x1]
  %v158 = vlaneseq
  %v159 = vshrl.u32 %v158, 7
  %v160 = vsub.s32 0, %v159
  %v161 = vrot.slane %v156, %v160
  %163 = vmatprep.subr.bf16.mxu0 0
  %164 = vmatpush1.bf16.msra.mxu0 %v148
  %165 = vmatprep.subr.bf16.mxu0 0
  %166 = vmatpush1.bf16.msra.mxu0 %v149
  %167 = vmatprep.subr.bf16.mxu0 0
  %168 = vmatpush1.bf16.msra.mxu0 %v150
  %169 = vmatprep.subr.bf16.mxu0 0
  %170 = vmatpush1.bf16.msra.mxu0 %v151
  %171 = vmatprep.subr.bf16.mxu0 0
  %172 = vmatpush1.bf16.msra.mxu0 %v152
  %173 = vmatprep.subr.bf16.mxu0 0
  %174 = vmatpush1.bf16.msra.mxu0 %v153
  %175 = vmatprep.subr.bf16.mxu0 0
  %176 = vmatpush1.bf16.msra.mxu0 %v154
  %177 = vmatprep.subr.bf16.mxu0 0
  %178 = vmatpush1.bf16.msra.mxu0 %v155
  %179 = vmatprep.subr.bf16.mxu0 0
  %180 = vmatpush1.bf16.msra.mxu0 0
  %181 = vmatprep.subr.bf16.mxu0 0
  %182 = vmatpush1.bf16.msra.mxu0 0
  %183 = vmatprep.subr.bf16.mxu0 0
  %184 = vmatpush1.bf16.msra.mxu0 0
  %185 = vmatprep.subr.bf16.mxu0 0
  %186 = vmatpush1.bf16.msra.mxu0 0
  %187 = vmatprep.subr.bf16.mxu0 0
  %188 = vmatpush1.bf16.msra.mxu0 0
  %189 = vmatprep.subr.bf16.mxu0 0
  %190 = vmatpush1.bf16.msra.mxu0 0
  %191 = vmatprep.subr.bf16.mxu0 0
  %192 = vmatpush1.bf16.msra.mxu0 0
  %193 = vmatprep.subr.bf16.mxu0 0
  %194 = vmatpush1.bf16.msra.mxu0 0
  %195 = vmatprep.mubr.bf16.mxu0 0
  %196 = vmatmul.mubr.bf16.gmra.mrb[0].mxu0 %v131
  %v197 = vpop.f32.mrb[0].mxu0
  %v198 = vadd.f32 %v161, %v197
  %v199 = vpop.f32.mrb[0].mxu0
  %v200 = vpop.f32.mrb[0].mxu0
  %v201 = vpop.f32.mrb[0].mxu0
  %202 = vdwg.mxu0
  %203 = vst [vmem:[%s5] sm:$0x3] %v198
  // Predicated region
  $region22: #{carl_forward.21} parent=0 // pred_check
    _
  $region23: #{carl_forward.21} parent=0 // pred_check_branch
    %205 = sbr.rel (0) target = $region25
  $region24: #{carl_forward.21} parent=0 // pred_region
    _
  $region25: #{carl_forward.21} parent=0 // pred_fallthru
    _
  // Predicated region
  $region26: #{carl_forward.21} parent=0 // pred_check
    _
  $region27: #{carl_forward.21} parent=0 // pred_check_branch
    %207 = sbr.rel (0) target = $region29
  $region28: #{carl_forward.21} parent=0 // pred_region
    _
  $region29: #{carl_forward.21} parent=0 // pred_fallthru
    _

</llo_original>
